<compile_context>
chip_gen: v7x
topology: tpu7x:2x2x1
jax: 0.10.0
libtpu: 0.0.40
codegen_flags: <defaults>
</compile_context>

<pallas_src>
import jax
import jax.numpy as jnp
import numpy as np
from jax.experimental import pallas as pl
from jax.experimental.pallas import tpu as pltpu


# ---------------------------------------------------------------------------
# Exact GELU (erf form, as nn.GELU() default) from ops guaranteed to lower in Mosaic.
# ---------------------------------------------------------------------------
def _erf(x):
    # Abramowitz & Stegun 7.1.26 rational approximation (max abs err ~1.5e-7).
    a1, a2, a3, a4, a5 = 0.254829592, -0.284496736, 1.421413741, -1.453152027, 1.061405429
    p = 0.3275911
    s = jnp.where(x >= 0.0, 1.0, -1.0)
    z = jnp.abs(x)
    t = 1.0 / (1.0 + p * z)
    poly = ((((a5 * t + a4) * t + a3) * t + a2) * t + a1) * t
    return s * (1.0 - poly * jnp.exp(-z * z))


def _gelu_exact(x):
    return 0.5 * x * (1.0 + _erf(x * 0.7071067811865476))


# ---------------------------------------------------------------------------
# Kernel: one batch tile [BB, T, H] -> logits [BB, C]
# ---------------------------------------------------------------------------
def attn_classifier_kernel(x_ref, mask_ref, wa_ref, ba_ref,
                           w1_ref, b1_ref, w2_ref, b2_ref, out_ref):
    x = x_ref[...]                                            # [BB, T, H], native dtype

    # ---- attention scores on VPU + lane reduce over H -> [BB, T] (T on lane axis) ----
    wa = wa_ref[...]                                          # [1, H], f32 (kept f32)
    s = jnp.sum(x * wa, axis=-1) + ba_ref[0, 0]               # [BB, T], f32 (promotion)

    valid = mask_ref[...] > 0.5                               # [BB, T]  (True = valid)
    s = jnp.where(valid, s, -1e9)

    # ---- softmax over T (lane axis), all temporaries stay 2-D [BB, T] ----
    m = jnp.max(s, axis=1, keepdims=True)                     # [BB, 1]
    e = jnp.exp(s - m)
    attn = e / jnp.sum(e, axis=1, keepdims=True)              # [BB, T], f32

    # ---- attention pooling: broadcast-multiply + sublane reduce ----
    pooled = jnp.sum(attn[:, :, None] * x, axis=1)            # [BB, H], f32
    # dropout is identity in eval mode

    # ---- MLP head (MXU matmuls, f32 accumulation) ----
    h = jnp.dot(pooled.astype(w1_ref.dtype), w1_ref[...],
                preferred_element_type=jnp.float32) + b1_ref[...]
    h = _gelu_exact(h)
    logits = jnp.dot(h.astype(w2_ref.dtype), w2_ref[...],
                     preferred_element_type=jnp.float32) + b2_ref[...]
    out_ref[...] = logits.astype(out_ref.dtype)


# ---------------------------------------------------------------------------
# Wrapper: tiling heuristics + pallas_call
# ---------------------------------------------------------------------------
def _device_kind():
    try:
        return jax.devices()[0].device_kind.lower()
    except Exception:
        return ""


def _num_tensorcores():
    kind = _device_kind()
    # v7x has 2 TensorCores per chip; v4/v5p megacore also exposes 2. v5e/v6e: 1.
    if "v7" in kind or "v4" in kind or "v5p" in kind:
        return 2
    return 1


def _vmem_cap_bytes():
    kind = _device_kind()
    if "v7" in kind:
        return 48 << 20          # 64 MiB physical VMEM -> leave headroom
    if "v5" in kind or "v6" in kind:
        return 96 << 20          # 128 MiB physical VMEM
    return 48 << 20              # conservative default for unknown parts


def attention_classifier_forward(x, mask, params, *, block_b=None):
    B, T, H = x.shape
    hidden = params["w1"].shape[1]
    C = params["w2"].shape[1]
    itemsize = jnp.dtype(x.dtype).itemsize

    # mask goes in as a 2-D [B, T] tensor (T on the lane axis) — no lane-padded trailing 1.
    if mask is None:
        mask2 = jnp.ones((B, T), dtype=jnp.float32)
    else:
        mask2 = (mask > 0.5).astype(jnp.float32)

    num_cores = _num_tensorcores()
    vmem_cap = _vmem_cap_bytes()

    # ---- VMEM-padded sizes ----
    lane = lambda n: pl.cdiv(n, 128) * 128     # lane (minor) padding
    sub = lambda n: pl.cdiv(n, 8) * 8          # sublane padding
    row_bytes = sub(T) * lane(H) * itemsize    # padded VMEM bytes of x per batch row

    # ---- block_b: largest tile fitting the budget, >= one grid step per TensorCore ----
    if block_b is None:
        # x is double-buffered and the f32 attn*x product is roughly another tile,
        # so target <= ~1/6 of the scoped-VMEM cap (and never more than 8 MiB) per buffer.
        target_tile_bytes = min(8 << 20, vmem_cap // 6)
        rows_cap = max(1, target_tile_bytes // row_bytes)
        rows_per_core = pl.cdiv(B, num_cores)
        block_b = min(B, rows_cap, rows_per_core)
    if block_b < B:
        block_b = max(8, (block_b // 8) * 8)   # keep second-minor dims 8-aligned
    block_b = min(block_b, B)
    grid = (pl.cdiv(B, block_b),)

    # ---- explicit VMEM budget: 2x (x + mask) tiles + weights + f32 temporaries ----
    x_tile = block_b * row_bytes
    mask_tile = sub(block_b) * lane(T) * 4
    tmp_bytes = (3 * sub(block_b) * lane(T) * 4          # s, e, attn       [BB, T]  f32
                 + block_b * sub(T) * lane(H) * 4        # attn * x product [BB,T,H] f32
                 + sub(block_b) * lane(H) * 4            # pooled           [BB, H]  f32
                 + 2 * sub(block_b) * lane(hidden) * 4   # h pre/post GELU
                 + sub(block_b) * lane(C) * 4)           # logits
    weight_bytes = 2 * (lane(H) * 4                      # wa row (x2: worst-case buffering)
                        + sub(H) * lane(hidden) * 4 + lane(hidden) * 4
                        + sub(hidden) * lane(C) * 4 + lane(C) * 4)
    need = 2 * (x_tile + mask_tile) + weight_bytes + tmp_bytes + (2 << 20)
    vmem_limit = int(min(vmem_cap, max(32 << 20, need)))

    # ---- advisory cost estimate: this call is HBM-bandwidth bound on x ----
    flops = (2 * B * T * H              # scores
             + 2 * B * T * H            # pooling
             + 2 * B * H * hidden + 2 * B * hidden * C)
    transcendentals = B * T + B * hidden
    weight_raw = sum(int(v.size) * jnp.dtype(v.dtype).itemsize for v in params.values())
    bytes_accessed = (int(x.size) * itemsize + int(mask2.size) * 4
                      + weight_raw + B * C * 4)

    return pl.pallas_call(
        attn_classifier_kernel,
        out_shape=jax.ShapeDtypeStruct((B, C), jnp.float32),
        grid=grid,
        in_specs=[
            pl.BlockSpec((block_b, T, H), lambda i: (i, 0, 0)),   # x tile
            pl.BlockSpec((block_b, T), lambda i: (i, 0)),         # mask tile (2-D)
            pl.BlockSpec((1, H), lambda i: (0, 0)),               # attn weight row, f32
            pl.BlockSpec(memory_space=pltpu.MemorySpace.SMEM),    # attn bias scalar
            pl.BlockSpec((H, hidden), lambda i: (0, 0)),          # W1
            pl.BlockSpec((1, hidden), lambda i: (0, 0)),          # b1
            pl.BlockSpec((hidden, C), lambda i: (0, 0)),          # W2
            pl.BlockSpec((1, C), lambda i: (0, 0)),               # b2
        ],
        out_specs=pl.BlockSpec((block_b, C), lambda i: (i, 0)),
        compiler_params=pltpu.CompilerParams(
            dimension_semantics=("parallel",),
            vmem_limit_bytes=vmem_limit),
        cost_estimate=pl.CostEstimate(
            flops=flops, transcendentals=transcendentals,
            bytes_accessed=bytes_accessed),
    )(x, mask2, params["wa_row"], params["ba"],
      params["w1"], params["b1"], params["w2"], params["b2"])


# ---------------------------------------------------------------------------
# Pure-JAX reference (mirrors the PyTorch module in eval mode)
# ---------------------------------------------------------------------------
def reference_forward(x, mask, params):
    attn_logits = jnp.einsum("bth,h->bt", x, params["wa_row"][0]) + params["ba"][0, 0]
    attn_logits = jnp.where(mask > 0.5, attn_logits, -1e9)
    w = jax.nn.softmax(attn_logits, axis=1)[..., None]
    pooled = jnp.sum(w * x, axis=1)
    h = pooled @ params["w1"] + params["b1"][0]
    h = 0.5 * h * (1.0 + jax.scipy.special.erf(h / jnp.sqrt(2.0)))
    return h @ params["w2"] + params["b2"][0]


if __name__ == "__main__":
    # Small but TPU-friendly shapes: lane-aligned feature dim, module-default hidden_dim.
    B, T, H = 64, 16, 128        # batch, seq, input_dim
    HIDDEN, C = 256, 8           # hidden_dim (nn.Module default), num_classes

    key = jax.random.PRNGKey(0)
    kx, kwa, kba, kw1, kb1, kw2, kb2 = jax.random.split(key, 7)

    x = jax.random.normal(kx, (B, T, H), dtype=jnp.float32)
    # deterministic per-row valid lengths in [1, T]
    lengths = 1 + (jnp.arange(B, dtype=jnp.int32) * 5) % T
    mask = (jnp.arange(T)[None, :] < lengths[:, None]).astype(jnp.float32)

    # Deterministic synthetic parameters (not a checkpoint load).
    params = {
        "wa_row": 0.1 * jax.random.normal(kwa, (1, H), dtype=jnp.float32),   # attn.weight [1,H]
        "ba": 0.1 * jax.random.normal(kba, (1, 1), dtype=jnp.float32),       # attn.bias
        "w1": 0.1 * jax.random.normal(kw1, (H, HIDDEN), dtype=jnp.float32),  # mlp[0].weight^T
        "b1": 0.1 * jax.random.normal(kb1, (1, HIDDEN), dtype=jnp.float32),
        "w2": 0.1 * jax.random.normal(kw2, (HIDDEN, C), dtype=jnp.float32),  # mlp[3].weight^T
        "b2": 0.1 * jax.random.normal(kb2, (1, C), dtype=jnp.float32),
    }

    out = attention_classifier_forward(x, mask, params)
    out = jax.block_until_ready(out)

    ref = reference_forward(x, mask, params)
    np.testing.assert_allclose(np.asarray(out), np.asarray(ref), rtol=2e-4, atol=2e-4)
    assert out.shape == (B, C)
    print("KERNEL_OK")
</pallas_src>

<mosaic_0001>
module attributes {stable_mosaic.version = 11 : i64} {
  func.func @attn_classifier_kernel(%arg0: i32, %arg1: memref<64x16x128xf32, #tpu.memory_space<vmem>>, %arg2: memref<64x16xf32, #tpu.memory_space<vmem>>, %arg3: memref<1x128xf32, #tpu.memory_space<vmem>>, %arg4: memref<1x1xf32, #tpu.memory_space<smem>>, %arg5: memref<128x256xf32, #tpu.memory_space<vmem>>, %arg6: memref<1x256xf32, #tpu.memory_space<vmem>>, %arg7: memref<256x8xf32, #tpu.memory_space<vmem>>, %arg8: memref<1x8xf32, #tpu.memory_space<vmem>>, %arg9: memref<64x8xf32, #tpu.memory_space<vmem>>) attributes {dimension_semantics = [#tpu.dimension_semantics<parallel>], iteration_bounds = array<i64: 1>, scalar_prefetch = 0 : i64, scratch_operands = 0 : i64, tpu.core_type = #tpu.core_type<tc>, window_params = [{transform_indices = @transform_0, window_bounds = array<i64: 64, 16, 128>}, {transform_indices = @transform_1, window_bounds = array<i64: 64, 16>}, {pipeline_mode = #tpu.pipeline_mode<synchronous>, transform_indices = @transform_2, window_bounds = array<i64: 1, 128>}, {transform_indices = @transform_3, window_bounds = array<i64: 1, 1>}, {pipeline_mode = #tpu.pipeline_mode<synchronous>, transform_indices = @transform_4, window_bounds = array<i64: 128, 256>}, {pipeline_mode = #tpu.pipeline_mode<synchronous>, transform_indices = @transform_5, window_bounds = array<i64: 1, 256>}, {pipeline_mode = #tpu.pipeline_mode<synchronous>, transform_indices = @transform_6, window_bounds = array<i64: 256, 8>}, {pipeline_mode = #tpu.pipeline_mode<synchronous>, transform_indices = @transform_7, window_bounds = array<i64: 1, 8>}, {transform_indices = @transform_8, window_bounds = array<i64: 64, 8>}]} {
    %c0 = arith.constant 0 : index
    %c0_0 = arith.constant 0 : index
    %c0_1 = arith.constant 0 : index
    %0 = vector.load %arg1[%c0, %c0_0, %c0_1] : memref<64x16x128xf32, #tpu.memory_space<vmem>>, vector<64x16x128xf32>
    %c0_2 = arith.constant 0 : index
    %c0_3 = arith.constant 0 : index
    %1 = vector.load %arg3[%c0_2, %c0_3] : memref<1x128xf32, #tpu.memory_space<vmem>>, vector<1x128xf32>
    %2 = vector.shape_cast %1 : vector<1x128xf32> to vector<1x1x128xf32>
    %3 = vector.broadcast %2 : vector<1x1x128xf32> to vector<64x16x128xf32>
    %4 = arith.mulf %0, %3 : vector<64x16x128xf32>
    %cst = arith.constant dense<0.000000e+00> : vector<64x16xf32>
    %5 = vector.multi_reduction <add>, %4, %cst [2] : vector<64x16x128xf32> to vector<64x16xf32>
    %c0_4 = arith.constant 0 : index
    %c0_5 = arith.constant 0 : index
    %6 = memref.load %arg4[%c0_4, %c0_5] : memref<1x1xf32, #tpu.memory_space<smem>>
    %7 = vector.broadcast %6 : f32 to vector<64x16xf32>
    %8 = arith.addf %5, %7 : vector<64x16xf32>
    %c0_6 = arith.constant 0 : index
    %c0_7 = arith.constant 0 : index
    %9 = vector.load %arg2[%c0_6, %c0_7] : memref<64x16xf32, #tpu.memory_space<vmem>>, vector<64x16xf32>
    %cst_8 = arith.constant 5.000000e-01 : f32
    %10 = vector.broadcast %cst_8 : f32 to vector<64x16xf32>
    %11 = arith.cmpf ogt, %9, %10 : vector<64x16xf32>
    %cst_9 = arith.constant -1.000000e+09 : f32
    %12 = vector.broadcast %cst_9 : f32 to vector<64x16xf32>
    %13 = arith.select %11, %8, %12 : vector<64x16xi1>, vector<64x16xf32>
    %cst_10 = arith.constant dense<0xFF800000> : vector<64xf32>
    %14 = vector.multi_reduction <maximumf>, %13, %cst_10 [1] : vector<64x16xf32> to vector<64xf32>
    %15 = vector.shape_cast %14 : vector<64xf32> to vector<64x1xf32>
    %16 = vector.broadcast %15 : vector<64x1xf32> to vector<64x16xf32>
    %17 = arith.subf %13, %16 : vector<64x16xf32>
    %18 = math.exp %17 : vector<64x16xf32>
    %cst_11 = arith.constant dense<0.000000e+00> : vector<64xf32>
    %19 = vector.multi_reduction <add>, %18, %cst_11 [1] : vector<64x16xf32> to vector<64xf32>
    %20 = vector.shape_cast %19 : vector<64xf32> to vector<64x1xf32>
    %21 = vector.broadcast %20 : vector<64x1xf32> to vector<64x16xf32>
    %22 = arith.divf %18, %21 : vector<64x16xf32>
    %23 = vector.shape_cast %22 : vector<64x16xf32> to vector<64x16x1xf32>
    %24 = vector.broadcast %23 : vector<64x16x1xf32> to vector<64x16x128xf32>
    %25 = arith.mulf %24, %0 : vector<64x16x128xf32>
    %cst_12 = arith.constant dense<0.000000e+00> : vector<64x128xf32>
    %26 = vector.multi_reduction <add>, %25, %cst_12 [1] : vector<64x16x128xf32> to vector<64x128xf32>
    %c0_13 = arith.constant 0 : index
    %c0_14 = arith.constant 0 : index
    %27 = vector.load %arg5[%c0_13, %c0_14] : memref<128x256xf32, #tpu.memory_space<vmem>>, vector<128x256xf32>
    %cst_15 = arith.constant dense<0.000000e+00> : vector<64x256xf32>
    %28 = tpu.matmul %26, %27, %cst_15 {dimension_numbers = #tpu.dot_dimension_numbers<[1], [0], [0], [1], [0, 0, 1, 1], [], []>} : vector<64x128xf32>, vector<128x256xf32>, vector<64x256xf32> -> vector<64x256xf32>
    %c0_16 = arith.constant 0 : index
    %c0_17 = arith.constant 0 : index
    %29 = vector.load %arg6[%c0_16, %c0_17] : memref<1x256xf32, #tpu.memory_space<vmem>>, vector<1x256xf32>
    %30 = vector.broadcast %29 : vector<1x256xf32> to vector<64x256xf32>
    %31 = arith.addf %28, %30 : vector<64x256xf32>
    %cst_18 = arith.constant 5.000000e-01 : f32
    %32 = vector.broadcast %cst_18 : f32 to vector<64x256xf32>
    %33 = arith.mulf %32, %31 : vector<64x256xf32>
    %cst_19 = arith.constant 0.707106769 : f32
    %34 = vector.broadcast %cst_19 : f32 to vector<64x256xf32>
    %35 = arith.mulf %31, %34 : vector<64x256xf32>
    %cst_20 = arith.constant 0.000000e+00 : f32
    %36 = vector.broadcast %cst_20 : f32 to vector<64x256xf32>
    %37 = arith.cmpf oge, %35, %36 : vector<64x256xf32>
    %cst_21 = arith.constant 1.000000e+00 : f32
    %cst_22 = arith.constant -1.000000e+00 : f32
    %38 = vector.broadcast %cst_21 : f32 to vector<64x256xf32>
    %39 = vector.broadcast %cst_22 : f32 to vector<64x256xf32>
    %40 = arith.select %37, %38, %39 : vector<64x256xi1>, vector<64x256xf32>
    %41 = math.absf %35 : vector<64x256xf32>
    %cst_23 = arith.constant 0.327591091 : f32
    %42 = vector.broadcast %cst_23 : f32 to vector<64x256xf32>
    %43 = arith.mulf %42, %41 : vector<64x256xf32>
    %cst_24 = arith.constant 1.000000e+00 : f32
    %44 = vector.broadcast %cst_24 : f32 to vector<64x256xf32>
    %45 = arith.addf %44, %43 : vector<64x256xf32>
    %cst_25 = arith.constant 1.000000e+00 : f32
    %46 = vector.broadcast %cst_25 : f32 to vector<64x256xf32>
    %47 = arith.divf %46, %45 : vector<64x256xf32>
    %cst_26 = arith.constant 1.06140542 : f32
    %48 = vector.broadcast %cst_26 : f32 to vector<64x256xf32>
    %49 = arith.mulf %48, %47 : vector<64x256xf32>
    %cst_27 = arith.constant -1.45315206 : f32
    %50 = vector.broadcast %cst_27 : f32 to vector<64x256xf32>
    %51 = arith.addf %49, %50 : vector<64x256xf32>
    %52 = arith.mulf %51, %47 : vector<64x256xf32>
    %cst_28 = arith.constant 1.42141378 : f32
    %53 = vector.broadcast %cst_28 : f32 to vector<64x256xf32>
    %54 = arith.addf %52, %53 : vector<64x256xf32>
    %55 = arith.mulf %54, %47 : vector<64x256xf32>
    %cst_29 = arith.constant -0.284496725 : f32
    %56 = vector.broadcast %cst_29 : f32 to vector<64x256xf32>
    %57 = arith.addf %55, %56 : vector<64x256xf32>
    %58 = arith.mulf %57, %47 : vector<64x256xf32>
    %cst_30 = arith.constant 0.254829586 : f32
    %59 = vector.broadcast %cst_30 : f32 to vector<64x256xf32>
    %60 = arith.addf %58, %59 : vector<64x256xf32>
    %61 = arith.mulf %60, %47 : vector<64x256xf32>
    %cst_31 = arith.constant 0.000000e+00 : f32
    %62 = vector.broadcast %cst_31 : f32 to vector<64x256xf32>
    %63 = arith.subf %62, %41 : vector<64x256xf32>
    %64 = arith.mulf %63, %41 : vector<64x256xf32>
    %65 = math.exp %64 : vector<64x256xf32>
    %66 = arith.mulf %61, %65 : vector<64x256xf32>
    %cst_32 = arith.constant 1.000000e+00 : f32
    %67 = vector.broadcast %cst_32 : f32 to vector<64x256xf32>
    %68 = arith.subf %67, %66 : vector<64x256xf32>
    %69 = arith.mulf %40, %68 : vector<64x256xf32>
    %cst_33 = arith.constant 1.000000e+00 : f32
    %70 = vector.broadcast %cst_33 : f32 to vector<64x256xf32>
    %71 = arith.addf %70, %69 : vector<64x256xf32>
    %72 = arith.mulf %33, %71 : vector<64x256xf32>
    %c0_34 = arith.constant 0 : index
    %c0_35 = arith.constant 0 : index
    %73 = vector.load %arg7[%c0_34, %c0_35] : memref<256x8xf32, #tpu.memory_space<vmem>>, vector<256x8xf32>
    %cst_36 = arith.constant dense<0.000000e+00> : vector<64x8xf32>
    %74 = tpu.matmul %72, %73, %cst_36 {dimension_numbers = #tpu.dot_dimension_numbers<[1], [0], [0], [1], [0, 0, 1, 1], [], []>} : vector<64x256xf32>, vector<256x8xf32>, vector<64x8xf32> -> vector<64x8xf32>
    %c0_37 = arith.constant 0 : index
    %c0_38 = arith.constant 0 : index
    %75 = vector.load %arg8[%c0_37, %c0_38] : memref<1x8xf32, #tpu.memory_space<vmem>>, vector<1x8xf32>
    %76 = vector.broadcast %75 : vector<1x8xf32> to vector<64x8xf32>
    %77 = arith.addf %74, %76 : vector<64x8xf32>
    %c0_39 = arith.constant 0 : index
    %c0_40 = arith.constant 0 : index
    %78 = vector.load %arg9[%c0_39, %c0_40] : memref<64x8xf32, #tpu.memory_space<vmem>>, vector<64x8xf32>
    tpu.vector_store %arg9[%c0_39, %c0_40], %77 {strides = array<i32>} : memref<64x8xf32, #tpu.memory_space<vmem>>, vector<64x8xf32>,
    return
  }
  func.func @transform_0(%arg0: i32) -> (i32, i32, i32) {
    %c0_i32 = arith.constant 0 : i32
    %c0_i32_0 = arith.constant 0 : i32
    %c0_i32_1 = arith.constant 0 : i32
    return %arg0, %c0_i32, %c0_i32_0 : i32, i32, i32
  }
  func.func @transform_1(%arg0: i32) -> (i32, i32) {
    %c0_i32 = arith.constant 0 : i32
    %c0_i32_0 = arith.constant 0 : i32
    return %arg0, %c0_i32 : i32, i32
  }
  func.func @transform_2(%arg0: i32) -> (i32, i32) {
    %c0_i32 = arith.constant 0 : i32
    %c0_i32_0 = arith.constant 0 : i32
    %c0_i32_1 = arith.constant 0 : i32
    return %c0_i32, %c0_i32_0 : i32, i32
  }
  func.func @transform_3(%arg0: i32) -> (i32, i32) {
    %c0_i32 = arith.constant 0 : i32
    %c0_i32_0 = arith.constant 0 : i32
    %c0_i32_1 = arith.constant 0 : i32
    return %c0_i32, %c0_i32_0 : i32, i32
  }
  func.func @transform_4(%arg0: i32) -> (i32, i32) {
    %c0_i32 = arith.constant 0 : i32
    %c0_i32_0 = arith.constant 0 : i32
    %c0_i32_1 = arith.constant 0 : i32
    return %c0_i32, %c0_i32_0 : i32, i32
  }
  func.func @transform_5(%arg0: i32) -> (i32, i32) {
    %c0_i32 = arith.constant 0 : i32
    %c0_i32_0 = arith.constant 0 : i32
    %c0_i32_1 = arith.constant 0 : i32
    return %c0_i32, %c0_i32_0 : i32, i32
  }
  func.func @transform_6(%arg0: i32) -> (i32, i32) {
    %c0_i32 = arith.constant 0 : i32
    %c0_i32_0 = arith.constant 0 : i32
    %c0_i32_1 = arith.constant 0 : i32
    return %c0_i32, %c0_i32_0 : i32, i32
  }
  func.func @transform_7(%arg0: i32) -> (i32, i32) {
    %c0_i32 = arith.constant 0 : i32
    %c0_i32_0 = arith.constant 0 : i32
    %c0_i32_1 = arith.constant 0 : i32
    return %c0_i32, %c0_i32_0 : i32, i32
  }
  func.func @transform_8(%arg0: i32) -> (i32, i32) {
    %c0_i32 = arith.constant 0 : i32
    %c0_i32_0 = arith.constant 0 : i32
    return %arg0, %c0_i32 : i32, i32
  }
}

</mosaic_0001>

<llo_original>
// kernel: tpu_custom_call.1
$region0: #{tpu_custom_call.1}
  #allocation0 [shape = 'u32[]', space=smem, size = 0x4, offset = 0x4, fixed_abs, tag = 'smem constant byte address 0x4 - core index']
  #allocation1 [shape = 'u32[144,128]{1,0:T(1,128)}', space=vmem, size = 0x12000, scoped, tag = 'internal scratch']
  #allocation2 [shape = 'f32[1,1]{1,0:T(1,128)S(6)}', space=smem, size = 0x200, scoped, tag = 'scoped memory for tpu_custom_call.1']
  %s0 = inlined_call_operand.hbm [shape: f32[64,16,128], index: 0, kind: input, shape index: {}]
  %s1 = inlined_call_operand.vmem [shape: f32[64,16], index: 1, kind: input, shape index: {}]
  %s2 = inlined_call_operand.vmem [shape: f32[1,128], index: 2, kind: input, shape index: {}]
  %s3 = inlined_call_operand.<no memory space> [shape: f32[1,1], index: 3, kind: input, shape index: {}]
  %s4 = inlined_call_operand.vmem [shape: f32[128,256], index: 4, kind: input, shape index: {}]
  %s5 = inlined_call_operand.vmem [shape: f32[1,256], index: 5, kind: input, shape index: {}]
  %s6 = inlined_call_operand.vmem [shape: f32[256,8], index: 6, kind: input, shape index: {}]
  %s7 = inlined_call_operand.vmem [shape: f32[1,8], index: 7, kind: input, shape index: {}]
  %s8 = inlined_call_operand.vmem [shape: f32[64,8], index: 8, kind: output, shape index: {}]
  %s9 = sld [smem:[#allocation0]]
  $region46: #{tpu_custom_call.1} parent=0
    _
  %s11 = ssub.s32 1, %s9
  %s12 = scalar_select 0, %s11, %s9
  %13 = sst [smem:[#allocation2]] %s3
  $region1: #{tpu_custom_call.1} parent=0
    #allocation3 [shape = 'u8[524288]{0}', space=vmem, size = 0x80000, scoped, tag = 'input window, operand 0, single buffered']
    #allocation4 [shape = 's32[1]{0}', space=sflag, size = 0x4, scoped, tag = 'scoped memory for tpu_custom_call.1']
    %14 = vsyncpa [#allocation4], 0
    // Predicated region
    $region2: #{tpu_custom_call.1} parent=1 // pred_check
      _
    $region3: #{tpu_custom_call.1} parent=1 // pred_check_branch
      %16 = sbr.rel (0) target = $region5
    $region4: #{tpu_custom_call.1} parent=1 // pred_region
      %s18 = ssub.s32 16384, 16384
      %19 = vsyncadd [#allocation4], %s18
      %s20 = sshll.u32 [#allocation3], 4
      %s21 = int_to_ptr.vmem [resolvable:$true] %s20
      %26 = dma.hbm_to_vmem [thread:$0]  %s0, 16384, %s21, [#allocation4], 128, 128, 8
    $region5: #{tpu_custom_call.1} parent=1 // pred_fallthru
      _
    // Predicated region
    $region6: #{tpu_custom_call.1} parent=1 // pred_check
      _
    $region7: #{tpu_custom_call.1} parent=1 // pred_check_branch
      %28 = sbr.rel (0) target = $region9
    $region8: #{tpu_custom_call.1} parent=1 // pred_region
      _
    $region9: #{tpu_custom_call.1} parent=1 // pred_fallthru
      _
    // Predicated region
    $region10: #{tpu_custom_call.1} parent=1 // pred_check
      _
    $region11: #{tpu_custom_call.1} parent=1 // pred_check_branch
      %30 = sbr.rel (0) target = $region13
    $region12: #{tpu_custom_call.1} parent=1 // pred_region
      _
    $region13: #{tpu_custom_call.1} parent=1 // pred_fallthru
      _
    // Predicated region
    $region14: #{tpu_custom_call.1} parent=1 // pred_check
      _
    $region15: #{tpu_custom_call.1} parent=1 // pred_check_branch
      %32 = sbr.rel (0) target = $region17
    $region16: #{tpu_custom_call.1} parent=1 // pred_region
      _
    $region17: #{tpu_custom_call.1} parent=1 // pred_fallthru
      _
    // Predicated region
    $region18: #{tpu_custom_call.1} parent=1 // pred_check
      _
    $region19: #{tpu_custom_call.1} parent=1 // pred_check_branch
      %34 = sbr.rel (0) target = $region21
    $region20: #{tpu_custom_call.1} parent=1 // pred_region
      _
    $region21: #{tpu_custom_call.1} parent=1 // pred_fallthru
      _
    // Predicated region
    $region22: #{tpu_custom_call.1} parent=1 // pred_check
      _
    $region23: #{tpu_custom_call.1} parent=1 // pred_check_branch
      %36 = sbr.rel (0) target = $region25
    $region24: #{tpu_custom_call.1} parent=1 // pred_region
      _
    $region25: #{tpu_custom_call.1} parent=1 // pred_fallthru
      _
    // Predicated region
    $region26: #{tpu_custom_call.1} parent=1 // pred_check
      _
    $region27: #{tpu_custom_call.1} parent=1 // pred_check_branch
      %38 = sbr.rel (0) target = $region29
    $region28: #{tpu_custom_call.1} parent=1 // pred_region
      _
    $region29: #{tpu_custom_call.1} parent=1 // pred_fallthru
      _
    // Predicated region
    $region30: #{tpu_custom_call.1} parent=1 // pred_check
      _
    $region31: #{tpu_custom_call.1} parent=1 // pred_check_branch
      %40 = sbr.rel (0) target = $region33
    $region32: #{tpu_custom_call.1} parent=1 // pred_region
      _
    $region33: #{tpu_custom_call.1} parent=1 // pred_fallthru
      _
    // Predicated region
    $region34: #{tpu_custom_call.1} parent=1 // pred_check
      _
    $region35: #{tpu_custom_call.1} parent=1 // pred_check_branch
      %42 = sbr.rel (0) target = $region37
    $region36: #{tpu_custom_call.1} parent=1 // pred_region
      %43 = dma.done [#allocation4], 16384
    $region37: #{tpu_custom_call.1} parent=1 // pred_fallthru
      _
    %v44 = vld [vmem:[#allocation3] sm:$0xff]
    %v45 = vld [vmem:[#allocation3 + $0x8] sm:$0xff]
    %v46 = vld [vmem:[#allocation3 + $0x10] sm:$0xff]
    %v47 = vld [vmem:[#allocation3 + $0x18] sm:$0xff]
    %v48 = vld [vmem:[#allocation3 + $0x20] sm:$0xff]
    %v49 = vld [vmem:[#allocation3 + $0x28] sm:$0xff]
    %v50 = vld [vmem:[#allocation3 + $0x30] sm:$0xff]
    %v51 = vld [vmem:[#allocation3 + $0x38] sm:$0xff]
    %v52 = vld [vmem:[#allocation3 + $0x40] sm:$0xff]
    %v53 = vld [vmem:[#allocation3 + $0x48] sm:$0xff]
    %v54 = vld [vmem:[#allocation3 + $0x50] sm:$0xff]
    %v55 = vld [vmem:[#allocation3 + $0x58] sm:$0xff]
    %v56 = vld [vmem:[#allocation3 + $0x60] sm:$0xff]
    %v57 = vld [vmem:[#allocation3 + $0x68] sm:$0xff]
    %v58 = vld [vmem:[#allocation3 + $0x70] sm:$0xff]
    %v59 = vld [vmem:[#allocation3 + $0x78] sm:$0xff]
    %v60 = vld [vmem:[#allocation3 + $0x80] sm:$0xff]
    %v61 = vld [vmem:[#allocation3 + $0x88] sm:$0xff]
    %v62 = vld [vmem:[#allocation3 + $0x90] sm:$0xff]
    %v63 = vld [vmem:[#allocation3 + $0x98] sm:$0xff]
    %v64 = vld [vmem:[#allocation3 + $0xa0] sm:$0xff]
    %v65 = vld [vmem:[#allocation3 + $0xa8] sm:$0xff]
    %v66 = vld [vmem:[#allocation3 + $0xb0] sm:$0xff]
    %v67 = vld [vmem:[#allocation3 + $0xb8] sm:$0xff]
    %v68 = vld [vmem:[#allocation3 + $0xc0] sm:$0xff]
    %v69 = vld [vmem:[#allocation3 + $0xc8] sm:$0xff]
    %v70 = vld [vmem:[#allocation3 + $0xd0] sm:$0xff]
    %v71 = vld [vmem:[#allocation3 + $0xd8] sm:$0xff]
    %v72 = vld [vmem:[#allocation3 + $0xe0] sm:$0xff]
    %v73 = vld [vmem:[#allocation3 + $0xe8] sm:$0xff]
    %v74 = vld [vmem:[#allocation3 + $0xf0] sm:$0xff]
    %v75 = vld [vmem:[#allocation3 + $0xf8] sm:$0xff]
    %v76 = vld [vmem:[#allocation3 + $0x100] sm:$0xff]
    %v77 = vld [vmem:[#allocation3 + $0x108] sm:$0xff]
    %v78 = vld [vmem:[#allocation3 + $0x110] sm:$0xff]
    %v79 = vld [vmem:[#allocation3 + $0x118] sm:$0xff]
    %v80 = vld [vmem:[#allocation3 + $0x120] sm:$0xff]
    %v81 = vld [vmem:[#allocation3 + $0x128] sm:$0xff]
    %v82 = vld [vmem:[#allocation3 + $0x130] sm:$0xff]
    %v83 = vld [vmem:[#allocation3 + $0x138] sm:$0xff]
    %v84 = vld [vmem:[#allocation3 + $0x140] sm:$0xff]
    %v85 = vld [vmem:[#allocation3 + $0x148] sm:$0xff]
    %v86 = vld [vmem:[#allocation3 + $0x150] sm:$0xff]
    %v87 = vld [vmem:[#allocation3 + $0x158] sm:$0xff]
    %v88 = vld [vmem:[#allocation3 + $0x160] sm:$0xff]
    %v89 = vld [vmem:[#allocation3 + $0x168] sm:$0xff]
    %v90 = vld [vmem:[#allocation3 + $0x170] sm:$0xff]
    %v91 = vld [vmem:[#allocation3 + $0x178] sm:$0xff]
    %v92 = vld [vmem:[#allocation3 + $0x180] sm:$0xff]
    %v93 = vld [vmem:[#allocation3 + $0x188] sm:$0xff]
    %v94 = vld [vmem:[#allocation3 + $0x190] sm:$0xff]
    %v95 = vld [vmem:[#allocation3 + $0x198] sm:$0xff]
    %v96 = vld [vmem:[#allocation3 + $0x1a0] sm:$0xff]
    %v97 = vld [vmem:[#allocation3 + $0x1a8] sm:$0xff]
    %v98 = vld [vmem:[#allocation3 + $0x1b0] sm:$0xff]
    %v99 = vld [vmem:[#allocation3 + $0x1b8] sm:$0xff]
    %v100 = vld [vmem:[#allocation3 + $0x1c0] sm:$0xff]
    %v101 = vld [vmem:[#allocation3 + $0x1c8] sm:$0xff]
    %v102 = vld [vmem:[#allocation3 + $0x1d0] sm:$0xff]
    %v103 = vld [vmem:[#allocation3 + $0x1d8] sm:$0xff]
    %v104 = vld [vmem:[#allocation3 + $0x1e0] sm:$0xff]
    %v105 = vld [vmem:[#allocation3 + $0x1e8] sm:$0xff]
    %v106 = vld [vmem:[#allocation3 + $0x1f0] sm:$0xff]
    %v107 = vld [vmem:[#allocation3 + $0x1f8] sm:$0xff]
    %v108 = vld [vmem:[#allocation3 + $0x200] sm:$0xff]
    %v109 = vld [vmem:[#allocation3 + $0x208] sm:$0xff]
    %v110 = vld [vmem:[#allocation3 + $0x210] sm:$0xff]
    %v111 = vld [vmem:[#allocation3 + $0x218] sm:$0xff]
    %v112 = vld [vmem:[#allocation3 + $0x220] sm:$0xff]
    %v113 = vld [vmem:[#allocation3 + $0x228] sm:$0xff]
    %v114 = vld [vmem:[#allocation3 + $0x230] sm:$0xff]
    %v115 = vld [vmem:[#allocation3 + $0x238] sm:$0xff]
    %v116 = vld [vmem:[#allocation3 + $0x240] sm:$0xff]
    %v117 = vld [vmem:[#allocation3 + $0x248] sm:$0xff]
    %v118 = vld [vmem:[#allocation3 + $0x250] sm:$0xff]
    %v119 = vld [vmem:[#allocation3 + $0x258] sm:$0xff]
    %v120 = vld [vmem:[#allocation3 + $0x260] sm:$0xff]
    %v121 = vld [vmem:[#allocation3 + $0x268] sm:$0xff]
    %v122 = vld [vmem:[#allocation3 + $0x270] sm:$0xff]
    %v123 = vld [vmem:[#allocation3 + $0x278] sm:$0xff]
    %v124 = vld [vmem:[#allocation3 + $0x280] sm:$0xff]
    %v125 = vld [vmem:[#allocation3 + $0x288] sm:$0xff]
    %v126 = vld [vmem:[#allocation3 + $0x290] sm:$0xff]
    %v127 = vld [vmem:[#allocation3 + $0x298] sm:$0xff]
    %v128 = vld [vmem:[#allocation3 + $0x2a0] sm:$0xff]
    %v129 = vld [vmem:[#allocation3 + $0x2a8] sm:$0xff]
    %v130 = vld [vmem:[#allocation3 + $0x2b0] sm:$0xff]
    %v131 = vld [vmem:[#allocation3 + $0x2b8] sm:$0xff]
    %v132 = vld [vmem:[#allocation3 + $0x2c0] sm:$0xff]
    %v133 = vld [vmem:[#allocation3 + $0x2c8] sm:$0xff]
    %v134 = vld [vmem:[#allocation3 + $0x2d0] sm:$0xff]
    %v135 = vld [vmem:[#allocation3 + $0x2d8] sm:$0xff]
    %v136 = vld [vmem:[#allocation3 + $0x2e0] sm:$0xff]
    %v137 = vld [vmem:[#allocation3 + $0x2e8] sm:$0xff]
    %v138 = vld [vmem:[#allocation3 + $0x2f0] sm:$0xff]
    %v139 = vld [vmem:[#allocation3 + $0x2f8] sm:$0xff]
    %v140 = vld [vmem:[#allocation3 + $0x300] sm:$0xff]
    %v141 = vld [vmem:[#allocation3 + $0x308] sm:$0xff]
    %v142 = vld [vmem:[#allocation3 + $0x310] sm:$0xff]
    %v143 = vld [vmem:[#allocation3 + $0x318] sm:$0xff]
    %v144 = vld [vmem:[#allocation3 + $0x320] sm:$0xff]
    %v145 = vld [vmem:[#allocation3 + $0x328] sm:$0xff]
    %v146 = vld [vmem:[#allocation3 + $0x330] sm:$0xff]
    %v147 = vld [vmem:[#allocation3 + $0x338] sm:$0xff]
    %v148 = vld [vmem:[#allocation3 + $0x340] sm:$0xff]
    %v149 = vld [vmem:[#allocation3 + $0x348] sm:$0xff]
    %v150 = vld [vmem:[#allocation3 + $0x350] sm:$0xff]
    %v151 = vld [vmem:[#allocation3 + $0x358] sm:$0xff]
    %v152 = vld [vmem:[#allocation3 + $0x360] sm:$0xff]
    %v153 = vld [vmem:[#allocation3 + $0x368] sm:$0xff]
    %v154 = vld [vmem:[#allocation3 + $0x370] sm:$0xff]
    %v155 = vld [vmem:[#allocation3 + $0x378] sm:$0xff]
    %v156 = vld [vmem:[#allocation3 + $0x380] sm:$0xff]
    %v157 = vld [vmem:[#allocation3 + $0x388] sm:$0xff]
    %v158 = vld [vmem:[#allocation3 + $0x390] sm:$0xff]
    %v159 = vld [vmem:[#allocation3 + $0x398] sm:$0xff]
    %v160 = vld [vmem:[#allocation3 + $0x3a0] sm:$0xff]
    %v161 = vld [vmem:[#allocation3 + $0x3a8] sm:$0xff]
    %v162 = vld [vmem:[#allocation3 + $0x3b0] sm:$0xff]
    %v163 = vld [vmem:[#allocation3 + $0x3b8] sm:$0xff]
    %v164 = vld [vmem:[#allocation3 + $0x3c0] sm:$0xff]
    %v165 = vld [vmem:[#allocation3 + $0x3c8] sm:$0xff]
    %v166 = vld [vmem:[#allocation3 + $0x3d0] sm:$0xff]
    %v167 = vld [vmem:[#allocation3 + $0x3d8] sm:$0xff]
    %v168 = vld [vmem:[#allocation3 + $0x3e0] sm:$0xff]
    %v169 = vld [vmem:[#allocation3 + $0x3e8] sm:$0xff]
    %v170 = vld [vmem:[#allocation3 + $0x3f0] sm:$0xff]
    %v171 = vld [vmem:[#allocation3 + $0x3f8] sm:$0xff]
    %v172 = vld [vmem:[%s2] sm:$0x1]
    %v174 = vlaneseq
    %v175 = vshrl.u32 %v174, 7
    %v176 = vsub.s32 0, %v175
    %v177 = vrot.slane %v172, %v176
    %v179 = vmul.f32 %v44, %v177
    %v180 = vmul.f32 %v45, %v177
    %v181 = vmul.f32 %v46, %v177
    %v182 = vmul.f32 %v47, %v177
    %v183 = vmul.f32 %v48, %v177
    %v184 = vmul.f32 %v49, %v177
    %v185 = vmul.f32 %v50, %v177
    %v186 = vmul.f32 %v51, %v177
    %v187 = vmul.f32 %v52, %v177
    %v188 = vmul.f32 %v53, %v177
    %v189 = vmul.f32 %v54, %v177
    %v190 = vmul.f32 %v55, %v177
    %v191 = vmul.f32 %v56, %v177
    %v192 = vmul.f32 %v57, %v177
    %v193 = vmul.f32 %v58, %v177
    %v194 = vmul.f32 %v59, %v177
    %v195 = vmul.f32 %v60, %v177
    %v196 = vmul.f32 %v61, %v177
    %v197 = vmul.f32 %v62, %v177
    %v198 = vmul.f32 %v63, %v177
    %v199 = vmul.f32 %v64, %v177
    %v200 = vmul.f32 %v65, %v177
    %v201 = vmul.f32 %v66, %v177
    %v202 = vmul.f32 %v67, %v177
    %v203 = vmul.f32 %v68, %v177
    %v204 = vmul.f32 %v69, %v177
    %v205 = vmul.f32 %v70, %v177
    %v206 = vmul.f32 %v71, %v177
    %v207 = vmul.f32 %v72, %v177
    %v208 = vmul.f32 %v73, %v177
    %v209 = vmul.f32 %v74, %v177
    %v210 = vmul.f32 %v75, %v177
    %v211 = vmul.f32 %v76, %v177
    %v212 = vmul.f32 %v77, %v177
    %v213 = vmul.f32 %v78, %v177
    %v214 = vmul.f32 %v79, %v177
    %v215 = vmul.f32 %v80, %v177
    %v216 = vmul.f32 %v81, %v177
    %v217 = vmul.f32 %v82, %v177
    %v218 = vmul.f32 %v83, %v177
    %v219 = vmul.f32 %v84, %v177
    %v220 = vmul.f32 %v85, %v177
    %v221 = vmul.f32 %v86, %v177
    %v222 = vmul.f32 %v87, %v177
    %v223 = vmul.f32 %v88, %v177
    %v224 = vmul.f32 %v89, %v177
    %v225 = vmul.f32 %v90, %v177
    %v226 = vmul.f32 %v91, %v177
    %v227 = vmul.f32 %v92, %v177
    %v228 = vmul.f32 %v93, %v177
    %v229 = vmul.f32 %v94, %v177
    %v230 = vmul.f32 %v95, %v177
    %v231 = vmul.f32 %v96, %v177
    %v232 = vmul.f32 %v97, %v177
    %v233 = vmul.f32 %v98, %v177
    %v234 = vmul.f32 %v99, %v177
    %v235 = vmul.f32 %v100, %v177
    %v236 = vmul.f32 %v101, %v177
    %v237 = vmul.f32 %v102, %v177
    %v238 = vmul.f32 %v103, %v177
    %v239 = vmul.f32 %v104, %v177
    %v240 = vmul.f32 %v105, %v177
    %v241 = vmul.f32 %v106, %v177
    %v242 = vmul.f32 %v107, %v177
    %v243 = vmul.f32 %v108, %v177
    %v244 = vmul.f32 %v109, %v177
    %v245 = vmul.f32 %v110, %v177
    %v246 = vmul.f32 %v111, %v177
    %v247 = vmul.f32 %v112, %v177
    %v248 = vmul.f32 %v113, %v177
    %v249 = vmul.f32 %v114, %v177
    %v250 = vmul.f32 %v115, %v177
    %v251 = vmul.f32 %v116, %v177
    %v252 = vmul.f32 %v117, %v177
    %v253 = vmul.f32 %v118, %v177
    %v254 = vmul.f32 %v119, %v177
    %v255 = vmul.f32 %v120, %v177
    %v256 = vmul.f32 %v121, %v177
    %v257 = vmul.f32 %v122, %v177
    %v258 = vmul.f32 %v123, %v177
    %v259 = vmul.f32 %v124, %v177
    %v260 = vmul.f32 %v125, %v177
    %v261 = vmul.f32 %v126, %v177
    %v262 = vmul.f32 %v127, %v177
    %v263 = vmul.f32 %v128, %v177
    %v264 = vmul.f32 %v129, %v177
    %v265 = vmul.f32 %v130, %v177
    %v266 = vmul.f32 %v131, %v177
    %v267 = vmul.f32 %v132, %v177
    %v268 = vmul.f32 %v133, %v177
    %v269 = vmul.f32 %v134, %v177
    %v270 = vmul.f32 %v135, %v177
    %v271 = vmul.f32 %v136, %v177
    %v272 = vmul.f32 %v137, %v177
    %v273 = vmul.f32 %v138, %v177
    %v274 = vmul.f32 %v139, %v177
    %v275 = vmul.f32 %v140, %v177
    %v276 = vmul.f32 %v141, %v177
    %v277 = vmul.f32 %v142, %v177
    %v278 = vmul.f32 %v143, %v177
    %v279 = vmul.f32 %v144, %v177
    %v280 = vmul.f32 %v145, %v177
    %v281 = vmul.f32 %v146, %v177
    %v282 = vmul.f32 %v147, %v177
    %v283 = vmul.f32 %v148, %v177
    %v284 = vmul.f32 %v149, %v177
    %v285 = vmul.f32 %v150, %v177
    %v286 = vmul.f32 %v151, %v177
    %v287 = vmul.f32 %v152, %v177
    %v288 = vmul.f32 %v153, %v177
    %v289 = vmul.f32 %v154, %v177
    %v290 = vmul.f32 %v155, %v177
    %v291 = vmul.f32 %v156, %v177
    %v292 = vmul.f32 %v157, %v177
    %v293 = vmul.f32 %v158, %v177
    %v294 = vmul.f32 %v159, %v177
    %v295 = vmul.f32 %v160, %v177
    %v296 = vmul.f32 %v161, %v177
    %v297 = vmul.f32 %v162, %v177
    %v298 = vmul.f32 %v163, %v177
    %v299 = vmul.f32 %v164, %v177
    %v300 = vmul.f32 %v165, %v177
    %v301 = vmul.f32 %v166, %v177
    %v302 = vmul.f32 %v167, %v177
    %v303 = vmul.f32 %v168, %v177
    %v304 = vmul.f32 %v169, %v177
    %v305 = vmul.f32 %v170, %v177
    %v306 = vmul.f32 %v171, %v177
    %307 = vadd.xlane.f32.xlu0 %v179
    %v308 = vpop.xlane.xlu0 %307
    %309 = vadd.xlane.f32.xlu0 %v180
    %v310 = vpop.xlane.xlu0 %309
    %311 = vadd.xlane.f32.xlu0 %v181
    %v312 = vpop.xlane.xlu0 %311
    %313 = vadd.xlane.f32.xlu0 %v182
    %v314 = vpop.xlane.xlu0 %313
    %315 = vadd.xlane.f32.xlu0 %v183
    %v316 = vpop.xlane.xlu0 %315
    %317 = vadd.xlane.f32.xlu0 %v184
    %v318 = vpop.xlane.xlu0 %317
    %319 = vadd.xlane.f32.xlu0 %v185
    %v320 = vpop.xlane.xlu0 %319
    %321 = vadd.xlane.f32.xlu0 %v186
    %v322 = vpop.xlane.xlu0 %321
    %323 = vadd.xlane.f32.xlu0 %v187
    %v324 = vpop.xlane.xlu0 %323
    %325 = vadd.xlane.f32.xlu0 %v188
    %v326 = vpop.xlane.xlu0 %325
    %327 = vadd.xlane.f32.xlu0 %v189
    %v328 = vpop.xlane.xlu0 %327
    %329 = vadd.xlane.f32.xlu0 %v190
    %v330 = vpop.xlane.xlu0 %329
    %331 = vadd.xlane.f32.xlu0 %v191
    %v332 = vpop.xlane.xlu0 %331
    %333 = vadd.xlane.f32.xlu0 %v192
    %v334 = vpop.xlane.xlu0 %333
    %335 = vadd.xlane.f32.xlu0 %v193
    %v336 = vpop.xlane.xlu0 %335
    %337 = vadd.xlane.f32.xlu0 %v194
    %v338 = vpop.xlane.xlu0 %337
    %339 = vadd.xlane.f32.xlu0 %v195
    %v340 = vpop.xlane.xlu0 %339
    %341 = vadd.xlane.f32.xlu0 %v196
    %v342 = vpop.xlane.xlu0 %341
    %343 = vadd.xlane.f32.xlu0 %v197
    %v344 = vpop.xlane.xlu0 %343
    %345 = vadd.xlane.f32.xlu0 %v198
    %v346 = vpop.xlane.xlu0 %345
    %347 = vadd.xlane.f32.xlu0 %v199
    %v348 = vpop.xlane.xlu0 %347
    %349 = vadd.xlane.f32.xlu0 %v200
    %v350 = vpop.xlane.xlu0 %349
    %351 = vadd.xlane.f32.xlu0 %v201
    %v352 = vpop.xlane.xlu0 %351
    %353 = vadd.xlane.f32.xlu0 %v202
    %v354 = vpop.xlane.xlu0 %353
    %355 = vadd.xlane.f32.xlu0 %v203
    %v356 = vpop.xlane.xlu0 %355
    %357 = vadd.xlane.f32.xlu0 %v204
    %v358 = vpop.xlane.xlu0 %357
    %359 = vadd.xlane.f32.xlu0 %v205
    %v360 = vpop.xlane.xlu0 %359
    %361 = vadd.xlane.f32.xlu0 %v206
    %v362 = vpop.xlane.xlu0 %361
    %363 = vadd.xlane.f32.xlu0 %v207
    %v364 = vpop.xlane.xlu0 %363
    %365 = vadd.xlane.f32.xlu0 %v208
    %v366 = vpop.xlane.xlu0 %365
    %367 = vadd.xlane.f32.xlu0 %v209
    %v368 = vpop.xlane.xlu0 %367
    %369 = vadd.xlane.f32.xlu0 %v210
    %v370 = vpop.xlane.xlu0 %369
    %371 = vadd.xlane.f32.xlu0 %v211
    %v372 = vpop.xlane.xlu0 %371
    %373 = vadd.xlane.f32.xlu0 %v212
    %v374 = vpop.xlane.xlu0 %373
    %375 = vadd.xlane.f32.xlu0 %v213
    %v376 = vpop.xlane.xlu0 %375
    %377 = vadd.xlane.f32.xlu0 %v214
    %v378 = vpop.xlane.xlu0 %377
    %379 = vadd.xlane.f32.xlu0 %v215
    %v380 = vpop.xlane.xlu0 %379
    %381 = vadd.xlane.f32.xlu0 %v216
    %v382 = vpop.xlane.xlu0 %381
    %383 = vadd.xlane.f32.xlu0 %v217
    %v384 = vpop.xlane.xlu0 %383
    %385 = vadd.xlane.f32.xlu0 %v218
    %v386 = vpop.xlane.xlu0 %385
    %387 = vadd.xlane.f32.xlu0 %v219
    %v388 = vpop.xlane.xlu0 %387
    %389 = vadd.xlane.f32.xlu0 %v220
    %v390 = vpop.xlane.xlu0 %389
    %391 = vadd.xlane.f32.xlu0 %v221
    %v392 = vpop.xlane.xlu0 %391
    %393 = vadd.xlane.f32.xlu0 %v222
    %v394 = vpop.xlane.xlu0 %393
    %395 = vadd.xlane.f32.xlu0 %v223
    %v396 = vpop.xlane.xlu0 %395
    %397 = vadd.xlane.f32.xlu0 %v224
    %v398 = vpop.xlane.xlu0 %397
    %399 = vadd.xlane.f32.xlu0 %v225
    %v400 = vpop.xlane.xlu0 %399
    %401 = vadd.xlane.f32.xlu0 %v226
    %v402 = vpop.xlane.xlu0 %401
    %403 = vadd.xlane.f32.xlu0 %v227
    %v404 = vpop.xlane.xlu0 %403
    %405 = vadd.xlane.f32.xlu0 %v228
    %v406 = vpop.xlane.xlu0 %405
    %407 = vadd.xlane.f32.xlu0 %v229
    %v408 = vpop.xlane.xlu0 %407
    %409 = vadd.xlane.f32.xlu0 %v230
    %v410 = vpop.xlane.xlu0 %409
    %411 = vadd.xlane.f32.xlu0 %v231
    %v412 = vpop.xlane.xlu0 %411
    %413 = vadd.xlane.f32.xlu0 %v232
    %v414 = vpop.xlane.xlu0 %413
    %415 = vadd.xlane.f32.xlu0 %v233
    %v416 = vpop.xlane.xlu0 %415
    %417 = vadd.xlane.f32.xlu0 %v234
    %v418 = vpop.xlane.xlu0 %417
    %419 = vadd.xlane.f32.xlu0 %v235
    %v420 = vpop.xlane.xlu0 %419
    %421 = vadd.xlane.f32.xlu0 %v236
    %v422 = vpop.xlane.xlu0 %421
    %423 = vadd.xlane.f32.xlu0 %v237
    %v424 = vpop.xlane.xlu0 %423
    %425 = vadd.xlane.f32.xlu0 %v238
    %v426 = vpop.xlane.xlu0 %425
    %427 = vadd.xlane.f32.xlu0 %v239
    %v428 = vpop.xlane.xlu0 %427
    %429 = vadd.xlane.f32.xlu0 %v240
    %v430 = vpop.xlane.xlu0 %429
    %431 = vadd.xlane.f32.xlu0 %v241
    %v432 = vpop.xlane.xlu0 %431
    %433 = vadd.xlane.f32.xlu0 %v242
    %v434 = vpop.xlane.xlu0 %433
    %435 = vadd.xlane.f32.xlu0 %v243
    %v436 = vpop.xlane.xlu0 %435
    %437 = vadd.xlane.f32.xlu0 %v244
    %v438 = vpop.xlane.xlu0 %437
    %439 = vadd.xlane.f32.xlu0 %v245
    %v440 = vpop.xlane.xlu0 %439
    %441 = vadd.xlane.f32.xlu0 %v246
    %v442 = vpop.xlane.xlu0 %441
    %443 = vadd.xlane.f32.xlu0 %v247
    %v444 = vpop.xlane.xlu0 %443
    %445 = vadd.xlane.f32.xlu0 %v248
    %v446 = vpop.xlane.xlu0 %445
    %447 = vadd.xlane.f32.xlu0 %v249
    %v448 = vpop.xlane.xlu0 %447
    %449 = vadd.xlane.f32.xlu0 %v250
    %v450 = vpop.xlane.xlu0 %449
    %451 = vadd.xlane.f32.xlu0 %v251
    %v452 = vpop.xlane.xlu0 %451
    %453 = vadd.xlane.f32.xlu0 %v252
    %v454 = vpop.xlane.xlu0 %453
    %455 = vadd.xlane.f32.xlu0 %v253
    %v456 = vpop.xlane.xlu0 %455
    %457 = vadd.xlane.f32.xlu0 %v254
    %v458 = vpop.xlane.xlu0 %457
    %459 = vadd.xlane.f32.xlu0 %v255
    %v460 = vpop.xlane.xlu0 %459
    %461 = vadd.xlane.f32.xlu0 %v256
    %v462 = vpop.xlane.xlu0 %461
    %463 = vadd.xlane.f32.xlu0 %v257
    %v464 = vpop.xlane.xlu0 %463
    %465 = vadd.xlane.f32.xlu0 %v258
    %v466 = vpop.xlane.xlu0 %465
    %467 = vadd.xlane.f32.xlu0 %v259
    %v468 = vpop.xlane.xlu0 %467
    %469 = vadd.xlane.f32.xlu0 %v260
    %v470 = vpop.xlane.xlu0 %469
    %471 = vadd.xlane.f32.xlu0 %v261
    %v472 = vpop.xlane.xlu0 %471
    %473 = vadd.xlane.f32.xlu0 %v262
    %v474 = vpop.xlane.xlu0 %473
    %475 = vadd.xlane.f32.xlu0 %v263
    %v476 = vpop.xlane.xlu0 %475
    %477 = vadd.xlane.f32.xlu0 %v264
    %v478 = vpop.xlane.xlu0 %477
    %479 = vadd.xlane.f32.xlu0 %v265
    %v480 = vpop.xlane.xlu0 %479
    %481 = vadd.xlane.f32.xlu0 %v266
    %v482 = vpop.xlane.xlu0 %481
    %483 = vadd.xlane.f32.xlu0 %v267
    %v484 = vpop.xlane.xlu0 %483
    %485 = vadd.xlane.f32.xlu0 %v268
    %v486 = vpop.xlane.xlu0 %485
    %487 = vadd.xlane.f32.xlu0 %v269
    %v488 = vpop.xlane.xlu0 %487
    %489 = vadd.xlane.f32.xlu0 %v270
    %v490 = vpop.xlane.xlu0 %489
    %491 = vadd.xlane.f32.xlu0 %v271
    %v492 = vpop.xlane.xlu0 %491
    %493 = vadd.xlane.f32.xlu0 %v272
    %v494 = vpop.xlane.xlu0 %493
    %495 = vadd.xlane.f32.xlu0 %v273
    %v496 = vpop.xlane.xlu0 %495
    %497 = vadd.xlane.f32.xlu0 %v274
    %v498 = vpop.xlane.xlu0 %497
    %499 = vadd.xlane.f32.xlu0 %v275
    %v500 = vpop.xlane.xlu0 %499
    %501 = vadd.xlane.f32.xlu0 %v276
    %v502 = vpop.xlane.xlu0 %501
    %503 = vadd.xlane.f32.xlu0 %v277
    %v504 = vpop.xlane.xlu0 %503
    %505 = vadd.xlane.f32.xlu0 %v278
    %v506 = vpop.xlane.xlu0 %505
    %507 = vadd.xlane.f32.xlu0 %v279
    %v508 = vpop.xlane.xlu0 %507
    %509 = vadd.xlane.f32.xlu0 %v280
    %v510 = vpop.xlane.xlu0 %509
    %511 = vadd.xlane.f32.xlu0 %v281
    %v512 = vpop.xlane.xlu0 %511
    %513 = vadd.xlane.f32.xlu0 %v282
    %v514 = vpop.xlane.xlu0 %513
    %515 = vadd.xlane.f32.xlu0 %v283
    %v516 = vpop.xlane.xlu0 %515
    %517 = vadd.xlane.f32.xlu0 %v284
    %v518 = vpop.xlane.xlu0 %517
    %519 = vadd.xlane.f32.xlu0 %v285
    %v520 = vpop.xlane.xlu0 %519
    %521 = vadd.xlane.f32.xlu0 %v286
    %v522 = vpop.xlane.xlu0 %521
    %523 = vadd.xlane.f32.xlu0 %v287
    %v524 = vpop.xlane.xlu0 %523
    %525 = vadd.xlane.f32.xlu0 %v288
    %v526 = vpop.xlane.xlu0 %525
    %527 = vadd.xlane.f32.xlu0 %v289
    %v528 = vpop.xlane.xlu0 %527
    %529 = vadd.xlane.f32.xlu0 %v290
    %v530 = vpop.xlane.xlu0 %529
    %531 = vadd.xlane.f32.xlu0 %v291
    %v532 = vpop.xlane.xlu0 %531
    %533 = vadd.xlane.f32.xlu0 %v292
    %v534 = vpop.xlane.xlu0 %533
    %535 = vadd.xlane.f32.xlu0 %v293
    %v536 = vpop.xlane.xlu0 %535
    %537 = vadd.xlane.f32.xlu0 %v294
    %v538 = vpop.xlane.xlu0 %537
    %539 = vadd.xlane.f32.xlu0 %v295
    %v540 = vpop.xlane.xlu0 %539
    %541 = vadd.xlane.f32.xlu0 %v296
    %v542 = vpop.xlane.xlu0 %541
    %543 = vadd.xlane.f32.xlu0 %v297
    %v544 = vpop.xlane.xlu0 %543
    %545 = vadd.xlane.f32.xlu0 %v298
    %v546 = vpop.xlane.xlu0 %545
    %547 = vadd.xlane.f32.xlu0 %v299
    %v548 = vpop.xlane.xlu0 %547
    %549 = vadd.xlane.f32.xlu0 %v300
    %v550 = vpop.xlane.xlu0 %549
    %551 = vadd.xlane.f32.xlu0 %v301
    %v552 = vpop.xlane.xlu0 %551
    %553 = vadd.xlane.f32.xlu0 %v302
    %v554 = vpop.xlane.xlu0 %553
    %555 = vadd.xlane.f32.xlu0 %v303
    %v556 = vpop.xlane.xlu0 %555
    %557 = vadd.xlane.f32.xlu0 %v304
    %v558 = vpop.xlane.xlu0 %557
    %559 = vadd.xlane.f32.xlu0 %v305
    %v560 = vpop.xlane.xlu0 %559
    %561 = vadd.xlane.f32.xlu0 %v306
    %v562 = vpop.xlane.xlu0 %561
    %s563 = sld [smem:[#allocation2]]
    %v564 = vstv %s563
    %v565 = vadd.f32 %v308, %v564
    %v566 = vadd.f32 %v310, %v564
    %v567 = vadd.f32 %v312, %v564
    %v568 = vadd.f32 %v314, %v564
    %v569 = vadd.f32 %v316, %v564
    %v570 = vadd.f32 %v318, %v564
    %v571 = vadd.f32 %v320, %v564
    %v572 = vadd.f32 %v322, %v564
    %v573 = vadd.f32 %v324, %v564
    %v574 = vadd.f32 %v326, %v564
    %v575 = vadd.f32 %v328, %v564
    %v576 = vadd.f32 %v330, %v564
    %v577 = vadd.f32 %v332, %v564
    %v578 = vadd.f32 %v334, %v564
    %v579 = vadd.f32 %v336, %v564
    %v580 = vadd.f32 %v338, %v564
    %v581 = vadd.f32 %v340, %v564
    %v582 = vadd.f32 %v342, %v564
    %v583 = vadd.f32 %v344, %v564
    %v584 = vadd.f32 %v346, %v564
    %v585 = vadd.f32 %v348, %v564
    %v586 = vadd.f32 %v350, %v564
    %v587 = vadd.f32 %v352, %v564
    %v588 = vadd.f32 %v354, %v564
    %v589 = vadd.f32 %v356, %v564
    %v590 = vadd.f32 %v358, %v564
    %v591 = vadd.f32 %v360, %v564
    %v592 = vadd.f32 %v362, %v564
    %v593 = vadd.f32 %v364, %v564
    %v594 = vadd.f32 %v366, %v564
    %v595 = vadd.f32 %v368, %v564
    %v596 = vadd.f32 %v370, %v564
    %v597 = vadd.f32 %v372, %v564
    %v598 = vadd.f32 %v374, %v564
    %v599 = vadd.f32 %v376, %v564
    %v600 = vadd.f32 %v378, %v564
    %v601 = vadd.f32 %v380, %v564
    %v602 = vadd.f32 %v382, %v564
    %v603 = vadd.f32 %v384, %v564
    %v604 = vadd.f32 %v386, %v564
    %v605 = vadd.f32 %v388, %v564
    %v606 = vadd.f32 %v390, %v564
    %v607 = vadd.f32 %v392, %v564
    %v608 = vadd.f32 %v394, %v564
    %v609 = vadd.f32 %v396, %v564
    %v610 = vadd.f32 %v398, %v564
    %v611 = vadd.f32 %v400, %v564
    %v612 = vadd.f32 %v402, %v564
    %v613 = vadd.f32 %v404, %v564
    %v614 = vadd.f32 %v406, %v564
    %v615 = vadd.f32 %v408, %v564
    %v616 = vadd.f32 %v410, %v564
    %v617 = vadd.f32 %v412, %v564
    %v618 = vadd.f32 %v414, %v564
    %v619 = vadd.f32 %v416, %v564
    %v620 = vadd.f32 %v418, %v564
    %v621 = vadd.f32 %v420, %v564
    %v622 = vadd.f32 %v422, %v564
    %v623 = vadd.f32 %v424, %v564
    %v624 = vadd.f32 %v426, %v564
    %v625 = vadd.f32 %v428, %v564
    %v626 = vadd.f32 %v430, %v564
    %v627 = vadd.f32 %v432, %v564
    %v628 = vadd.f32 %v434, %v564
    %v629 = vadd.f32 %v436, %v564
    %v630 = vadd.f32 %v438, %v564
    %v631 = vadd.f32 %v440, %v564
    %v632 = vadd.f32 %v442, %v564
    %v633 = vadd.f32 %v444, %v564
    %v634 = vadd.f32 %v446, %v564
    %v635 = vadd.f32 %v448, %v564
    %v636 = vadd.f32 %v450, %v564
    %v637 = vadd.f32 %v452, %v564
    %v638 = vadd.f32 %v454, %v564
    %v639 = vadd.f32 %v456, %v564
    %v640 = vadd.f32 %v458, %v564
    %v641 = vadd.f32 %v460, %v564
    %v642 = vadd.f32 %v462, %v564
    %v643 = vadd.f32 %v464, %v564
    %v644 = vadd.f32 %v466, %v564
    %v645 = vadd.f32 %v468, %v564
    %v646 = vadd.f32 %v470, %v564
    %v647 = vadd.f32 %v472, %v564
    %v648 = vadd.f32 %v474, %v564
    %v649 = vadd.f32 %v476, %v564
    %v650 = vadd.f32 %v478, %v564
    %v651 = vadd.f32 %v480, %v564
    %v652 = vadd.f32 %v482, %v564
    %v653 = vadd.f32 %v484, %v564
    %v654 = vadd.f32 %v486, %v564
    %v655 = vadd.f32 %v488, %v564
    %v656 = vadd.f32 %v490, %v564
    %v657 = vadd.f32 %v492, %v564
    %v658 = vadd.f32 %v494, %v564
    %v659 = vadd.f32 %v496, %v564
    %v660 = vadd.f32 %v498, %v564
    %v661 = vadd.f32 %v500, %v564
    %v662 = vadd.f32 %v502, %v564
    %v663 = vadd.f32 %v504, %v564
    %v664 = vadd.f32 %v506, %v564
    %v665 = vadd.f32 %v508, %v564
    %v666 = vadd.f32 %v510, %v564
    %v667 = vadd.f32 %v512, %v564
    %v668 = vadd.f32 %v514, %v564
    %v669 = vadd.f32 %v516, %v564
    %v670 = vadd.f32 %v518, %v564
    %v671 = vadd.f32 %v520, %v564
    %v672 = vadd.f32 %v522, %v564
    %v673 = vadd.f32 %v524, %v564
    %v674 = vadd.f32 %v526, %v564
    %v675 = vadd.f32 %v528, %v564
    %v676 = vadd.f32 %v530, %v564
    %v677 = vadd.f32 %v532, %v564
    %v678 = vadd.f32 %v534, %v564
    %v679 = vadd.f32 %v536, %v564
    %v680 = vadd.f32 %v538, %v564
    %v681 = vadd.f32 %v540, %v564
    %v682 = vadd.f32 %v542, %v564
    %v683 = vadd.f32 %v544, %v564
    %v684 = vadd.f32 %v546, %v564
    %v685 = vadd.f32 %v548, %v564
    %v686 = vadd.f32 %v550, %v564
    %v687 = vadd.f32 %v552, %v564
    %v688 = vadd.f32 %v554, %v564
    %v689 = vadd.f32 %v556, %v564
    %v690 = vadd.f32 %v558, %v564
    %v691 = vadd.f32 %v560, %v564
    %v692 = vadd.f32 %v562, %v564
    %v693 = vld [vmem:[%s1] sm:$0xff]
    %v694 = vld [vmem:[%s1 + $0x8] sm:$0xff]
    %v695 = vld [vmem:[%s1 + $0x10] sm:$0xff]
    %v696 = vld [vmem:[%s1 + $0x18] sm:$0xff]
    %v697 = vld [vmem:[%s1 + $0x20] sm:$0xff]
    %v698 = vld [vmem:[%s1 + $0x28] sm:$0xff]
    %v699 = vld [vmem:[%s1 + $0x30] sm:$0xff]
    %v700 = vld [vmem:[%s1 + $0x38] sm:$0xff]
    %vm701 = vcmp.gt.f32.partialorder %v693, 0.5
    %vm702 = vcmp.gt.f32.partialorder %v694, 0.5
    %vm703 = vcmp.gt.f32.partialorder %v695, 0.5
    %vm704 = vcmp.gt.f32.partialorder %v696, 0.5
    %vm705 = vcmp.gt.f32.partialorder %v697, 0.5
    %vm706 = vcmp.gt.f32.partialorder %v698, 0.5
    %vm707 = vcmp.gt.f32.partialorder %v699, 0.5
    %vm708 = vcmp.gt.f32.partialorder %v700, 0.5
    %v837 = vlaneseq
    %v838 = vand.u32 %v837, 127
    %v839 = vlaneseq
    %v840 = vshrl.u32 %v839, 7
    %v841 = vsub.s32 %v838, %v840
    %v842 = vrot.slane %v565, %v841
    %v843 = vadd.s32 %v838, 4294967288
    %v844 = vlaneseq
    %v845 = vshrl.u32 %v844, 7
    %v846 = vsub.s32 %v843, %v845
    %v847 = vrot.slane %v566, %v846
    %vm848 = vcmask 130112
    %v849 = vsel %vm848, %v847, %v842
    %v850 = vlaneseq
    %v851 = vshrl.u32 %v850, 7
    %v852 = vsub.s32 %v838, %v851
    %v853 = vrot.slane %v567, %v852
    %v854 = vlaneseq
    %v855 = vshrl.u32 %v854, 7
    %v856 = vsub.s32 %v843, %v855
    %v857 = vrot.slane %v568, %v856
    %v858 = vsel %vm848, %v857, %v853
    %v859 = vlaneseq
    %v860 = vshrl.u32 %v859, 7
    %v861 = vsub.s32 %v838, %v860
    %v862 = vrot.slane %v569, %v861
    %v863 = vlaneseq
    %v864 = vshrl.u32 %v863, 7
    %v865 = vsub.s32 %v843, %v864
    %v866 = vrot.slane %v570, %v865
    %v867 = vsel %vm848, %v866, %v862
    %v868 = vlaneseq
    %v869 = vshrl.u32 %v868, 7
    %v870 = vsub.s32 %v838, %v869
    %v871 = vrot.slane %v571, %v870
    %v872 = vlaneseq
    %v873 = vshrl.u32 %v872, 7
    %v874 = vsub.s32 %v843, %v873
    %v875 = vrot.slane %v572, %v874
    %v876 = vsel %vm848, %v875, %v871
    %v877 = vlaneseq
    %v878 = vshrl.u32 %v877, 7
    %v879 = vsub.s32 %v838, %v878
    %v880 = vrot.slane %v573, %v879
    %v881 = vlaneseq
    %v882 = vshrl.u32 %v881, 7
    %v883 = vsub.s32 %v843, %v882
    %v884 = vrot.slane %v574, %v883
    %v885 = vsel %vm848, %v884, %v880
    %v886 = vlaneseq
    %v887 = vshrl.u32 %v886, 7
    %v888 = vsub.s32 %v838, %v887
    %v889 = vrot.slane %v575, %v888
    %v890 = vlaneseq
    %v891 = vshrl.u32 %v890, 7
    %v892 = vsub.s32 %v843, %v891
    %v893 = vrot.slane %v576, %v892
    %v894 = vsel %vm848, %v893, %v889
    %v895 = vlaneseq
    %v896 = vshrl.u32 %v895, 7
    %v897 = vsub.s32 %v838, %v896
    %v898 = vrot.slane %v577, %v897
    %v899 = vlaneseq
    %v900 = vshrl.u32 %v899, 7
    %v901 = vsub.s32 %v843, %v900
    %v902 = vrot.slane %v578, %v901
    %v903 = vsel %vm848, %v902, %v898
    %v904 = vlaneseq
    %v905 = vshrl.u32 %v904, 7
    %v906 = vsub.s32 %v838, %v905
    %v907 = vrot.slane %v579, %v906
    %v908 = vlaneseq
    %v909 = vshrl.u32 %v908, 7
    %v910 = vsub.s32 %v843, %v909
    %v911 = vrot.slane %v580, %v910
    %v912 = vsel %vm848, %v911, %v907
    %v913 = vlaneseq
    %v914 = vshrl.u32 %v913, 7
    %v915 = vsub.s32 %v838, %v914
    %v916 = vrot.slane %v581, %v915
    %v917 = vlaneseq
    %v918 = vshrl.u32 %v917, 7
    %v919 = vsub.s32 %v843, %v918
    %v920 = vrot.slane %v582, %v919
    %v921 = vsel %vm848, %v920, %v916
    %v922 = vlaneseq
    %v923 = vshrl.u32 %v922, 7
    %v924 = vsub.s32 %v838, %v923
    %v925 = vrot.slane %v583, %v924
    %v926 = vlaneseq
    %v927 = vshrl.u32 %v926, 7
    %v928 = vsub.s32 %v843, %v927
    %v929 = vrot.slane %v584, %v928
    %v930 = vsel %vm848, %v929, %v925
    %v931 = vlaneseq
    %v932 = vshrl.u32 %v931, 7
    %v933 = vsub.s32 %v838, %v932
    %v934 = vrot.slane %v585, %v933
    %v935 = vlaneseq
    %v936 = vshrl.u32 %v935, 7
    %v937 = vsub.s32 %v843, %v936
    %v938 = vrot.slane %v586, %v937
    %v939 = vsel %vm848, %v938, %v934
    %v940 = vlaneseq
    %v941 = vshrl.u32 %v940, 7
    %v942 = vsub.s32 %v838, %v941
    %v943 = vrot.slane %v587, %v942
    %v944 = vlaneseq
    %v945 = vshrl.u32 %v944, 7
    %v946 = vsub.s32 %v843, %v945
    %v947 = vrot.slane %v588, %v946
    %v948 = vsel %vm848, %v947, %v943
    %v949 = vlaneseq
    %v950 = vshrl.u32 %v949, 7
    %v951 = vsub.s32 %v838, %v950
    %v952 = vrot.slane %v589, %v951
    %v953 = vlaneseq
    %v954 = vshrl.u32 %v953, 7
    %v955 = vsub.s32 %v843, %v954
    %v956 = vrot.slane %v590, %v955
    %v957 = vsel %vm848, %v956, %v952
    %v958 = vlaneseq
    %v959 = vshrl.u32 %v958, 7
    %v960 = vsub.s32 %v838, %v959
    %v961 = vrot.slane %v591, %v960
    %v962 = vlaneseq
    %v963 = vshrl.u32 %v962, 7
    %v964 = vsub.s32 %v843, %v963
    %v965 = vrot.slane %v592, %v964
    %v966 = vsel %vm848, %v965, %v961
    %v967 = vlaneseq
    %v968 = vshrl.u32 %v967, 7
    %v969 = vsub.s32 %v838, %v968
    %v970 = vrot.slane %v593, %v969
    %v971 = vlaneseq
    %v972 = vshrl.u32 %v971, 7
    %v973 = vsub.s32 %v843, %v972
    %v974 = vrot.slane %v594, %v973
    %v975 = vsel %vm848, %v974, %v970
    %v976 = vlaneseq
    %v977 = vshrl.u32 %v976, 7
    %v978 = vsub.s32 %v838, %v977
    %v979 = vrot.slane %v595, %v978
    %v980 = vlaneseq
    %v981 = vshrl.u32 %v980, 7
    %v982 = vsub.s32 %v843, %v981
    %v983 = vrot.slane %v596, %v982
    %v984 = vsel %vm848, %v983, %v979
    %v985 = vlaneseq
    %v986 = vshrl.u32 %v985, 7
    %v987 = vsub.s32 %v838, %v986
    %v988 = vrot.slane %v597, %v987
    %v989 = vlaneseq
    %v990 = vshrl.u32 %v989, 7
    %v991 = vsub.s32 %v843, %v990
    %v992 = vrot.slane %v598, %v991
    %v993 = vsel %vm848, %v992, %v988
    %v994 = vlaneseq
    %v995 = vshrl.u32 %v994, 7
    %v996 = vsub.s32 %v838, %v995
    %v997 = vrot.slane %v599, %v996
    %v998 = vlaneseq
    %v999 = vshrl.u32 %v998, 7
    %v1000 = vsub.s32 %v843, %v999
    %v1001 = vrot.slane %v600, %v1000
    %v1002 = vsel %vm848, %v1001, %v997
    %v1003 = vlaneseq
    %v1004 = vshrl.u32 %v1003, 7
    %v1005 = vsub.s32 %v838, %v1004
    %v1006 = vrot.slane %v601, %v1005
    %v1007 = vlaneseq
    %v1008 = vshrl.u32 %v1007, 7
    %v1009 = vsub.s32 %v843, %v1008
    %v1010 = vrot.slane %v602, %v1009
    %v1011 = vsel %vm848, %v1010, %v1006
    %v1012 = vlaneseq
    %v1013 = vshrl.u32 %v1012, 7
    %v1014 = vsub.s32 %v838, %v1013
    %v1015 = vrot.slane %v603, %v1014
    %v1016 = vlaneseq
    %v1017 = vshrl.u32 %v1016, 7
    %v1018 = vsub.s32 %v843, %v1017
    %v1019 = vrot.slane %v604, %v1018
    %v1020 = vsel %vm848, %v1019, %v1015
    %v1021 = vlaneseq
    %v1022 = vshrl.u32 %v1021, 7
    %v1023 = vsub.s32 %v838, %v1022
    %v1024 = vrot.slane %v605, %v1023
    %v1025 = vlaneseq
    %v1026 = vshrl.u32 %v1025, 7
    %v1027 = vsub.s32 %v843, %v1026
    %v1028 = vrot.slane %v606, %v1027
    %v1029 = vsel %vm848, %v1028, %v1024
    %v1030 = vlaneseq
    %v1031 = vshrl.u32 %v1030, 7
    %v1032 = vsub.s32 %v838, %v1031
    %v1033 = vrot.slane %v607, %v1032
    %v1034 = vlaneseq
    %v1035 = vshrl.u32 %v1034, 7
    %v1036 = vsub.s32 %v843, %v1035
    %v1037 = vrot.slane %v608, %v1036
    %v1038 = vsel %vm848, %v1037, %v1033
    %v1039 = vlaneseq
    %v1040 = vshrl.u32 %v1039, 7
    %v1041 = vsub.s32 %v838, %v1040
    %v1042 = vrot.slane %v609, %v1041
    %v1043 = vlaneseq
    %v1044 = vshrl.u32 %v1043, 7
    %v1045 = vsub.s32 %v843, %v1044
    %v1046 = vrot.slane %v610, %v1045
    %v1047 = vsel %vm848, %v1046, %v1042
    %v1048 = vlaneseq
    %v1049 = vshrl.u32 %v1048, 7
    %v1050 = vsub.s32 %v838, %v1049
    %v1051 = vrot.slane %v611, %v1050
    %v1052 = vlaneseq
    %v1053 = vshrl.u32 %v1052, 7
    %v1054 = vsub.s32 %v843, %v1053
    %v1055 = vrot.slane %v612, %v1054
    %v1056 = vsel %vm848, %v1055, %v1051
    %v1057 = vlaneseq
    %v1058 = vshrl.u32 %v1057, 7
    %v1059 = vsub.s32 %v838, %v1058
    %v1060 = vrot.slane %v613, %v1059
    %v1061 = vlaneseq
    %v1062 = vshrl.u32 %v1061, 7
    %v1063 = vsub.s32 %v843, %v1062
    %v1064 = vrot.slane %v614, %v1063
    %v1065 = vsel %vm848, %v1064, %v1060
    %v1066 = vlaneseq
    %v1067 = vshrl.u32 %v1066, 7
    %v1068 = vsub.s32 %v838, %v1067
    %v1069 = vrot.slane %v615, %v1068
    %v1070 = vlaneseq
    %v1071 = vshrl.u32 %v1070, 7
    %v1072 = vsub.s32 %v843, %v1071
    %v1073 = vrot.slane %v616, %v1072
    %v1074 = vsel %vm848, %v1073, %v1069
    %v1075 = vlaneseq
    %v1076 = vshrl.u32 %v1075, 7
    %v1077 = vsub.s32 %v838, %v1076
    %v1078 = vrot.slane %v617, %v1077
    %v1079 = vlaneseq
    %v1080 = vshrl.u32 %v1079, 7
    %v1081 = vsub.s32 %v843, %v1080
    %v1082 = vrot.slane %v618, %v1081
    %v1083 = vsel %vm848, %v1082, %v1078
    %v1084 = vlaneseq
    %v1085 = vshrl.u32 %v1084, 7
    %v1086 = vsub.s32 %v838, %v1085
    %v1087 = vrot.slane %v619, %v1086
    %v1088 = vlaneseq
    %v1089 = vshrl.u32 %v1088, 7
    %v1090 = vsub.s32 %v843, %v1089
    %v1091 = vrot.slane %v620, %v1090
    %v1092 = vsel %vm848, %v1091, %v1087
    %v1093 = vlaneseq
    %v1094 = vshrl.u32 %v1093, 7
    %v1095 = vsub.s32 %v838, %v1094
    %v1096 = vrot.slane %v621, %v1095
    %v1097 = vlaneseq
    %v1098 = vshrl.u32 %v1097, 7
    %v1099 = vsub.s32 %v843, %v1098
    %v1100 = vrot.slane %v622, %v1099
    %v1101 = vsel %vm848, %v1100, %v1096
    %v1102 = vlaneseq
    %v1103 = vshrl.u32 %v1102, 7
    %v1104 = vsub.s32 %v838, %v1103
    %v1105 = vrot.slane %v623, %v1104
    %v1106 = vlaneseq
    %v1107 = vshrl.u32 %v1106, 7
    %v1108 = vsub.s32 %v843, %v1107
    %v1109 = vrot.slane %v624, %v1108
    %v1110 = vsel %vm848, %v1109, %v1105
    %v1111 = vlaneseq
    %v1112 = vshrl.u32 %v1111, 7
    %v1113 = vsub.s32 %v838, %v1112
    %v1114 = vrot.slane %v625, %v1113
    %v1115 = vlaneseq
    %v1116 = vshrl.u32 %v1115, 7
    %v1117 = vsub.s32 %v843, %v1116
    %v1118 = vrot.slane %v626, %v1117
    %v1119 = vsel %vm848, %v1118, %v1114
    %v1120 = vlaneseq
    %v1121 = vshrl.u32 %v1120, 7
    %v1122 = vsub.s32 %v838, %v1121
    %v1123 = vrot.slane %v627, %v1122
    %v1124 = vlaneseq
    %v1125 = vshrl.u32 %v1124, 7
    %v1126 = vsub.s32 %v843, %v1125
    %v1127 = vrot.slane %v628, %v1126
    %v1128 = vsel %vm848, %v1127, %v1123
    %v1129 = vlaneseq
    %v1130 = vshrl.u32 %v1129, 7
    %v1131 = vsub.s32 %v838, %v1130
    %v1132 = vrot.slane %v629, %v1131
    %v1133 = vlaneseq
    %v1134 = vshrl.u32 %v1133, 7
    %v1135 = vsub.s32 %v843, %v1134
    %v1136 = vrot.slane %v630, %v1135
    %v1137 = vsel %vm848, %v1136, %v1132
    %v1138 = vlaneseq
    %v1139 = vshrl.u32 %v1138, 7
    %v1140 = vsub.s32 %v838, %v1139
    %v1141 = vrot.slane %v631, %v1140
    %v1142 = vlaneseq
    %v1143 = vshrl.u32 %v1142, 7
    %v1144 = vsub.s32 %v843, %v1143
    %v1145 = vrot.slane %v632, %v1144
    %v1146 = vsel %vm848, %v1145, %v1141
    %v1147 = vlaneseq
    %v1148 = vshrl.u32 %v1147, 7
    %v1149 = vsub.s32 %v838, %v1148
    %v1150 = vrot.slane %v633, %v1149
    %v1151 = vlaneseq
    %v1152 = vshrl.u32 %v1151, 7
    %v1153 = vsub.s32 %v843, %v1152
    %v1154 = vrot.slane %v634, %v1153
    %v1155 = vsel %vm848, %v1154, %v1150
    %v1156 = vlaneseq
    %v1157 = vshrl.u32 %v1156, 7
    %v1158 = vsub.s32 %v838, %v1157
    %v1159 = vrot.slane %v635, %v1158
    %v1160 = vlaneseq
    %v1161 = vshrl.u32 %v1160, 7
    %v1162 = vsub.s32 %v843, %v1161
    %v1163 = vrot.slane %v636, %v1162
    %v1164 = vsel %vm848, %v1163, %v1159
    %v1165 = vlaneseq
    %v1166 = vshrl.u32 %v1165, 7
    %v1167 = vsub.s32 %v838, %v1166
    %v1168 = vrot.slane %v637, %v1167
    %v1169 = vlaneseq
    %v1170 = vshrl.u32 %v1169, 7
    %v1171 = vsub.s32 %v843, %v1170
    %v1172 = vrot.slane %v638, %v1171
    %v1173 = vsel %vm848, %v1172, %v1168
    %v1174 = vlaneseq
    %v1175 = vshrl.u32 %v1174, 7
    %v1176 = vsub.s32 %v838, %v1175
    %v1177 = vrot.slane %v639, %v1176
    %v1178 = vlaneseq
    %v1179 = vshrl.u32 %v1178, 7
    %v1180 = vsub.s32 %v843, %v1179
    %v1181 = vrot.slane %v640, %v1180
    %v1182 = vsel %vm848, %v1181, %v1177
    %v1183 = vlaneseq
    %v1184 = vshrl.u32 %v1183, 7
    %v1185 = vsub.s32 %v838, %v1184
    %v1186 = vrot.slane %v641, %v1185
    %v1187 = vlaneseq
    %v1188 = vshrl.u32 %v1187, 7
    %v1189 = vsub.s32 %v843, %v1188
    %v1190 = vrot.slane %v642, %v1189
    %v1191 = vsel %vm848, %v1190, %v1186
    %v1192 = vlaneseq
    %v1193 = vshrl.u32 %v1192, 7
    %v1194 = vsub.s32 %v838, %v1193
    %v1195 = vrot.slane %v643, %v1194
    %v1196 = vlaneseq
    %v1197 = vshrl.u32 %v1196, 7
    %v1198 = vsub.s32 %v843, %v1197
    %v1199 = vrot.slane %v644, %v1198
    %v1200 = vsel %vm848, %v1199, %v1195
    %v1201 = vlaneseq
    %v1202 = vshrl.u32 %v1201, 7
    %v1203 = vsub.s32 %v838, %v1202
    %v1204 = vrot.slane %v645, %v1203
    %v1205 = vlaneseq
    %v1206 = vshrl.u32 %v1205, 7
    %v1207 = vsub.s32 %v843, %v1206
    %v1208 = vrot.slane %v646, %v1207
    %v1209 = vsel %vm848, %v1208, %v1204
    %v1210 = vlaneseq
    %v1211 = vshrl.u32 %v1210, 7
    %v1212 = vsub.s32 %v838, %v1211
    %v1213 = vrot.slane %v647, %v1212
    %v1214 = vlaneseq
    %v1215 = vshrl.u32 %v1214, 7
    %v1216 = vsub.s32 %v843, %v1215
    %v1217 = vrot.slane %v648, %v1216
    %v1218 = vsel %vm848, %v1217, %v1213
    %v1219 = vlaneseq
    %v1220 = vshrl.u32 %v1219, 7
    %v1221 = vsub.s32 %v838, %v1220
    %v1222 = vrot.slane %v649, %v1221
    %v1223 = vlaneseq
    %v1224 = vshrl.u32 %v1223, 7
    %v1225 = vsub.s32 %v843, %v1224
    %v1226 = vrot.slane %v650, %v1225
    %v1227 = vsel %vm848, %v1226, %v1222
    %v1228 = vlaneseq
    %v1229 = vshrl.u32 %v1228, 7
    %v1230 = vsub.s32 %v838, %v1229
    %v1231 = vrot.slane %v651, %v1230
    %v1232 = vlaneseq
    %v1233 = vshrl.u32 %v1232, 7
    %v1234 = vsub.s32 %v843, %v1233
    %v1235 = vrot.slane %v652, %v1234
    %v1236 = vsel %vm848, %v1235, %v1231
    %v1237 = vlaneseq
    %v1238 = vshrl.u32 %v1237, 7
    %v1239 = vsub.s32 %v838, %v1238
    %v1240 = vrot.slane %v653, %v1239
    %v1241 = vlaneseq
    %v1242 = vshrl.u32 %v1241, 7
    %v1243 = vsub.s32 %v843, %v1242
    %v1244 = vrot.slane %v654, %v1243
    %v1245 = vsel %vm848, %v1244, %v1240
    %v1246 = vlaneseq
    %v1247 = vshrl.u32 %v1246, 7
    %v1248 = vsub.s32 %v838, %v1247
    %v1249 = vrot.slane %v655, %v1248
    %v1250 = vlaneseq
    %v1251 = vshrl.u32 %v1250, 7
    %v1252 = vsub.s32 %v843, %v1251
    %v1253 = vrot.slane %v656, %v1252
    %v1254 = vsel %vm848, %v1253, %v1249
    %v1255 = vlaneseq
    %v1256 = vshrl.u32 %v1255, 7
    %v1257 = vsub.s32 %v838, %v1256
    %v1258 = vrot.slane %v657, %v1257
    %v1259 = vlaneseq
    %v1260 = vshrl.u32 %v1259, 7
    %v1261 = vsub.s32 %v843, %v1260
    %v1262 = vrot.slane %v658, %v1261
    %v1263 = vsel %vm848, %v1262, %v1258
    %v1264 = vlaneseq
    %v1265 = vshrl.u32 %v1264, 7
    %v1266 = vsub.s32 %v838, %v1265
    %v1267 = vrot.slane %v659, %v1266
    %v1268 = vlaneseq
    %v1269 = vshrl.u32 %v1268, 7
    %v1270 = vsub.s32 %v843, %v1269
    %v1271 = vrot.slane %v660, %v1270
    %v1272 = vsel %vm848, %v1271, %v1267
    %v1273 = vlaneseq
    %v1274 = vshrl.u32 %v1273, 7
    %v1275 = vsub.s32 %v838, %v1274
    %v1276 = vrot.slane %v661, %v1275
    %v1277 = vlaneseq
    %v1278 = vshrl.u32 %v1277, 7
    %v1279 = vsub.s32 %v843, %v1278
    %v1280 = vrot.slane %v662, %v1279
    %v1281 = vsel %vm848, %v1280, %v1276
    %v1282 = vlaneseq
    %v1283 = vshrl.u32 %v1282, 7
    %v1284 = vsub.s32 %v838, %v1283
    %v1285 = vrot.slane %v663, %v1284
    %v1286 = vlaneseq
    %v1287 = vshrl.u32 %v1286, 7
    %v1288 = vsub.s32 %v843, %v1287
    %v1289 = vrot.slane %v664, %v1288
    %v1290 = vsel %vm848, %v1289, %v1285
    %v1291 = vlaneseq
    %v1292 = vshrl.u32 %v1291, 7
    %v1293 = vsub.s32 %v838, %v1292
    %v1294 = vrot.slane %v665, %v1293
    %v1295 = vlaneseq
    %v1296 = vshrl.u32 %v1295, 7
    %v1297 = vsub.s32 %v843, %v1296
    %v1298 = vrot.slane %v666, %v1297
    %v1299 = vsel %vm848, %v1298, %v1294
    %v1300 = vlaneseq
    %v1301 = vshrl.u32 %v1300, 7
    %v1302 = vsub.s32 %v838, %v1301
    %v1303 = vrot.slane %v667, %v1302
    %v1304 = vlaneseq
    %v1305 = vshrl.u32 %v1304, 7
    %v1306 = vsub.s32 %v843, %v1305
    %v1307 = vrot.slane %v668, %v1306
    %v1308 = vsel %vm848, %v1307, %v1303
    %v1309 = vlaneseq
    %v1310 = vshrl.u32 %v1309, 7
    %v1311 = vsub.s32 %v838, %v1310
    %v1312 = vrot.slane %v669, %v1311
    %v1313 = vlaneseq
    %v1314 = vshrl.u32 %v1313, 7
    %v1315 = vsub.s32 %v843, %v1314
    %v1316 = vrot.slane %v670, %v1315
    %v1317 = vsel %vm848, %v1316, %v1312
    %v1318 = vlaneseq
    %v1319 = vshrl.u32 %v1318, 7
    %v1320 = vsub.s32 %v838, %v1319
    %v1321 = vrot.slane %v671, %v1320
    %v1322 = vlaneseq
    %v1323 = vshrl.u32 %v1322, 7
    %v1324 = vsub.s32 %v843, %v1323
    %v1325 = vrot.slane %v672, %v1324
    %v1326 = vsel %vm848, %v1325, %v1321
    %v1327 = vlaneseq
    %v1328 = vshrl.u32 %v1327, 7
    %v1329 = vsub.s32 %v838, %v1328
    %v1330 = vrot.slane %v673, %v1329
    %v1331 = vlaneseq
    %v1332 = vshrl.u32 %v1331, 7
    %v1333 = vsub.s32 %v843, %v1332
    %v1334 = vrot.slane %v674, %v1333
    %v1335 = vsel %vm848, %v1334, %v1330
    %v1336 = vlaneseq
    %v1337 = vshrl.u32 %v1336, 7
    %v1338 = vsub.s32 %v838, %v1337
    %v1339 = vrot.slane %v675, %v1338
    %v1340 = vlaneseq
    %v1341 = vshrl.u32 %v1340, 7
    %v1342 = vsub.s32 %v843, %v1341
    %v1343 = vrot.slane %v676, %v1342
    %v1344 = vsel %vm848, %v1343, %v1339
    %v1345 = vlaneseq
    %v1346 = vshrl.u32 %v1345, 7
    %v1347 = vsub.s32 %v838, %v1346
    %v1348 = vrot.slane %v677, %v1347
    %v1349 = vlaneseq
    %v1350 = vshrl.u32 %v1349, 7
    %v1351 = vsub.s32 %v843, %v1350
    %v1352 = vrot.slane %v678, %v1351
    %v1353 = vsel %vm848, %v1352, %v1348
    %v1354 = vlaneseq
    %v1355 = vshrl.u32 %v1354, 7
    %v1356 = vsub.s32 %v838, %v1355
    %v1357 = vrot.slane %v679, %v1356
    %v1358 = vlaneseq
    %v1359 = vshrl.u32 %v1358, 7
    %v1360 = vsub.s32 %v843, %v1359
    %v1361 = vrot.slane %v680, %v1360
    %v1362 = vsel %vm848, %v1361, %v1357
    %v1363 = vlaneseq
    %v1364 = vshrl.u32 %v1363, 7
    %v1365 = vsub.s32 %v838, %v1364
    %v1366 = vrot.slane %v681, %v1365
    %v1367 = vlaneseq
    %v1368 = vshrl.u32 %v1367, 7
    %v1369 = vsub.s32 %v843, %v1368
    %v1370 = vrot.slane %v682, %v1369
    %v1371 = vsel %vm848, %v1370, %v1366
    %v1372 = vlaneseq
    %v1373 = vshrl.u32 %v1372, 7
    %v1374 = vsub.s32 %v838, %v1373
    %v1375 = vrot.slane %v683, %v1374
    %v1376 = vlaneseq
    %v1377 = vshrl.u32 %v1376, 7
    %v1378 = vsub.s32 %v843, %v1377
    %v1379 = vrot.slane %v684, %v1378
    %v1380 = vsel %vm848, %v1379, %v1375
    %v1381 = vlaneseq
    %v1382 = vshrl.u32 %v1381, 7
    %v1383 = vsub.s32 %v838, %v1382
    %v1384 = vrot.slane %v685, %v1383
    %v1385 = vlaneseq
    %v1386 = vshrl.u32 %v1385, 7
    %v1387 = vsub.s32 %v843, %v1386
    %v1388 = vrot.slane %v686, %v1387
    %v1389 = vsel %vm848, %v1388, %v1384
    %v1390 = vlaneseq
    %v1391 = vshrl.u32 %v1390, 7
    %v1392 = vsub.s32 %v838, %v1391
    %v1393 = vrot.slane %v687, %v1392
    %v1394 = vlaneseq
    %v1395 = vshrl.u32 %v1394, 7
    %v1396 = vsub.s32 %v843, %v1395
    %v1397 = vrot.slane %v688, %v1396
    %v1398 = vsel %vm848, %v1397, %v1393
    %v1399 = vlaneseq
    %v1400 = vshrl.u32 %v1399, 7
    %v1401 = vsub.s32 %v838, %v1400
    %v1402 = vrot.slane %v689, %v1401
    %v1403 = vlaneseq
    %v1404 = vshrl.u32 %v1403, 7
    %v1405 = vsub.s32 %v843, %v1404
    %v1406 = vrot.slane %v690, %v1405
    %v1407 = vsel %vm848, %v1406, %v1402
    %v1408 = vlaneseq
    %v1409 = vshrl.u32 %v1408, 7
    %v1410 = vsub.s32 %v838, %v1409
    %v1411 = vrot.slane %v691, %v1410
    %v1412 = vlaneseq
    %v1413 = vshrl.u32 %v1412, 7
    %v1414 = vsub.s32 %v843, %v1413
    %v1415 = vrot.slane %v692, %v1414
    %v1416 = vsel %vm848, %v1415, %v1411
    %vm1417 = vcmask 1041409
    %v1418 = vsel %vm1417, %v858, %v849
    %vm1419 = vcmask 1042434
    %v1420 = vsel %vm1419, %v867, %v1418
    %vm1421 = vcmask 1043459
    %v1422 = vsel %vm1421, %v876, %v1420
    %vm1423 = vcmask 1044484
    %v1424 = vsel %vm1423, %v885, %v1422
    %vm1425 = vcmask 1045509
    %v1426 = vsel %vm1425, %v894, %v1424
    %vm1427 = vcmask 1046534
    %v1428 = vsel %vm1427, %v903, %v1426
    %vm1429 = vcmask 1047559
    %v1430 = vsel %vm1429, %v912, %v1428
    %v1431 = vsel %vm1417, %v930, %v921
    %v1432 = vsel %vm1419, %v939, %v1431
    %v1433 = vsel %vm1421, %v948, %v1432
    %v1434 = vsel %vm1423, %v957, %v1433
    %v1435 = vsel %vm1425, %v966, %v1434
    %v1436 = vsel %vm1427, %v975, %v1435
    %v1437 = vsel %vm1429, %v984, %v1436
    %v1438 = vsel %vm1417, %v1002, %v993
    %v1439 = vsel %vm1419, %v1011, %v1438
    %v1440 = vsel %vm1421, %v1020, %v1439
    %v1441 = vsel %vm1423, %v1029, %v1440
    %v1442 = vsel %vm1425, %v1038, %v1441
    %v1443 = vsel %vm1427, %v1047, %v1442
    %v1444 = vsel %vm1429, %v1056, %v1443
    %v1445 = vsel %vm1417, %v1074, %v1065
    %v1446 = vsel %vm1419, %v1083, %v1445
    %v1447 = vsel %vm1421, %v1092, %v1446
    %v1448 = vsel %vm1423, %v1101, %v1447
    %v1449 = vsel %vm1425, %v1110, %v1448
    %v1450 = vsel %vm1427, %v1119, %v1449
    %v1451 = vsel %vm1429, %v1128, %v1450
    %v1452 = vsel %vm1417, %v1146, %v1137
    %v1453 = vsel %vm1419, %v1155, %v1452
    %v1454 = vsel %vm1421, %v1164, %v1453
    %v1455 = vsel %vm1423, %v1173, %v1454
    %v1456 = vsel %vm1425, %v1182, %v1455
    %v1457 = vsel %vm1427, %v1191, %v1456
    %v1458 = vsel %vm1429, %v1200, %v1457
    %v1459 = vsel %vm1417, %v1218, %v1209
    %v1460 = vsel %vm1419, %v1227, %v1459
    %v1461 = vsel %vm1421, %v1236, %v1460
    %v1462 = vsel %vm1423, %v1245, %v1461
    %v1463 = vsel %vm1425, %v1254, %v1462
    %v1464 = vsel %vm1427, %v1263, %v1463
    %v1465 = vsel %vm1429, %v1272, %v1464
    %v1466 = vsel %vm1417, %v1290, %v1281
    %v1467 = vsel %vm1419, %v1299, %v1466
    %v1468 = vsel %vm1421, %v1308, %v1467
    %v1469 = vsel %vm1423, %v1317, %v1468
    %v1470 = vsel %vm1425, %v1326, %v1469
    %v1471 = vsel %vm1427, %v1335, %v1470
    %v1472 = vsel %vm1429, %v1344, %v1471
    %v1473 = vsel %vm1417, %v1362, %v1353
    %v1474 = vsel %vm1419, %v1371, %v1473
    %v1475 = vsel %vm1421, %v1380, %v1474
    %v1476 = vsel %vm1423, %v1389, %v1475
    %v1477 = vsel %vm1425, %v1398, %v1476
    %v1478 = vsel %vm1427, %v1407, %v1477
    %v1479 = vsel %vm1429, %v1416, %v1478
    %v1488 = vsel %vm701, %v1430, -1e+09
    %v1489 = vsel %vm702, %v1437, -1e+09
    %v1490 = vsel %vm703, %v1444, -1e+09
    %v1491 = vsel %vm704, %v1451, -1e+09
    %v1492 = vsel %vm705, %v1458, -1e+09
    %v1493 = vsel %vm706, %v1465, -1e+09
    %v1494 = vsel %vm707, %v1472, -1e+09
    %v1495 = vsel %vm708, %v1479, -1e+09
    %vm1496 = vcmask 130048
    %v1497 = vsel %vm1496, %v1488, -inf
    %1498 = vmax.xlane.f32.xlu0 %v1497
    %v1499 = vpop.xlane.xlu0 %1498
    %v1500 = vsel %vm1496, %v1489, -inf
    %1501 = vmax.xlane.f32.xlu0 %v1500
    %v1502 = vpop.xlane.xlu0 %1501
    %v1503 = vsel %vm1496, %v1490, -inf
    %1504 = vmax.xlane.f32.xlu0 %v1503
    %v1505 = vpop.xlane.xlu0 %1504
    %v1506 = vsel %vm1496, %v1491, -inf
    %1507 = vmax.xlane.f32.xlu0 %v1506
    %v1508 = vpop.xlane.xlu0 %1507
    %v1509 = vsel %vm1496, %v1492, -inf
    %1510 = vmax.xlane.f32.xlu0 %v1509
    %v1511 = vpop.xlane.xlu0 %1510
    %v1512 = vsel %vm1496, %v1493, -inf
    %1513 = vmax.xlane.f32.xlu0 %v1512
    %v1514 = vpop.xlane.xlu0 %1513
    %v1515 = vsel %vm1496, %v1494, -inf
    %1516 = vmax.xlane.f32.xlu0 %v1515
    %v1517 = vpop.xlane.xlu0 %1516
    %v1518 = vsel %vm1496, %v1495, -inf
    %1519 = vmax.xlane.f32.xlu0 %v1518
    %v1520 = vpop.xlane.xlu0 %1519
    %v1521 = vsub.f32 %v1488, %v1499
    %v1522 = vsub.f32 %v1489, %v1502
    %v1523 = vsub.f32 %v1490, %v1505
    %v1524 = vsub.f32 %v1491, %v1508
    %v1525 = vsub.f32 %v1492, %v1511
    %v1526 = vsub.f32 %v1493, %v1514
    %v1527 = vsub.f32 %v1494, %v1517
    %v1528 = vsub.f32 %v1495, %v1520
    %v1529 = vmul.f32 %v1521, 1.442695
    %v1530 = vpow.pop %v1529
    %v1531 = vmul.f32 %v1522, 1.442695
    %v1532 = vpow.pop %v1531
    %v1533 = vmul.f32 %v1523, 1.442695
    %v1534 = vpow.pop %v1533
    %v1535 = vmul.f32 %v1524, 1.442695
    %v1536 = vpow.pop %v1535
    %v1537 = vmul.f32 %v1525, 1.442695
    %v1538 = vpow.pop %v1537
    %v1539 = vmul.f32 %v1526, 1.442695
    %v1540 = vpow.pop %v1539
    %v1541 = vmul.f32 %v1527, 1.442695
    %v1542 = vpow.pop %v1541
    %v1543 = vmul.f32 %v1528, 1.442695
    %v1544 = vpow.pop %v1543
    %v1545 = vsel %vm1496, %v1530, 0.0
    %1546 = vadd.xlane.f32.xlu0 %v1545
    %v1547 = vpop.xlane.xlu0 %1546
    %v1548 = vsel %vm1496, %v1532, 0.0
    %1549 = vadd.xlane.f32.xlu0 %v1548
    %v1550 = vpop.xlane.xlu0 %1549
    %v1551 = vsel %vm1496, %v1534, 0.0
    %1552 = vadd.xlane.f32.xlu0 %v1551
    %v1553 = vpop.xlane.xlu0 %1552
    %v1554 = vsel %vm1496, %v1536, 0.0
    %1555 = vadd.xlane.f32.xlu0 %v1554
    %v1556 = vpop.xlane.xlu0 %1555
    %v1557 = vsel %vm1496, %v1538, 0.0
    %1558 = vadd.xlane.f32.xlu0 %v1557
    %v1559 = vpop.xlane.xlu0 %1558
    %v1560 = vsel %vm1496, %v1540, 0.0
    %1561 = vadd.xlane.f32.xlu0 %v1560
    %v1562 = vpop.xlane.xlu0 %1561
    %v1563 = vsel %vm1496, %v1542, 0.0
    %1564 = vadd.xlane.f32.xlu0 %v1563
    %v1565 = vpop.xlane.xlu0 %1564
    %v1566 = vsel %vm1496, %v1544, 0.0
    %1567 = vadd.xlane.f32.xlu0 %v1566
    %v1568 = vpop.xlane.xlu0 %1567
    %v1569 = vrcp.pop %v1547
    %v1570 = vmul.f32 %v1530, %v1569
    %v1571 = vrcp.pop %v1550
    %v1572 = vmul.f32 %v1532, %v1571
    %v1573 = vrcp.pop %v1553
    %v1574 = vmul.f32 %v1534, %v1573
    %v1575 = vrcp.pop %v1556
    %v1576 = vmul.f32 %v1536, %v1575
    %v1577 = vrcp.pop %v1559
    %v1578 = vmul.f32 %v1538, %v1577
    %v1579 = vrcp.pop %v1562
    %v1580 = vmul.f32 %v1540, %v1579
    %v1581 = vrcp.pop %v1565
    %v1582 = vmul.f32 %v1542, %v1581
    %v1583 = vrcp.pop %v1568
    %v1584 = vmul.f32 %v1544, %v1583
    %v1585 = vlaneseq
    %v1586 = vshrl.u32 %v1585, 7
    %v1587 = vsub.s32 0, %v1586
    %v1588 = vrot.slane %v1570, %v1587
    %1590 = vbcast.lane.b32.xlu0 %v1588, 256
    %v1591 = vpop.permute.xlu0 %1590
    %s1593 = sor.u32 256, 8
    %1594 = vbcast.lane.b32.xlu0 %v1588, %s1593
    %v1595 = vpop.permute.xlu0 %1594
    %v1596 = vlaneseq
    %v1597 = vshrl.u32 %v1596, 7
    %v1598 = vsub.s32 1, %v1597
    %v1599 = vrot.slane %v1570, %v1598
    %1601 = vbcast.lane.b32.xlu0 %v1599, 256
    %v1602 = vpop.permute.xlu0 %1601
    %s1604 = sor.u32 256, 8
    %1605 = vbcast.lane.b32.xlu0 %v1599, %s1604
    %v1606 = vpop.permute.xlu0 %1605
    %v1607 = vlaneseq
    %v1608 = vshrl.u32 %v1607, 7
    %v1609 = vsub.s32 2, %v1608
    %v1610 = vrot.slane %v1570, %v1609
    %1612 = vbcast.lane.b32.xlu0 %v1610, 256
    %v1613 = vpop.permute.xlu0 %1612
    %s1615 = sor.u32 256, 8
    %1616 = vbcast.lane.b32.xlu0 %v1610, %s1615
    %v1617 = vpop.permute.xlu0 %1616
    %v1618 = vlaneseq
    %v1619 = vshrl.u32 %v1618, 7
    %v1620 = vsub.s32 3, %v1619
    %v1621 = vrot.slane %v1570, %v1620
    %1623 = vbcast.lane.b32.xlu0 %v1621, 256
    %v1624 = vpop.permute.xlu0 %1623
    %s1626 = sor.u32 256, 8
    %1627 = vbcast.lane.b32.xlu0 %v1621, %s1626
    %v1628 = vpop.permute.xlu0 %1627
    %v1629 = vlaneseq
    %v1630 = vshrl.u32 %v1629, 7
    %v1631 = vsub.s32 4, %v1630
    %v1632 = vrot.slane %v1570, %v1631
    %1634 = vbcast.lane.b32.xlu0 %v1632, 256
    %v1635 = vpop.permute.xlu0 %1634
    %s1637 = sor.u32 256, 8
    %1638 = vbcast.lane.b32.xlu0 %v1632, %s1637
    %v1639 = vpop.permute.xlu0 %1638
    %v1640 = vlaneseq
    %v1641 = vshrl.u32 %v1640, 7
    %v1642 = vsub.s32 5, %v1641
    %v1643 = vrot.slane %v1570, %v1642
    %1645 = vbcast.lane.b32.xlu0 %v1643, 256
    %v1646 = vpop.permute.xlu0 %1645
    %s1648 = sor.u32 256, 8
    %1649 = vbcast.lane.b32.xlu0 %v1643, %s1648
    %v1650 = vpop.permute.xlu0 %1649
    %v1651 = vlaneseq
    %v1652 = vshrl.u32 %v1651, 7
    %v1653 = vsub.s32 6, %v1652
    %v1654 = vrot.slane %v1570, %v1653
    %1656 = vbcast.lane.b32.xlu0 %v1654, 256
    %v1657 = vpop.permute.xlu0 %1656
    %s1659 = sor.u32 256, 8
    %1660 = vbcast.lane.b32.xlu0 %v1654, %s1659
    %v1661 = vpop.permute.xlu0 %1660
    %v1662 = vlaneseq
    %v1663 = vshrl.u32 %v1662, 7
    %v1664 = vsub.s32 7, %v1663
    %v1665 = vrot.slane %v1570, %v1664
    %1667 = vbcast.lane.b32.xlu0 %v1665, 256
    %v1668 = vpop.permute.xlu0 %1667
    %s1670 = sor.u32 256, 8
    %1671 = vbcast.lane.b32.xlu0 %v1665, %s1670
    %v1672 = vpop.permute.xlu0 %1671
    %v1673 = vlaneseq
    %v1674 = vshrl.u32 %v1673, 7
    %v1675 = vsub.s32 0, %v1674
    %v1676 = vrot.slane %v1572, %v1675
    %1678 = vbcast.lane.b32.xlu0 %v1676, 256
    %v1679 = vpop.permute.xlu0 %1678
    %s1681 = sor.u32 256, 8
    %1682 = vbcast.lane.b32.xlu0 %v1676, %s1681
    %v1683 = vpop.permute.xlu0 %1682
    %v1684 = vlaneseq
    %v1685 = vshrl.u32 %v1684, 7
    %v1686 = vsub.s32 1, %v1685
    %v1687 = vrot.slane %v1572, %v1686
    %1689 = vbcast.lane.b32.xlu0 %v1687, 256
    %v1690 = vpop.permute.xlu0 %1689
    %s1692 = sor.u32 256, 8
    %1693 = vbcast.lane.b32.xlu0 %v1687, %s1692
    %v1694 = vpop.permute.xlu0 %1693
    %v1695 = vlaneseq
    %v1696 = vshrl.u32 %v1695, 7
    %v1697 = vsub.s32 2, %v1696
    %v1698 = vrot.slane %v1572, %v1697
    %1700 = vbcast.lane.b32.xlu0 %v1698, 256
    %v1701 = vpop.permute.xlu0 %1700
    %s1703 = sor.u32 256, 8
    %1704 = vbcast.lane.b32.xlu0 %v1698, %s1703
    %v1705 = vpop.permute.xlu0 %1704
    %v1706 = vlaneseq
    %v1707 = vshrl.u32 %v1706, 7
    %v1708 = vsub.s32 3, %v1707
    %v1709 = vrot.slane %v1572, %v1708
    %1711 = vbcast.lane.b32.xlu0 %v1709, 256
    %v1712 = vpop.permute.xlu0 %1711
    %s1714 = sor.u32 256, 8
    %1715 = vbcast.lane.b32.xlu0 %v1709, %s1714
    %v1716 = vpop.permute.xlu0 %1715
    %v1717 = vlaneseq
    %v1718 = vshrl.u32 %v1717, 7
    %v1719 = vsub.s32 4, %v1718
    %v1720 = vrot.slane %v1572, %v1719
    %1722 = vbcast.lane.b32.xlu0 %v1720, 256
    %v1723 = vpop.permute.xlu0 %1722
    %s1725 = sor.u32 256, 8
    %1726 = vbcast.lane.b32.xlu0 %v1720, %s1725
    %v1727 = vpop.permute.xlu0 %1726
    %v1728 = vlaneseq
    %v1729 = vshrl.u32 %v1728, 7
    %v1730 = vsub.s32 5, %v1729
    %v1731 = vrot.slane %v1572, %v1730
    %1733 = vbcast.lane.b32.xlu0 %v1731, 256
    %v1734 = vpop.permute.xlu0 %1733
    %s1736 = sor.u32 256, 8
    %1737 = vbcast.lane.b32.xlu0 %v1731, %s1736
    %v1738 = vpop.permute.xlu0 %1737
    %v1739 = vlaneseq
    %v1740 = vshrl.u32 %v1739, 7
    %v1741 = vsub.s32 6, %v1740
    %v1742 = vrot.slane %v1572, %v1741
    %1744 = vbcast.lane.b32.xlu0 %v1742, 256
    %v1745 = vpop.permute.xlu0 %1744
    %s1747 = sor.u32 256, 8
    %1748 = vbcast.lane.b32.xlu0 %v1742, %s1747
    %v1749 = vpop.permute.xlu0 %1748
    %v1750 = vlaneseq
    %v1751 = vshrl.u32 %v1750, 7
    %v1752 = vsub.s32 7, %v1751
    %v1753 = vrot.slane %v1572, %v1752
    %1755 = vbcast.lane.b32.xlu0 %v1753, 256
    %v1756 = vpop.permute.xlu0 %1755
    %s1758 = sor.u32 256, 8
    %1759 = vbcast.lane.b32.xlu0 %v1753, %s1758
    %v1760 = vpop.permute.xlu0 %1759
    %v1761 = vlaneseq
    %v1762 = vshrl.u32 %v1761, 7
    %v1763 = vsub.s32 0, %v1762
    %v1764 = vrot.slane %v1574, %v1763
    %1766 = vbcast.lane.b32.xlu0 %v1764, 256
    %v1767 = vpop.permute.xlu0 %1766
    %s1769 = sor.u32 256, 8
    %1770 = vbcast.lane.b32.xlu0 %v1764, %s1769
    %v1771 = vpop.permute.xlu0 %1770
    %v1772 = vlaneseq
    %v1773 = vshrl.u32 %v1772, 7
    %v1774 = vsub.s32 1, %v1773
    %v1775 = vrot.slane %v1574, %v1774
    %1777 = vbcast.lane.b32.xlu0 %v1775, 256
    %v1778 = vpop.permute.xlu0 %1777
    %s1780 = sor.u32 256, 8
    %1781 = vbcast.lane.b32.xlu0 %v1775, %s1780
    %v1782 = vpop.permute.xlu0 %1781
    %v1783 = vlaneseq
    %v1784 = vshrl.u32 %v1783, 7
    %v1785 = vsub.s32 2, %v1784
    %v1786 = vrot.slane %v1574, %v1785
    %1788 = vbcast.lane.b32.xlu0 %v1786, 256
    %v1789 = vpop.permute.xlu0 %1788
    %s1791 = sor.u32 256, 8
    %1792 = vbcast.lane.b32.xlu0 %v1786, %s1791
    %v1793 = vpop.permute.xlu0 %1792
    %v1794 = vlaneseq
    %v1795 = vshrl.u32 %v1794, 7
    %v1796 = vsub.s32 3, %v1795
    %v1797 = vrot.slane %v1574, %v1796
    %1799 = vbcast.lane.b32.xlu0 %v1797, 256
    %v1800 = vpop.permute.xlu0 %1799
    %s1802 = sor.u32 256, 8
    %1803 = vbcast.lane.b32.xlu0 %v1797, %s1802
    %v1804 = vpop.permute.xlu0 %1803
    %v1805 = vlaneseq
    %v1806 = vshrl.u32 %v1805, 7
    %v1807 = vsub.s32 4, %v1806
    %v1808 = vrot.slane %v1574, %v1807
    %1810 = vbcast.lane.b32.xlu0 %v1808, 256
    %v1811 = vpop.permute.xlu0 %1810
    %s1813 = sor.u32 256, 8
    %1814 = vbcast.lane.b32.xlu0 %v1808, %s1813
    %v1815 = vpop.permute.xlu0 %1814
    %v1816 = vlaneseq
    %v1817 = vshrl.u32 %v1816, 7
    %v1818 = vsub.s32 5, %v1817
    %v1819 = vrot.slane %v1574, %v1818
    %1821 = vbcast.lane.b32.xlu0 %v1819, 256
    %v1822 = vpop.permute.xlu0 %1821
    %s1824 = sor.u32 256, 8
    %1825 = vbcast.lane.b32.xlu0 %v1819, %s1824
    %v1826 = vpop.permute.xlu0 %1825
    %v1827 = vlaneseq
    %v1828 = vshrl.u32 %v1827, 7
    %v1829 = vsub.s32 6, %v1828
    %v1830 = vrot.slane %v1574, %v1829
    %1832 = vbcast.lane.b32.xlu0 %v1830, 256
    %v1833 = vpop.permute.xlu0 %1832
    %s1835 = sor.u32 256, 8
    %1836 = vbcast.lane.b32.xlu0 %v1830, %s1835
    %v1837 = vpop.permute.xlu0 %1836
    %v1838 = vlaneseq
    %v1839 = vshrl.u32 %v1838, 7
    %v1840 = vsub.s32 7, %v1839
    %v1841 = vrot.slane %v1574, %v1840
    %1843 = vbcast.lane.b32.xlu0 %v1841, 256
    %v1844 = vpop.permute.xlu0 %1843
    %s1846 = sor.u32 256, 8
    %1847 = vbcast.lane.b32.xlu0 %v1841, %s1846
    %v1848 = vpop.permute.xlu0 %1847
    %v1849 = vlaneseq
    %v1850 = vshrl.u32 %v1849, 7
    %v1851 = vsub.s32 0, %v1850
    %v1852 = vrot.slane %v1576, %v1851
    %1854 = vbcast.lane.b32.xlu0 %v1852, 256
    %v1855 = vpop.permute.xlu0 %1854
    %s1857 = sor.u32 256, 8
    %1858 = vbcast.lane.b32.xlu0 %v1852, %s1857
    %v1859 = vpop.permute.xlu0 %1858
    %v1860 = vlaneseq
    %v1861 = vshrl.u32 %v1860, 7
    %v1862 = vsub.s32 1, %v1861
    %v1863 = vrot.slane %v1576, %v1862
    %1865 = vbcast.lane.b32.xlu0 %v1863, 256
    %v1866 = vpop.permute.xlu0 %1865
    %s1868 = sor.u32 256, 8
    %1869 = vbcast.lane.b32.xlu0 %v1863, %s1868
    %v1870 = vpop.permute.xlu0 %1869
    %v1871 = vlaneseq
    %v1872 = vshrl.u32 %v1871, 7
    %v1873 = vsub.s32 2, %v1872
    %v1874 = vrot.slane %v1576, %v1873
    %1876 = vbcast.lane.b32.xlu0 %v1874, 256
    %v1877 = vpop.permute.xlu0 %1876
    %s1879 = sor.u32 256, 8
    %1880 = vbcast.lane.b32.xlu0 %v1874, %s1879
    %v1881 = vpop.permute.xlu0 %1880
    %v1882 = vlaneseq
    %v1883 = vshrl.u32 %v1882, 7
    %v1884 = vsub.s32 3, %v1883
    %v1885 = vrot.slane %v1576, %v1884
    %1887 = vbcast.lane.b32.xlu0 %v1885, 256
    %v1888 = vpop.permute.xlu0 %1887
    %s1890 = sor.u32 256, 8
    %1891 = vbcast.lane.b32.xlu0 %v1885, %s1890
    %v1892 = vpop.permute.xlu0 %1891
    %v1893 = vlaneseq
    %v1894 = vshrl.u32 %v1893, 7
    %v1895 = vsub.s32 4, %v1894
    %v1896 = vrot.slane %v1576, %v1895
    %1898 = vbcast.lane.b32.xlu0 %v1896, 256
    %v1899 = vpop.permute.xlu0 %1898
    %s1901 = sor.u32 256, 8
    %1902 = vbcast.lane.b32.xlu0 %v1896, %s1901
    %v1903 = vpop.permute.xlu0 %1902
    %v1904 = vlaneseq
    %v1905 = vshrl.u32 %v1904, 7
    %v1906 = vsub.s32 5, %v1905
    %v1907 = vrot.slane %v1576, %v1906
    %1909 = vbcast.lane.b32.xlu0 %v1907, 256
    %v1910 = vpop.permute.xlu0 %1909
    %s1912 = sor.u32 256, 8
    %1913 = vbcast.lane.b32.xlu0 %v1907, %s1912
    %v1914 = vpop.permute.xlu0 %1913
    %v1915 = vlaneseq
    %v1916 = vshrl.u32 %v1915, 7
    %v1917 = vsub.s32 6, %v1916
    %v1918 = vrot.slane %v1576, %v1917
    %1920 = vbcast.lane.b32.xlu0 %v1918, 256
    %v1921 = vpop.permute.xlu0 %1920
    %s1923 = sor.u32 256, 8
    %1924 = vbcast.lane.b32.xlu0 %v1918, %s1923
    %v1925 = vpop.permute.xlu0 %1924
    %v1926 = vlaneseq
    %v1927 = vshrl.u32 %v1926, 7
    %v1928 = vsub.s32 7, %v1927
    %v1929 = vrot.slane %v1576, %v1928
    %1931 = vbcast.lane.b32.xlu0 %v1929, 256
    %v1932 = vpop.permute.xlu0 %1931
    %s1934 = sor.u32 256, 8
    %1935 = vbcast.lane.b32.xlu0 %v1929, %s1934
    %v1936 = vpop.permute.xlu0 %1935
    %v1937 = vlaneseq
    %v1938 = vshrl.u32 %v1937, 7
    %v1939 = vsub.s32 0, %v1938
    %v1940 = vrot.slane %v1578, %v1939
    %1942 = vbcast.lane.b32.xlu0 %v1940, 256
    %v1943 = vpop.permute.xlu0 %1942
    %s1945 = sor.u32 256, 8
    %1946 = vbcast.lane.b32.xlu0 %v1940, %s1945
    %v1947 = vpop.permute.xlu0 %1946
    %v1948 = vlaneseq
    %v1949 = vshrl.u32 %v1948, 7
    %v1950 = vsub.s32 1, %v1949
    %v1951 = vrot.slane %v1578, %v1950
    %1953 = vbcast.lane.b32.xlu0 %v1951, 256
    %v1954 = vpop.permute.xlu0 %1953
    %s1956 = sor.u32 256, 8
    %1957 = vbcast.lane.b32.xlu0 %v1951, %s1956
    %v1958 = vpop.permute.xlu0 %1957
    %v1959 = vlaneseq
    %v1960 = vshrl.u32 %v1959, 7
    %v1961 = vsub.s32 2, %v1960
    %v1962 = vrot.slane %v1578, %v1961
    %1964 = vbcast.lane.b32.xlu0 %v1962, 256
    %v1965 = vpop.permute.xlu0 %1964
    %s1967 = sor.u32 256, 8
    %1968 = vbcast.lane.b32.xlu0 %v1962, %s1967
    %v1969 = vpop.permute.xlu0 %1968
    %v1970 = vlaneseq
    %v1971 = vshrl.u32 %v1970, 7
    %v1972 = vsub.s32 3, %v1971
    %v1973 = vrot.slane %v1578, %v1972
    %1975 = vbcast.lane.b32.xlu0 %v1973, 256
    %v1976 = vpop.permute.xlu0 %1975
    %s1978 = sor.u32 256, 8
    %1979 = vbcast.lane.b32.xlu0 %v1973, %s1978
    %v1980 = vpop.permute.xlu0 %1979
    %v1981 = vlaneseq
    %v1982 = vshrl.u32 %v1981, 7
    %v1983 = vsub.s32 4, %v1982
    %v1984 = vrot.slane %v1578, %v1983
    %1986 = vbcast.lane.b32.xlu0 %v1984, 256
    %v1987 = vpop.permute.xlu0 %1986
    %s1989 = sor.u32 256, 8
    %1990 = vbcast.lane.b32.xlu0 %v1984, %s1989
    %v1991 = vpop.permute.xlu0 %1990
    %v1992 = vlaneseq
    %v1993 = vshrl.u32 %v1992, 7
    %v1994 = vsub.s32 5, %v1993
    %v1995 = vrot.slane %v1578, %v1994
    %1997 = vbcast.lane.b32.xlu0 %v1995, 256
    %v1998 = vpop.permute.xlu0 %1997
    %s2000 = sor.u32 256, 8
    %2001 = vbcast.lane.b32.xlu0 %v1995, %s2000
    %v2002 = vpop.permute.xlu0 %2001
    %v2003 = vlaneseq
    %v2004 = vshrl.u32 %v2003, 7
    %v2005 = vsub.s32 6, %v2004
    %v2006 = vrot.slane %v1578, %v2005
    %2008 = vbcast.lane.b32.xlu0 %v2006, 256
    %v2009 = vpop.permute.xlu0 %2008
    %s2011 = sor.u32 256, 8
    %2012 = vbcast.lane.b32.xlu0 %v2006, %s2011
    %v2013 = vpop.permute.xlu0 %2012
    %v2014 = vlaneseq
    %v2015 = vshrl.u32 %v2014, 7
    %v2016 = vsub.s32 7, %v2015
    %v2017 = vrot.slane %v1578, %v2016
    %2019 = vbcast.lane.b32.xlu0 %v2017, 256
    %v2020 = vpop.permute.xlu0 %2019
    %s2022 = sor.u32 256, 8
    %2023 = vbcast.lane.b32.xlu0 %v2017, %s2022
    %v2024 = vpop.permute.xlu0 %2023
    %v2025 = vlaneseq
    %v2026 = vshrl.u32 %v2025, 7
    %v2027 = vsub.s32 0, %v2026
    %v2028 = vrot.slane %v1580, %v2027
    %2030 = vbcast.lane.b32.xlu0 %v2028, 256
    %v2031 = vpop.permute.xlu0 %2030
    %s2033 = sor.u32 256, 8
    %2034 = vbcast.lane.b32.xlu0 %v2028, %s2033
    %v2035 = vpop.permute.xlu0 %2034
    %v2036 = vlaneseq
    %v2037 = vshrl.u32 %v2036, 7
    %v2038 = vsub.s32 1, %v2037
    %v2039 = vrot.slane %v1580, %v2038
    %2041 = vbcast.lane.b32.xlu0 %v2039, 256
    %v2042 = vpop.permute.xlu0 %2041
    %s2044 = sor.u32 256, 8
    %2045 = vbcast.lane.b32.xlu0 %v2039, %s2044
    %v2046 = vpop.permute.xlu0 %2045
    %v2047 = vlaneseq
    %v2048 = vshrl.u32 %v2047, 7
    %v2049 = vsub.s32 2, %v2048
    %v2050 = vrot.slane %v1580, %v2049
    %2052 = vbcast.lane.b32.xlu0 %v2050, 256
    %v2053 = vpop.permute.xlu0 %2052
    %s2055 = sor.u32 256, 8
    %2056 = vbcast.lane.b32.xlu0 %v2050, %s2055
    %v2057 = vpop.permute.xlu0 %2056
    %v2058 = vlaneseq
    %v2059 = vshrl.u32 %v2058, 7
    %v2060 = vsub.s32 3, %v2059
    %v2061 = vrot.slane %v1580, %v2060
    %2063 = vbcast.lane.b32.xlu0 %v2061, 256
    %v2064 = vpop.permute.xlu0 %2063
    %s2066 = sor.u32 256, 8
    %2067 = vbcast.lane.b32.xlu0 %v2061, %s2066
    %v2068 = vpop.permute.xlu0 %2067
    %v2069 = vlaneseq
    %v2070 = vshrl.u32 %v2069, 7
    %v2071 = vsub.s32 4, %v2070
    %v2072 = vrot.slane %v1580, %v2071
    %2074 = vbcast.lane.b32.xlu0 %v2072, 256
    %v2075 = vpop.permute.xlu0 %2074
    %s2077 = sor.u32 256, 8
    %2078 = vbcast.lane.b32.xlu0 %v2072, %s2077
    %v2079 = vpop.permute.xlu0 %2078
    %v2080 = vlaneseq
    %v2081 = vshrl.u32 %v2080, 7
    %v2082 = vsub.s32 5, %v2081
    %v2083 = vrot.slane %v1580, %v2082
    %2085 = vbcast.lane.b32.xlu0 %v2083, 256
    %v2086 = vpop.permute.xlu0 %2085
    %s2088 = sor.u32 256, 8
    %2089 = vbcast.lane.b32.xlu0 %v2083, %s2088
    %v2090 = vpop.permute.xlu0 %2089
    %v2091 = vlaneseq
    %v2092 = vshrl.u32 %v2091, 7
    %v2093 = vsub.s32 6, %v2092
    %v2094 = vrot.slane %v1580, %v2093
    %2096 = vbcast.lane.b32.xlu0 %v2094, 256
    %v2097 = vpop.permute.xlu0 %2096
    %s2099 = sor.u32 256, 8
    %2100 = vbcast.lane.b32.xlu0 %v2094, %s2099
    %v2101 = vpop.permute.xlu0 %2100
    %v2102 = vlaneseq
    %v2103 = vshrl.u32 %v2102, 7
    %v2104 = vsub.s32 7, %v2103
    %v2105 = vrot.slane %v1580, %v2104
    %2107 = vbcast.lane.b32.xlu0 %v2105, 256
    %v2108 = vpop.permute.xlu0 %2107
    %s2110 = sor.u32 256, 8
    %2111 = vbcast.lane.b32.xlu0 %v2105, %s2110
    %v2112 = vpop.permute.xlu0 %2111
    %v2113 = vlaneseq
    %v2114 = vshrl.u32 %v2113, 7
    %v2115 = vsub.s32 0, %v2114
    %v2116 = vrot.slane %v1582, %v2115
    %2118 = vbcast.lane.b32.xlu0 %v2116, 256
    %v2119 = vpop.permute.xlu0 %2118
    %s2121 = sor.u32 256, 8
    %2122 = vbcast.lane.b32.xlu0 %v2116, %s2121
    %v2123 = vpop.permute.xlu0 %2122
    %v2124 = vlaneseq
    %v2125 = vshrl.u32 %v2124, 7
    %v2126 = vsub.s32 1, %v2125
    %v2127 = vrot.slane %v1582, %v2126
    %2129 = vbcast.lane.b32.xlu0 %v2127, 256
    %v2130 = vpop.permute.xlu0 %2129
    %s2132 = sor.u32 256, 8
    %2133 = vbcast.lane.b32.xlu0 %v2127, %s2132
    %v2134 = vpop.permute.xlu0 %2133
    %v2135 = vlaneseq
    %v2136 = vshrl.u32 %v2135, 7
    %v2137 = vsub.s32 2, %v2136
    %v2138 = vrot.slane %v1582, %v2137
    %2140 = vbcast.lane.b32.xlu0 %v2138, 256
    %v2141 = vpop.permute.xlu0 %2140
    %s2143 = sor.u32 256, 8
    %2144 = vbcast.lane.b32.xlu0 %v2138, %s2143
    %v2145 = vpop.permute.xlu0 %2144
    %v2146 = vlaneseq
    %v2147 = vshrl.u32 %v2146, 7
    %v2148 = vsub.s32 3, %v2147
    %v2149 = vrot.slane %v1582, %v2148
    %2151 = vbcast.lane.b32.xlu0 %v2149, 256
    %v2152 = vpop.permute.xlu0 %2151
    %s2154 = sor.u32 256, 8
    %2155 = vbcast.lane.b32.xlu0 %v2149, %s2154
    %v2156 = vpop.permute.xlu0 %2155
    %v2157 = vlaneseq
    %v2158 = vshrl.u32 %v2157, 7
    %v2159 = vsub.s32 4, %v2158
    %v2160 = vrot.slane %v1582, %v2159
    %2162 = vbcast.lane.b32.xlu0 %v2160, 256
    %v2163 = vpop.permute.xlu0 %2162
    %s2165 = sor.u32 256, 8
    %2166 = vbcast.lane.b32.xlu0 %v2160, %s2165
    %v2167 = vpop.permute.xlu0 %2166
    %v2168 = vlaneseq
    %v2169 = vshrl.u32 %v2168, 7
    %v2170 = vsub.s32 5, %v2169
    %v2171 = vrot.slane %v1582, %v2170
    %2173 = vbcast.lane.b32.xlu0 %v2171, 256
    %v2174 = vpop.permute.xlu0 %2173
    %s2176 = sor.u32 256, 8
    %2177 = vbcast.lane.b32.xlu0 %v2171, %s2176
    %v2178 = vpop.permute.xlu0 %2177
    %v2179 = vlaneseq
    %v2180 = vshrl.u32 %v2179, 7
    %v2181 = vsub.s32 6, %v2180
    %v2182 = vrot.slane %v1582, %v2181
    %2184 = vbcast.lane.b32.xlu0 %v2182, 256
    %v2185 = vpop.permute.xlu0 %2184
    %s2187 = sor.u32 256, 8
    %2188 = vbcast.lane.b32.xlu0 %v2182, %s2187
    %v2189 = vpop.permute.xlu0 %2188
    %v2190 = vlaneseq
    %v2191 = vshrl.u32 %v2190, 7
    %v2192 = vsub.s32 7, %v2191
    %v2193 = vrot.slane %v1582, %v2192
    %2195 = vbcast.lane.b32.xlu0 %v2193, 256
    %v2196 = vpop.permute.xlu0 %2195
    %s2198 = sor.u32 256, 8
    %2199 = vbcast.lane.b32.xlu0 %v2193, %s2198
    %v2200 = vpop.permute.xlu0 %2199
    %v2201 = vlaneseq
    %v2202 = vshrl.u32 %v2201, 7
    %v2203 = vsub.s32 0, %v2202
    %v2204 = vrot.slane %v1584, %v2203
    %2206 = vbcast.lane.b32.xlu0 %v2204, 256
    %v2207 = vpop.permute.xlu0 %2206
    %s2209 = sor.u32 256, 8
    %2210 = vbcast.lane.b32.xlu0 %v2204, %s2209
    %v2211 = vpop.permute.xlu0 %2210
    %v2212 = vlaneseq
    %v2213 = vshrl.u32 %v2212, 7
    %v2214 = vsub.s32 1, %v2213
    %v2215 = vrot.slane %v1584, %v2214
    %2217 = vbcast.lane.b32.xlu0 %v2215, 256
    %v2218 = vpop.permute.xlu0 %2217
    %s2220 = sor.u32 256, 8
    %2221 = vbcast.lane.b32.xlu0 %v2215, %s2220
    %v2222 = vpop.permute.xlu0 %2221
    %v2223 = vlaneseq
    %v2224 = vshrl.u32 %v2223, 7
    %v2225 = vsub.s32 2, %v2224
    %v2226 = vrot.slane %v1584, %v2225
    %2228 = vbcast.lane.b32.xlu0 %v2226, 256
    %v2229 = vpop.permute.xlu0 %2228
    %s2231 = sor.u32 256, 8
    %2232 = vbcast.lane.b32.xlu0 %v2226, %s2231
    %v2233 = vpop.permute.xlu0 %2232
    %v2234 = vlaneseq
    %v2235 = vshrl.u32 %v2234, 7
    %v2236 = vsub.s32 3, %v2235
    %v2237 = vrot.slane %v1584, %v2236
    %2239 = vbcast.lane.b32.xlu0 %v2237, 256
    %v2240 = vpop.permute.xlu0 %2239
    %s2242 = sor.u32 256, 8
    %2243 = vbcast.lane.b32.xlu0 %v2237, %s2242
    %v2244 = vpop.permute.xlu0 %2243
    %v2245 = vlaneseq
    %v2246 = vshrl.u32 %v2245, 7
    %v2247 = vsub.s32 4, %v2246
    %v2248 = vrot.slane %v1584, %v2247
    %2250 = vbcast.lane.b32.xlu0 %v2248, 256
    %v2251 = vpop.permute.xlu0 %2250
    %s2253 = sor.u32 256, 8
    %2254 = vbcast.lane.b32.xlu0 %v2248, %s2253
    %v2255 = vpop.permute.xlu0 %2254
    %v2256 = vlaneseq
    %v2257 = vshrl.u32 %v2256, 7
    %v2258 = vsub.s32 5, %v2257
    %v2259 = vrot.slane %v1584, %v2258
    %2261 = vbcast.lane.b32.xlu0 %v2259, 256
    %v2262 = vpop.permute.xlu0 %2261
    %s2264 = sor.u32 256, 8
    %2265 = vbcast.lane.b32.xlu0 %v2259, %s2264
    %v2266 = vpop.permute.xlu0 %2265
    %v2267 = vlaneseq
    %v2268 = vshrl.u32 %v2267, 7
    %v2269 = vsub.s32 6, %v2268
    %v2270 = vrot.slane %v1584, %v2269
    %2272 = vbcast.lane.b32.xlu0 %v2270, 256
    %v2273 = vpop.permute.xlu0 %2272
    %s2275 = sor.u32 256, 8
    %2276 = vbcast.lane.b32.xlu0 %v2270, %s2275
    %v2277 = vpop.permute.xlu0 %2276
    %v2278 = vlaneseq
    %v2279 = vshrl.u32 %v2278, 7
    %v2280 = vsub.s32 7, %v2279
    %v2281 = vrot.slane %v1584, %v2280
    %2283 = vbcast.lane.b32.xlu0 %v2281, 256
    %v2284 = vpop.permute.xlu0 %2283
    %s2286 = sor.u32 256, 8
    %2287 = vbcast.lane.b32.xlu0 %v2281, %s2286
    %v2288 = vpop.permute.xlu0 %2287
    %v2289 = vmul.f32 %v1591, %v44
    %v2290 = vmul.f32 %v1595, %v45
    %v2291 = vmul.f32 %v1602, %v46
    %v2292 = vmul.f32 %v1606, %v47
    %v2293 = vmul.f32 %v1613, %v48
    %v2294 = vmul.f32 %v1617, %v49
    %v2295 = vmul.f32 %v1624, %v50
    %v2296 = vmul.f32 %v1628, %v51
    %v2297 = vmul.f32 %v1635, %v52
    %v2298 = vmul.f32 %v1639, %v53
    %v2299 = vmul.f32 %v1646, %v54
    %v2300 = vmul.f32 %v1650, %v55
    %v2301 = vmul.f32 %v1657, %v56
    %v2302 = vmul.f32 %v1661, %v57
    %v2303 = vmul.f32 %v1668, %v58
    %v2304 = vmul.f32 %v1672, %v59
    %v2305 = vmul.f32 %v1679, %v60
    %v2306 = vmul.f32 %v1683, %v61
    %v2307 = vmul.f32 %v1690, %v62
    %v2308 = vmul.f32 %v1694, %v63
    %v2309 = vmul.f32 %v1701, %v64
    %v2310 = vmul.f32 %v1705, %v65
    %v2311 = vmul.f32 %v1712, %v66
    %v2312 = vmul.f32 %v1716, %v67
    %v2313 = vmul.f32 %v1723, %v68
    %v2314 = vmul.f32 %v1727, %v69
    %v2315 = vmul.f32 %v1734, %v70
    %v2316 = vmul.f32 %v1738, %v71
    %v2317 = vmul.f32 %v1745, %v72
    %v2318 = vmul.f32 %v1749, %v73
    %v2319 = vmul.f32 %v1756, %v74
    %v2320 = vmul.f32 %v1760, %v75
    %v2321 = vmul.f32 %v1767, %v76
    %v2322 = vmul.f32 %v1771, %v77
    %v2323 = vmul.f32 %v1778, %v78
    %v2324 = vmul.f32 %v1782, %v79
    %v2325 = vmul.f32 %v1789, %v80
    %v2326 = vmul.f32 %v1793, %v81
    %v2327 = vmul.f32 %v1800, %v82
    %v2328 = vmul.f32 %v1804, %v83
    %v2329 = vmul.f32 %v1811, %v84
    %v2330 = vmul.f32 %v1815, %v85
    %v2331 = vmul.f32 %v1822, %v86
    %v2332 = vmul.f32 %v1826, %v87
    %v2333 = vmul.f32 %v1833, %v88
    %v2334 = vmul.f32 %v1837, %v89
    %v2335 = vmul.f32 %v1844, %v90
    %v2336 = vmul.f32 %v1848, %v91
    %v2337 = vmul.f32 %v1855, %v92
    %v2338 = vmul.f32 %v1859, %v93
    %v2339 = vmul.f32 %v1866, %v94
    %v2340 = vmul.f32 %v1870, %v95
    %v2341 = vmul.f32 %v1877, %v96
    %v2342 = vmul.f32 %v1881, %v97
    %v2343 = vmul.f32 %v1888, %v98
    %v2344 = vmul.f32 %v1892, %v99
    %v2345 = vmul.f32 %v1899, %v100
    %v2346 = vmul.f32 %v1903, %v101
    %v2347 = vmul.f32 %v1910, %v102
    %v2348 = vmul.f32 %v1914, %v103
    %v2349 = vmul.f32 %v1921, %v104
    %v2350 = vmul.f32 %v1925, %v105
    %v2351 = vmul.f32 %v1932, %v106
    %v2352 = vmul.f32 %v1936, %v107
    %v2353 = vmul.f32 %v1943, %v108
    %v2354 = vmul.f32 %v1947, %v109
    %v2355 = vmul.f32 %v1954, %v110
    %v2356 = vmul.f32 %v1958, %v111
    %v2357 = vmul.f32 %v1965, %v112
    %v2358 = vmul.f32 %v1969, %v113
    %v2359 = vmul.f32 %v1976, %v114
    %v2360 = vmul.f32 %v1980, %v115
    %v2361 = vmul.f32 %v1987, %v116
    %v2362 = vmul.f32 %v1991, %v117
    %v2363 = vmul.f32 %v1998, %v118
    %v2364 = vmul.f32 %v2002, %v119
    %v2365 = vmul.f32 %v2009, %v120
    %v2366 = vmul.f32 %v2013, %v121
    %v2367 = vmul.f32 %v2020, %v122
    %v2368 = vmul.f32 %v2024, %v123
    %v2369 = vmul.f32 %v2031, %v124
    %v2370 = vmul.f32 %v2035, %v125
    %v2371 = vmul.f32 %v2042, %v126
    %v2372 = vmul.f32 %v2046, %v127
    %v2373 = vmul.f32 %v2053, %v128
    %v2374 = vmul.f32 %v2057, %v129
    %v2375 = vmul.f32 %v2064, %v130
    %v2376 = vmul.f32 %v2068, %v131
    %v2377 = vmul.f32 %v2075, %v132
    %v2378 = vmul.f32 %v2079, %v133
    %v2379 = vmul.f32 %v2086, %v134
    %v2380 = vmul.f32 %v2090, %v135
    %v2381 = vmul.f32 %v2097, %v136
    %v2382 = vmul.f32 %v2101, %v137
    %v2383 = vmul.f32 %v2108, %v138
    %v2384 = vmul.f32 %v2112, %v139
    %v2385 = vmul.f32 %v2119, %v140
    %v2386 = vmul.f32 %v2123, %v141
    %v2387 = vmul.f32 %v2130, %v142
    %v2388 = vmul.f32 %v2134, %v143
    %v2389 = vmul.f32 %v2141, %v144
    %v2390 = vmul.f32 %v2145, %v145
    %v2391 = vmul.f32 %v2152, %v146
    %v2392 = vmul.f32 %v2156, %v147
    %v2393 = vmul.f32 %v2163, %v148
    %v2394 = vmul.f32 %v2167, %v149
    %v2395 = vmul.f32 %v2174, %v150
    %v2396 = vmul.f32 %v2178, %v151
    %v2397 = vmul.f32 %v2185, %v152
    %v2398 = vmul.f32 %v2189, %v153
    %v2399 = vmul.f32 %v2196, %v154
    %v2400 = vmul.f32 %v2200, %v155
    %v2401 = vmul.f32 %v2207, %v156
    %v2402 = vmul.f32 %v2211, %v157
    %v2403 = vmul.f32 %v2218, %v158
    %v2404 = vmul.f32 %v2222, %v159
    %v2405 = vmul.f32 %v2229, %v160
    %v2406 = vmul.f32 %v2233, %v161
    %v2407 = vmul.f32 %v2240, %v162
    %v2408 = vmul.f32 %v2244, %v163
    %v2409 = vmul.f32 %v2251, %v164
    %v2410 = vmul.f32 %v2255, %v165
    %v2411 = vmul.f32 %v2262, %v166
    %v2412 = vmul.f32 %v2266, %v167
    %v2413 = vmul.f32 %v2273, %v168
    %v2414 = vmul.f32 %v2277, %v169
    %v2415 = vmul.f32 %v2284, %v170
    %v2416 = vmul.f32 %v2288, %v171
    %v2417 = vadd.f32 %v2289, %v2290
    %v2418 = vrot.slane %v2417, 4
    %v2419 = vadd.f32 %v2417, %v2418
    %v2420 = vrot.slane %v2419, 2
    %v2421 = vadd.f32 %v2419, %v2420
    %v2422 = vrot.slane %v2421, 1
    %v2423 = vadd.f32 %v2421, %v2422
    %v2424 = vadd.f32 %v2291, %v2292
    %v2425 = vrot.slane %v2424, 4
    %v2426 = vadd.f32 %v2424, %v2425
    %v2427 = vrot.slane %v2426, 2
    %v2428 = vadd.f32 %v2426, %v2427
    %v2429 = vrot.slane %v2428, 1
    %v2430 = vadd.f32 %v2428, %v2429
    %v2431 = vadd.f32 %v2293, %v2294
    %v2432 = vrot.slane %v2431, 4
    %v2433 = vadd.f32 %v2431, %v2432
    %v2434 = vrot.slane %v2433, 2
    %v2435 = vadd.f32 %v2433, %v2434
    %v2436 = vrot.slane %v2435, 1
    %v2437 = vadd.f32 %v2435, %v2436
    %v2438 = vadd.f32 %v2295, %v2296
    %v2439 = vrot.slane %v2438, 4
    %v2440 = vadd.f32 %v2438, %v2439
    %v2441 = vrot.slane %v2440, 2
    %v2442 = vadd.f32 %v2440, %v2441
    %v2443 = vrot.slane %v2442, 1
    %v2444 = vadd.f32 %v2442, %v2443
    %v2445 = vadd.f32 %v2297, %v2298
    %v2446 = vrot.slane %v2445, 4
    %v2447 = vadd.f32 %v2445, %v2446
    %v2448 = vrot.slane %v2447, 2
    %v2449 = vadd.f32 %v2447, %v2448
    %v2450 = vrot.slane %v2449, 1
    %v2451 = vadd.f32 %v2449, %v2450
    %v2452 = vadd.f32 %v2299, %v2300
    %v2453 = vrot.slane %v2452, 4
    %v2454 = vadd.f32 %v2452, %v2453
    %v2455 = vrot.slane %v2454, 2
    %v2456 = vadd.f32 %v2454, %v2455
    %v2457 = vrot.slane %v2456, 1
    %v2458 = vadd.f32 %v2456, %v2457
    %v2459 = vadd.f32 %v2301, %v2302
    %v2460 = vrot.slane %v2459, 4
    %v2461 = vadd.f32 %v2459, %v2460
    %v2462 = vrot.slane %v2461, 2
    %v2463 = vadd.f32 %v2461, %v2462
    %v2464 = vrot.slane %v2463, 1
    %v2465 = vadd.f32 %v2463, %v2464
    %v2466 = vadd.f32 %v2303, %v2304
    %v2467 = vrot.slane %v2466, 4
    %v2468 = vadd.f32 %v2466, %v2467
    %v2469 = vrot.slane %v2468, 2
    %v2470 = vadd.f32 %v2468, %v2469
    %v2471 = vrot.slane %v2470, 1
    %v2472 = vadd.f32 %v2470, %v2471
    %v2473 = vadd.f32 %v2305, %v2306
    %v2474 = vrot.slane %v2473, 4
    %v2475 = vadd.f32 %v2473, %v2474
    %v2476 = vrot.slane %v2475, 2
    %v2477 = vadd.f32 %v2475, %v2476
    %v2478 = vrot.slane %v2477, 1
    %v2479 = vadd.f32 %v2477, %v2478
    %v2480 = vadd.f32 %v2307, %v2308
    %v2481 = vrot.slane %v2480, 4
    %v2482 = vadd.f32 %v2480, %v2481
    %v2483 = vrot.slane %v2482, 2
    %v2484 = vadd.f32 %v2482, %v2483
    %v2485 = vrot.slane %v2484, 1
    %v2486 = vadd.f32 %v2484, %v2485
    %v2487 = vadd.f32 %v2309, %v2310
    %v2488 = vrot.slane %v2487, 4
    %v2489 = vadd.f32 %v2487, %v2488
    %v2490 = vrot.slane %v2489, 2
    %v2491 = vadd.f32 %v2489, %v2490
    %v2492 = vrot.slane %v2491, 1
    %v2493 = vadd.f32 %v2491, %v2492
    %v2494 = vadd.f32 %v2311, %v2312
    %v2495 = vrot.slane %v2494, 4
    %v2496 = vadd.f32 %v2494, %v2495
    %v2497 = vrot.slane %v2496, 2
    %v2498 = vadd.f32 %v2496, %v2497
    %v2499 = vrot.slane %v2498, 1
    %v2500 = vadd.f32 %v2498, %v2499
    %v2501 = vadd.f32 %v2313, %v2314
    %v2502 = vrot.slane %v2501, 4
    %v2503 = vadd.f32 %v2501, %v2502
    %v2504 = vrot.slane %v2503, 2
    %v2505 = vadd.f32 %v2503, %v2504
    %v2506 = vrot.slane %v2505, 1
    %v2507 = vadd.f32 %v2505, %v2506
    %v2508 = vadd.f32 %v2315, %v2316
    %v2509 = vrot.slane %v2508, 4
    %v2510 = vadd.f32 %v2508, %v2509
    %v2511 = vrot.slane %v2510, 2
    %v2512 = vadd.f32 %v2510, %v2511
    %v2513 = vrot.slane %v2512, 1
    %v2514 = vadd.f32 %v2512, %v2513
    %v2515 = vadd.f32 %v2317, %v2318
    %v2516 = vrot.slane %v2515, 4
    %v2517 = vadd.f32 %v2515, %v2516
    %v2518 = vrot.slane %v2517, 2
    %v2519 = vadd.f32 %v2517, %v2518
    %v2520 = vrot.slane %v2519, 1
    %v2521 = vadd.f32 %v2519, %v2520
    %v2522 = vadd.f32 %v2319, %v2320
    %v2523 = vrot.slane %v2522, 4
    %v2524 = vadd.f32 %v2522, %v2523
    %v2525 = vrot.slane %v2524, 2
    %v2526 = vadd.f32 %v2524, %v2525
    %v2527 = vrot.slane %v2526, 1
    %v2528 = vadd.f32 %v2526, %v2527
    %v2529 = vadd.f32 %v2321, %v2322
    %v2530 = vrot.slane %v2529, 4
    %v2531 = vadd.f32 %v2529, %v2530
    %v2532 = vrot.slane %v2531, 2
    %v2533 = vadd.f32 %v2531, %v2532
    %v2534 = vrot.slane %v2533, 1
    %v2535 = vadd.f32 %v2533, %v2534
    %v2536 = vadd.f32 %v2323, %v2324
    %v2537 = vrot.slane %v2536, 4
    %v2538 = vadd.f32 %v2536, %v2537
    %v2539 = vrot.slane %v2538, 2
    %v2540 = vadd.f32 %v2538, %v2539
    %v2541 = vrot.slane %v2540, 1
    %v2542 = vadd.f32 %v2540, %v2541
    %v2543 = vadd.f32 %v2325, %v2326
    %v2544 = vrot.slane %v2543, 4
    %v2545 = vadd.f32 %v2543, %v2544
    %v2546 = vrot.slane %v2545, 2
    %v2547 = vadd.f32 %v2545, %v2546
    %v2548 = vrot.slane %v2547, 1
    %v2549 = vadd.f32 %v2547, %v2548
    %v2550 = vadd.f32 %v2327, %v2328
    %v2551 = vrot.slane %v2550, 4
    %v2552 = vadd.f32 %v2550, %v2551
    %v2553 = vrot.slane %v2552, 2
    %v2554 = vadd.f32 %v2552, %v2553
    %v2555 = vrot.slane %v2554, 1
    %v2556 = vadd.f32 %v2554, %v2555
    %v2557 = vadd.f32 %v2329, %v2330
    %v2558 = vrot.slane %v2557, 4
    %v2559 = vadd.f32 %v2557, %v2558
    %v2560 = vrot.slane %v2559, 2
    %v2561 = vadd.f32 %v2559, %v2560
    %v2562 = vrot.slane %v2561, 1
    %v2563 = vadd.f32 %v2561, %v2562
    %v2564 = vadd.f32 %v2331, %v2332
    %v2565 = vrot.slane %v2564, 4
    %v2566 = vadd.f32 %v2564, %v2565
    %v2567 = vrot.slane %v2566, 2
    %v2568 = vadd.f32 %v2566, %v2567
    %v2569 = vrot.slane %v2568, 1
    %v2570 = vadd.f32 %v2568, %v2569
    %v2571 = vadd.f32 %v2333, %v2334
    %v2572 = vrot.slane %v2571, 4
    %v2573 = vadd.f32 %v2571, %v2572
    %v2574 = vrot.slane %v2573, 2
    %v2575 = vadd.f32 %v2573, %v2574
    %v2576 = vrot.slane %v2575, 1
    %v2577 = vadd.f32 %v2575, %v2576
    %v2578 = vadd.f32 %v2335, %v2336
    %v2579 = vrot.slane %v2578, 4
    %v2580 = vadd.f32 %v2578, %v2579
    %v2581 = vrot.slane %v2580, 2
    %v2582 = vadd.f32 %v2580, %v2581
    %v2583 = vrot.slane %v2582, 1
    %v2584 = vadd.f32 %v2582, %v2583
    %v2585 = vadd.f32 %v2337, %v2338
    %v2586 = vrot.slane %v2585, 4
    %v2587 = vadd.f32 %v2585, %v2586
    %v2588 = vrot.slane %v2587, 2
    %v2589 = vadd.f32 %v2587, %v2588
    %v2590 = vrot.slane %v2589, 1
    %v2591 = vadd.f32 %v2589, %v2590
    %v2592 = vadd.f32 %v2339, %v2340
    %v2593 = vrot.slane %v2592, 4
    %v2594 = vadd.f32 %v2592, %v2593
    %v2595 = vrot.slane %v2594, 2
    %v2596 = vadd.f32 %v2594, %v2595
    %v2597 = vrot.slane %v2596, 1
    %v2598 = vadd.f32 %v2596, %v2597
    %v2599 = vadd.f32 %v2341, %v2342
    %v2600 = vrot.slane %v2599, 4
    %v2601 = vadd.f32 %v2599, %v2600
    %v2602 = vrot.slane %v2601, 2
    %v2603 = vadd.f32 %v2601, %v2602
    %v2604 = vrot.slane %v2603, 1
    %v2605 = vadd.f32 %v2603, %v2604
    %v2606 = vadd.f32 %v2343, %v2344
    %v2607 = vrot.slane %v2606, 4
    %v2608 = vadd.f32 %v2606, %v2607
    %v2609 = vrot.slane %v2608, 2
    %v2610 = vadd.f32 %v2608, %v2609
    %v2611 = vrot.slane %v2610, 1
    %v2612 = vadd.f32 %v2610, %v2611
    %v2613 = vadd.f32 %v2345, %v2346
    %v2614 = vrot.slane %v2613, 4
    %v2615 = vadd.f32 %v2613, %v2614
    %v2616 = vrot.slane %v2615, 2
    %v2617 = vadd.f32 %v2615, %v2616
    %v2618 = vrot.slane %v2617, 1
    %v2619 = vadd.f32 %v2617, %v2618
    %v2620 = vadd.f32 %v2347, %v2348
    %v2621 = vrot.slane %v2620, 4
    %v2622 = vadd.f32 %v2620, %v2621
    %v2623 = vrot.slane %v2622, 2
    %v2624 = vadd.f32 %v2622, %v2623
    %v2625 = vrot.slane %v2624, 1
    %v2626 = vadd.f32 %v2624, %v2625
    %v2627 = vadd.f32 %v2349, %v2350
    %v2628 = vrot.slane %v2627, 4
    %v2629 = vadd.f32 %v2627, %v2628
    %v2630 = vrot.slane %v2629, 2
    %v2631 = vadd.f32 %v2629, %v2630
    %v2632 = vrot.slane %v2631, 1
    %v2633 = vadd.f32 %v2631, %v2632
    %v2634 = vadd.f32 %v2351, %v2352
    %v2635 = vrot.slane %v2634, 4
    %v2636 = vadd.f32 %v2634, %v2635
    %v2637 = vrot.slane %v2636, 2
    %v2638 = vadd.f32 %v2636, %v2637
    %v2639 = vrot.slane %v2638, 1
    %v2640 = vadd.f32 %v2638, %v2639
    %v2641 = vadd.f32 %v2353, %v2354
    %v2642 = vrot.slane %v2641, 4
    %v2643 = vadd.f32 %v2641, %v2642
    %v2644 = vrot.slane %v2643, 2
    %v2645 = vadd.f32 %v2643, %v2644
    %v2646 = vrot.slane %v2645, 1
    %v2647 = vadd.f32 %v2645, %v2646
    %v2648 = vadd.f32 %v2355, %v2356
    %v2649 = vrot.slane %v2648, 4
    %v2650 = vadd.f32 %v2648, %v2649
    %v2651 = vrot.slane %v2650, 2
    %v2652 = vadd.f32 %v2650, %v2651
    %v2653 = vrot.slane %v2652, 1
    %v2654 = vadd.f32 %v2652, %v2653
    %v2655 = vadd.f32 %v2357, %v2358
    %v2656 = vrot.slane %v2655, 4
    %v2657 = vadd.f32 %v2655, %v2656
    %v2658 = vrot.slane %v2657, 2
    %v2659 = vadd.f32 %v2657, %v2658
    %v2660 = vrot.slane %v2659, 1
    %v2661 = vadd.f32 %v2659, %v2660
    %v2662 = vadd.f32 %v2359, %v2360
    %v2663 = vrot.slane %v2662, 4
    %v2664 = vadd.f32 %v2662, %v2663
    %v2665 = vrot.slane %v2664, 2
    %v2666 = vadd.f32 %v2664, %v2665
    %v2667 = vrot.slane %v2666, 1
    %v2668 = vadd.f32 %v2666, %v2667
    %v2669 = vadd.f32 %v2361, %v2362
    %v2670 = vrot.slane %v2669, 4
    %v2671 = vadd.f32 %v2669, %v2670
    %v2672 = vrot.slane %v2671, 2
    %v2673 = vadd.f32 %v2671, %v2672
    %v2674 = vrot.slane %v2673, 1
    %v2675 = vadd.f32 %v2673, %v2674
    %v2676 = vadd.f32 %v2363, %v2364
    %v2677 = vrot.slane %v2676, 4
    %v2678 = vadd.f32 %v2676, %v2677
    %v2679 = vrot.slane %v2678, 2
    %v2680 = vadd.f32 %v2678, %v2679
    %v2681 = vrot.slane %v2680, 1
    %v2682 = vadd.f32 %v2680, %v2681
    %v2683 = vadd.f32 %v2365, %v2366
    %v2684 = vrot.slane %v2683, 4
    %v2685 = vadd.f32 %v2683, %v2684
    %v2686 = vrot.slane %v2685, 2
    %v2687 = vadd.f32 %v2685, %v2686
    %v2688 = vrot.slane %v2687, 1
    %v2689 = vadd.f32 %v2687, %v2688
    %v2690 = vadd.f32 %v2367, %v2368
    %v2691 = vrot.slane %v2690, 4
    %v2692 = vadd.f32 %v2690, %v2691
    %v2693 = vrot.slane %v2692, 2
    %v2694 = vadd.f32 %v2692, %v2693
    %v2695 = vrot.slane %v2694, 1
    %v2696 = vadd.f32 %v2694, %v2695
    %v2697 = vadd.f32 %v2369, %v2370
    %v2698 = vrot.slane %v2697, 4
    %v2699 = vadd.f32 %v2697, %v2698
    %v2700 = vrot.slane %v2699, 2
    %v2701 = vadd.f32 %v2699, %v2700
    %v2702 = vrot.slane %v2701, 1
    %v2703 = vadd.f32 %v2701, %v2702
    %v2704 = vadd.f32 %v2371, %v2372
    %v2705 = vrot.slane %v2704, 4
    %v2706 = vadd.f32 %v2704, %v2705
    %v2707 = vrot.slane %v2706, 2
    %v2708 = vadd.f32 %v2706, %v2707
    %v2709 = vrot.slane %v2708, 1
    %v2710 = vadd.f32 %v2708, %v2709
    %v2711 = vadd.f32 %v2373, %v2374
    %v2712 = vrot.slane %v2711, 4
    %v2713 = vadd.f32 %v2711, %v2712
    %v2714 = vrot.slane %v2713, 2
    %v2715 = vadd.f32 %v2713, %v2714
    %v2716 = vrot.slane %v2715, 1
    %v2717 = vadd.f32 %v2715, %v2716
    %v2718 = vadd.f32 %v2375, %v2376
    %v2719 = vrot.slane %v2718, 4
    %v2720 = vadd.f32 %v2718, %v2719
    %v2721 = vrot.slane %v2720, 2
    %v2722 = vadd.f32 %v2720, %v2721
    %v2723 = vrot.slane %v2722, 1
    %v2724 = vadd.f32 %v2722, %v2723
    %v2725 = vadd.f32 %v2377, %v2378
    %v2726 = vrot.slane %v2725, 4
    %v2727 = vadd.f32 %v2725, %v2726
    %v2728 = vrot.slane %v2727, 2
    %v2729 = vadd.f32 %v2727, %v2728
    %v2730 = vrot.slane %v2729, 1
    %v2731 = vadd.f32 %v2729, %v2730
    %v2732 = vadd.f32 %v2379, %v2380
    %v2733 = vrot.slane %v2732, 4
    %v2734 = vadd.f32 %v2732, %v2733
    %v2735 = vrot.slane %v2734, 2
    %v2736 = vadd.f32 %v2734, %v2735
    %v2737 = vrot.slane %v2736, 1
    %v2738 = vadd.f32 %v2736, %v2737
    %v2739 = vadd.f32 %v2381, %v2382
    %v2740 = vrot.slane %v2739, 4
    %v2741 = vadd.f32 %v2739, %v2740
    %v2742 = vrot.slane %v2741, 2
    %v2743 = vadd.f32 %v2741, %v2742
    %v2744 = vrot.slane %v2743, 1
    %v2745 = vadd.f32 %v2743, %v2744
    %v2746 = vadd.f32 %v2383, %v2384
    %v2747 = vrot.slane %v2746, 4
    %v2748 = vadd.f32 %v2746, %v2747
    %v2749 = vrot.slane %v2748, 2
    %v2750 = vadd.f32 %v2748, %v2749
    %v2751 = vrot.slane %v2750, 1
    %v2752 = vadd.f32 %v2750, %v2751
    %v2753 = vadd.f32 %v2385, %v2386
    %v2754 = vrot.slane %v2753, 4
    %v2755 = vadd.f32 %v2753, %v2754
    %v2756 = vrot.slane %v2755, 2
    %v2757 = vadd.f32 %v2755, %v2756
    %v2758 = vrot.slane %v2757, 1
    %v2759 = vadd.f32 %v2757, %v2758
    %v2760 = vadd.f32 %v2387, %v2388
    %v2761 = vrot.slane %v2760, 4
    %v2762 = vadd.f32 %v2760, %v2761
    %v2763 = vrot.slane %v2762, 2
    %v2764 = vadd.f32 %v2762, %v2763
    %v2765 = vrot.slane %v2764, 1
    %v2766 = vadd.f32 %v2764, %v2765
    %v2767 = vadd.f32 %v2389, %v2390
    %v2768 = vrot.slane %v2767, 4
    %v2769 = vadd.f32 %v2767, %v2768
    %v2770 = vrot.slane %v2769, 2
    %v2771 = vadd.f32 %v2769, %v2770
    %v2772 = vrot.slane %v2771, 1
    %v2773 = vadd.f32 %v2771, %v2772
    %v2774 = vadd.f32 %v2391, %v2392
    %v2775 = vrot.slane %v2774, 4
    %v2776 = vadd.f32 %v2774, %v2775
    %v2777 = vrot.slane %v2776, 2
    %v2778 = vadd.f32 %v2776, %v2777
    %v2779 = vrot.slane %v2778, 1
    %v2780 = vadd.f32 %v2778, %v2779
    %v2781 = vadd.f32 %v2393, %v2394
    %v2782 = vrot.slane %v2781, 4
    %v2783 = vadd.f32 %v2781, %v2782
    %v2784 = vrot.slane %v2783, 2
    %v2785 = vadd.f32 %v2783, %v2784
    %v2786 = vrot.slane %v2785, 1
    %v2787 = vadd.f32 %v2785, %v2786
    %v2788 = vadd.f32 %v2395, %v2396
    %v2789 = vrot.slane %v2788, 4
    %v2790 = vadd.f32 %v2788, %v2789
    %v2791 = vrot.slane %v2790, 2
    %v2792 = vadd.f32 %v2790, %v2791
    %v2793 = vrot.slane %v2792, 1
    %v2794 = vadd.f32 %v2792, %v2793
    %v2795 = vadd.f32 %v2397, %v2398
    %v2796 = vrot.slane %v2795, 4
    %v2797 = vadd.f32 %v2795, %v2796
    %v2798 = vrot.slane %v2797, 2
    %v2799 = vadd.f32 %v2797, %v2798
    %v2800 = vrot.slane %v2799, 1
    %v2801 = vadd.f32 %v2799, %v2800
    %v2802 = vadd.f32 %v2399, %v2400
    %v2803 = vrot.slane %v2802, 4
    %v2804 = vadd.f32 %v2802, %v2803
    %v2805 = vrot.slane %v2804, 2
    %v2806 = vadd.f32 %v2804, %v2805
    %v2807 = vrot.slane %v2806, 1
    %v2808 = vadd.f32 %v2806, %v2807
    %v2809 = vadd.f32 %v2401, %v2402
    %v2810 = vrot.slane %v2809, 4
    %v2811 = vadd.f32 %v2809, %v2810
    %v2812 = vrot.slane %v2811, 2
    %v2813 = vadd.f32 %v2811, %v2812
    %v2814 = vrot.slane %v2813, 1
    %v2815 = vadd.f32 %v2813, %v2814
    %v2816 = vadd.f32 %v2403, %v2404
    %v2817 = vrot.slane %v2816, 4
    %v2818 = vadd.f32 %v2816, %v2817
    %v2819 = vrot.slane %v2818, 2
    %v2820 = vadd.f32 %v2818, %v2819
    %v2821 = vrot.slane %v2820, 1
    %v2822 = vadd.f32 %v2820, %v2821
    %v2823 = vadd.f32 %v2405, %v2406
    %v2824 = vrot.slane %v2823, 4
    %v2825 = vadd.f32 %v2823, %v2824
    %v2826 = vrot.slane %v2825, 2
    %v2827 = vadd.f32 %v2825, %v2826
    %v2828 = vrot.slane %v2827, 1
    %v2829 = vadd.f32 %v2827, %v2828
    %v2830 = vadd.f32 %v2407, %v2408
    %v2831 = vrot.slane %v2830, 4
    %v2832 = vadd.f32 %v2830, %v2831
    %v2833 = vrot.slane %v2832, 2
    %v2834 = vadd.f32 %v2832, %v2833
    %v2835 = vrot.slane %v2834, 1
    %v2836 = vadd.f32 %v2834, %v2835
    %v2837 = vadd.f32 %v2409, %v2410
    %v2838 = vrot.slane %v2837, 4
    %v2839 = vadd.f32 %v2837, %v2838
    %v2840 = vrot.slane %v2839, 2
    %v2841 = vadd.f32 %v2839, %v2840
    %v2842 = vrot.slane %v2841, 1
    %v2843 = vadd.f32 %v2841, %v2842
    %v2844 = vadd.f32 %v2411, %v2412
    %v2845 = vrot.slane %v2844, 4
    %v2846 = vadd.f32 %v2844, %v2845
    %v2847 = vrot.slane %v2846, 2
    %v2848 = vadd.f32 %v2846, %v2847
    %v2849 = vrot.slane %v2848, 1
    %v2850 = vadd.f32 %v2848, %v2849
    %v2851 = vadd.f32 %v2413, %v2414
    %v2852 = vrot.slane %v2851, 4
    %v2853 = vadd.f32 %v2851, %v2852
    %v2854 = vrot.slane %v2853, 2
    %v2855 = vadd.f32 %v2853, %v2854
    %v2856 = vrot.slane %v2855, 1
    %v2857 = vadd.f32 %v2855, %v2856
    %v2858 = vadd.f32 %v2415, %v2416
    %v2859 = vrot.slane %v2858, 4
    %v2860 = vadd.f32 %v2858, %v2859
    %v2861 = vrot.slane %v2860, 2
    %v2862 = vadd.f32 %v2860, %v2861
    %v2863 = vrot.slane %v2862, 1
    %v2864 = vadd.f32 %v2862, %v2863
    %v2865 = vld [vmem:[%s4] sm:$0xff]
    %v2866 = vld [vmem:[%s4 + $0x8] sm:$0xff]
    %v2867 = vld [vmem:[%s4 + $0x10] sm:$0xff]
    %v2868 = vld [vmem:[%s4 + $0x18] sm:$0xff]
    %v2869 = vld [vmem:[%s4 + $0x20] sm:$0xff]
    %v2870 = vld [vmem:[%s4 + $0x28] sm:$0xff]
    %v2871 = vld [vmem:[%s4 + $0x30] sm:$0xff]
    %v2872 = vld [vmem:[%s4 + $0x38] sm:$0xff]
    %v2873 = vld [vmem:[%s4 + $0x40] sm:$0xff]
    %v2874 = vld [vmem:[%s4 + $0x48] sm:$0xff]
    %v2875 = vld [vmem:[%s4 + $0x50] sm:$0xff]
    %v2876 = vld [vmem:[%s4 + $0x58] sm:$0xff]
    %v2877 = vld [vmem:[%s4 + $0x60] sm:$0xff]
    %v2878 = vld [vmem:[%s4 + $0x68] sm:$0xff]
    %v2879 = vld [vmem:[%s4 + $0x70] sm:$0xff]
    %v2880 = vld [vmem:[%s4 + $0x78] sm:$0xff]
    %v2881 = vld [vmem:[%s4 + $0x80] sm:$0xff]
    %v2882 = vld [vmem:[%s4 + $0x88] sm:$0xff]
    %v2883 = vld [vmem:[%s4 + $0x90] sm:$0xff]
    %v2884 = vld [vmem:[%s4 + $0x98] sm:$0xff]
    %v2885 = vld [vmem:[%s4 + $0xa0] sm:$0xff]
    %v2886 = vld [vmem:[%s4 + $0xa8] sm:$0xff]
    %v2887 = vld [vmem:[%s4 + $0xb0] sm:$0xff]
    %v2888 = vld [vmem:[%s4 + $0xb8] sm:$0xff]
    %v2889 = vld [vmem:[%s4 + $0xc0] sm:$0xff]
    %v2890 = vld [vmem:[%s4 + $0xc8] sm:$0xff]
    %v2891 = vld [vmem:[%s4 + $0xd0] sm:$0xff]
    %v2892 = vld [vmem:[%s4 + $0xd8] sm:$0xff]
    %v2893 = vld [vmem:[%s4 + $0xe0] sm:$0xff]
    %v2894 = vld [vmem:[%s4 + $0xe8] sm:$0xff]
    %v2895 = vld [vmem:[%s4 + $0xf0] sm:$0xff]
    %v2896 = vld [vmem:[%s4 + $0xf8] sm:$0xff]
    %v2897 = vld [vmem:[%s5] sm:$0x3]
    %v2899 = vlaneseq
    %v2900 = vshrl.u32 %v2899, 7
    %v2901 = vsub.s32 0, %v2900
    %v2902 = vrot.slane %v2897, %v2901
    %v2903 = vlaneseq
    %v2904 = vshrl.u32 %v2903, 7
    %v2905 = vsub.s32 1, %v2904
    %v2906 = vrot.slane %v2897, %v2905
    %v2973 = vsel %vm1417, %v2430, %v2423
    %v2974 = vsel %vm1419, %v2437, %v2973
    %v2975 = vsel %vm1421, %v2444, %v2974
    %v2976 = vsel %vm1423, %v2451, %v2975
    %v2977 = vsel %vm1425, %v2458, %v2976
    %v2978 = vsel %vm1427, %v2465, %v2977
    %v2979 = vsel %vm1429, %v2472, %v2978
    %v2980 = vsel %vm1417, %v2486, %v2479
    %v2981 = vsel %vm1419, %v2493, %v2980
    %v2982 = vsel %vm1421, %v2500, %v2981
    %v2983 = vsel %vm1423, %v2507, %v2982
    %v2984 = vsel %vm1425, %v2514, %v2983
    %v2985 = vsel %vm1427, %v2521, %v2984
    %v2986 = vsel %vm1429, %v2528, %v2985
    %v2987 = vsel %vm1417, %v2542, %v2535
    %v2988 = vsel %vm1419, %v2549, %v2987
    %v2989 = vsel %vm1421, %v2556, %v2988
    %v2990 = vsel %vm1423, %v2563, %v2989
    %v2991 = vsel %vm1425, %v2570, %v2990
    %v2992 = vsel %vm1427, %v2577, %v2991
    %v2993 = vsel %vm1429, %v2584, %v2992
    %v2994 = vsel %vm1417, %v2598, %v2591
    %v2995 = vsel %vm1419, %v2605, %v2994
    %v2996 = vsel %vm1421, %v2612, %v2995
    %v2997 = vsel %vm1423, %v2619, %v2996
    %v2998 = vsel %vm1425, %v2626, %v2997
    %v2999 = vsel %vm1427, %v2633, %v2998
    %v3000 = vsel %vm1429, %v2640, %v2999
    %v3001 = vsel %vm1417, %v2654, %v2647
    %v3002 = vsel %vm1419, %v2661, %v3001
    %v3003 = vsel %vm1421, %v2668, %v3002
    %v3004 = vsel %vm1423, %v2675, %v3003
    %v3005 = vsel %vm1425, %v2682, %v3004
    %v3006 = vsel %vm1427, %v2689, %v3005
    %v3007 = vsel %vm1429, %v2696, %v3006
    %v3008 = vsel %vm1417, %v2710, %v2703
    %v3009 = vsel %vm1419, %v2717, %v3008
    %v3010 = vsel %vm1421, %v2724, %v3009
    %v3011 = vsel %vm1423, %v2731, %v3010
    %v3012 = vsel %vm1425, %v2738, %v3011
    %v3013 = vsel %vm1427, %v2745, %v3012
    %v3014 = vsel %vm1429, %v2752, %v3013
    %v3015 = vsel %vm1417, %v2766, %v2759
    %v3016 = vsel %vm1419, %v2773, %v3015
    %v3017 = vsel %vm1421, %v2780, %v3016
    %v3018 = vsel %vm1423, %v2787, %v3017
    %v3019 = vsel %vm1425, %v2794, %v3018
    %v3020 = vsel %vm1427, %v2801, %v3019
    %v3021 = vsel %vm1429, %v2808, %v3020
    %v3022 = vsel %vm1417, %v2822, %v2815
    %v3023 = vsel %vm1419, %v2829, %v3022
    %v3024 = vsel %vm1421, %v2836, %v3023
    %v3025 = vsel %vm1423, %v2843, %v3024
    %v3026 = vsel %vm1425, %v2850, %v3025
    %v3027 = vsel %vm1427, %v2857, %v3026
    %v3028 = vsel %vm1429, %v2864, %v3027
    %3037 = vmatprep.subr.mxu0 %v2866
    %3038 = vmatpush1.msra.mxu0 %v2865
    %3039 = vmatprep.subr.mxu0 %v2868
    %3040 = vmatpush1.msra.mxu0 %v2867
    %3041 = vmatprep.subr.mxu0 %v2870
    %3042 = vmatpush1.msra.mxu0 %v2869
    %3043 = vmatprep.subr.mxu0 %v2872
    %3044 = vmatpush1.msra.mxu0 %v2871
    %3045 = vmatprep.subr.mxu0 %v2874
    %3046 = vmatpush1.msra.mxu0 %v2873
    %3047 = vmatprep.subr.mxu0 %v2876
    %3048 = vmatpush1.msra.mxu0 %v2875
    %3049 = vmatprep.subr.mxu0 %v2878
    %3050 = vmatpush1.msra.mxu0 %v2877
    %3051 = vmatprep.subr.mxu0 %v2880
    %3052 = vmatpush1.msra.mxu0 %v2879
    %3053 = vmatprep.subr.mxu0 %v2882
    %3054 = vmatpush1.msra.mxu0 %v2881
    %3055 = vmatprep.subr.mxu0 %v2884
    %3056 = vmatpush1.msra.mxu0 %v2883
    %3057 = vmatprep.subr.mxu0 %v2886
    %3058 = vmatpush1.msra.mxu0 %v2885
    %3059 = vmatprep.subr.mxu0 %v2888
    %3060 = vmatpush1.msra.mxu0 %v2887
    %3061 = vmatprep.subr.mxu0 %v2890
    %3062 = vmatpush1.msra.mxu0 %v2889
    %3063 = vmatprep.subr.mxu0 %v2892
    %3064 = vmatpush1.msra.mxu0 %v2891
    %3065 = vmatprep.subr.mxu0 %v2894
    %3066 = vmatpush1.msra.mxu0 %v2893
    %3067 = vmatprep.subr.mxu0 %v2896
    %3068 = vmatpush1.msra.mxu0 %v2895
    %3069 = vmatprep.subr.mxu0 0.0
    %3070 = vmatpush1.msra.mxu0 0.0
    %3071 = vmatprep.subr.mxu0 0.0
    %3072 = vmatpush1.msra.mxu0 0.0
    %3073 = vmatprep.subr.mxu0 0.0
    %3074 = vmatpush1.msra.mxu0 0.0
    %3075 = vmatprep.subr.mxu0 0.0
    %3076 = vmatpush1.msra.mxu0 0.0
    %3077 = vmatprep.subr.mxu0 0.0
    %3078 = vmatpush1.msra.mxu0 0.0
    %3079 = vmatprep.subr.mxu0 0.0
    %3080 = vmatpush1.msra.mxu0 0.0
    %3081 = vmatprep.subr.mxu0 0.0
    %3082 = vmatpush1.msra.mxu0 0.0
    %3083 = vmatprep.subr.mxu0 0.0
    %3084 = vmatpush1.msra.mxu0 0.0
    %3085 = vmatprep.subr.mxu0 0.0
    %3086 = vmatpush1.msra.mxu0 0.0
    %3087 = vmatprep.subr.mxu0 0.0
    %3088 = vmatpush1.msra.mxu0 0.0
    %3089 = vmatprep.subr.mxu0 0.0
    %3090 = vmatpush1.msra.mxu0 0.0
    %3091 = vmatprep.subr.mxu0 0.0
    %3092 = vmatpush1.msra.mxu0 0.0
    %3093 = vmatprep.subr.mxu0 0.0
    %3094 = vmatpush1.msra.mxu0 0.0
    %3095 = vmatprep.subr.mxu0 0.0
    %3096 = vmatpush1.msra.mxu0 0.0
    %3097 = vmatprep.subr.mxu0 0.0
    %3098 = vmatpush1.msra.mxu0 0.0
    %3099 = vmatprep.subr.mxu0 0.0
    %3100 = vmatpush1.msra.mxu0 0.0
    %3101 = vmatprep.mubr.f32.mxu0 0.0
    %3102 = vmatmul.mubr.f32.gmra.mrb[0].mxu0 %v2979
    %v3103 = vpop.f32.mrb[0].mxu0
    %v3104 = vadd.f32 %v2902, %v3103
    %v3105 = vpop.f32.mrb[0].mxu0
    %v3106 = vadd.f32 %v2906, %v3105
    %3107 = vmatprep.mubr.f32.mxu0 0.0
    %3108 = vmatmul.mubr.f32.gmra.mrb[0].mxu0 %v2986
    %v3109 = vpop.f32.mrb[0].mxu0
    %v3110 = vadd.f32 %v2902, %v3109
    %v3111 = vpop.f32.mrb[0].mxu0
    %v3112 = vadd.f32 %v2906, %v3111
    %3113 = vmatprep.mubr.f32.mxu0 0.0
    %3114 = vmatmul.mubr.f32.gmra.mrb[0].mxu0 %v2993
    %v3115 = vpop.f32.mrb[0].mxu0
    %v3116 = vadd.f32 %v2902, %v3115
    %v3117 = vpop.f32.mrb[0].mxu0
    %v3118 = vadd.f32 %v2906, %v3117
    %3119 = vmatprep.mubr.f32.mxu0 0.0
    %3120 = vmatmul.mubr.f32.gmra.mrb[0].mxu0 %v3000
    %v3121 = vpop.f32.mrb[0].mxu0
    %v3122 = vadd.f32 %v2902, %v3121
    %v3123 = vpop.f32.mrb[0].mxu0
    %v3124 = vadd.f32 %v2906, %v3123
    %3125 = vmatprep.mubr.f32.mxu0 0.0
    %3126 = vmatmul.mubr.f32.gmra.mrb[0].mxu0 %v3007
    %v3127 = vpop.f32.mrb[0].mxu0
    %v3128 = vadd.f32 %v2902, %v3127
    %v3129 = vpop.f32.mrb[0].mxu0
    %v3130 = vadd.f32 %v2906, %v3129
    %3131 = vmatprep.mubr.f32.mxu0 0.0
    %3132 = vmatmul.mubr.f32.gmra.mrb[0].mxu0 %v3014
    %v3133 = vpop.f32.mrb[0].mxu0
    %v3134 = vadd.f32 %v2902, %v3133
    %v3135 = vpop.f32.mrb[0].mxu0
    %v3136 = vadd.f32 %v2906, %v3135
    %3137 = vmatprep.mubr.f32.mxu0 0.0
    %3138 = vmatmul.mubr.f32.gmra.mrb[0].mxu0 %v3021
    %v3139 = vpop.f32.mrb[0].mxu0
    %v3140 = vadd.f32 %v2902, %v3139
    %v3141 = vpop.f32.mrb[0].mxu0
    %v3142 = vadd.f32 %v2906, %v3141
    %3143 = vmatprep.mubr.f32.mxu0 0.0
    %3144 = vmatmul.mubr.f32.gmra.mrb[0].mxu0 %v3028
    %v3145 = vpop.f32.mrb[0].mxu0
    %v3146 = vadd.f32 %v2902, %v3145
    %v3147 = vpop.f32.mrb[0].mxu0
    %v3148 = vadd.f32 %v2906, %v3147
    %3149 = vdwg.mxu0
    %v3150 = vmul.f32 %v3104, 0.5
    %v3151 = vmul.f32 %v3106, 0.5
    %v3152 = vmul.f32 %v3110, 0.5
    %v3153 = vmul.f32 %v3112, 0.5
    %v3154 = vmul.f32 %v3116, 0.5
    %v3155 = vmul.f32 %v3118, 0.5
    %v3156 = vmul.f32 %v3122, 0.5
    %v3157 = vmul.f32 %v3124, 0.5
    %v3158 = vmul.f32 %v3128, 0.5
    %v3159 = vmul.f32 %v3130, 0.5
    %v3160 = vmul.f32 %v3134, 0.5
    %v3161 = vmul.f32 %v3136, 0.5
    %v3162 = vmul.f32 %v3140, 0.5
    %v3163 = vmul.f32 %v3142, 0.5
    %v3164 = vmul.f32 %v3146, 0.5
    %v3165 = vmul.f32 %v3148, 0.5
    %v3166 = vmul.f32 %v3104, 0.70710677
    %v3167 = vmul.f32 %v3106, 0.70710677
    %v3168 = vmul.f32 %v3110, 0.70710677
    %v3169 = vmul.f32 %v3112, 0.70710677
    %v3170 = vmul.f32 %v3116, 0.70710677
    %v3171 = vmul.f32 %v3118, 0.70710677
    %v3172 = vmul.f32 %v3122, 0.70710677
    %v3173 = vmul.f32 %v3124, 0.70710677
    %v3174 = vmul.f32 %v3128, 0.70710677
    %v3175 = vmul.f32 %v3130, 0.70710677
    %v3176 = vmul.f32 %v3134, 0.70710677
    %v3177 = vmul.f32 %v3136, 0.70710677
    %v3178 = vmul.f32 %v3140, 0.70710677
    %v3179 = vmul.f32 %v3142, 0.70710677
    %v3180 = vmul.f32 %v3146, 0.70710677
    %v3181 = vmul.f32 %v3148, 0.70710677
    %vm3182 = vcmp.ge.f32.partialorder %v3166, 0.0
    %vm3183 = vcmp.ge.f32.partialorder %v3167, 0.0
    %vm3184 = vcmp.ge.f32.partialorder %v3168, 0.0
    %vm3185 = vcmp.ge.f32.partialorder %v3169, 0.0
    %vm3186 = vcmp.ge.f32.partialorder %v3170, 0.0
    %vm3187 = vcmp.ge.f32.partialorder %v3171, 0.0
    %vm3188 = vcmp.ge.f32.partialorder %v3172, 0.0
    %vm3189 = vcmp.ge.f32.partialorder %v3173, 0.0
    %vm3190 = vcmp.ge.f32.partialorder %v3174, 0.0
    %vm3191 = vcmp.ge.f32.partialorder %v3175, 0.0
    %vm3192 = vcmp.ge.f32.partialorder %v3176, 0.0
    %vm3193 = vcmp.ge.f32.partialorder %v3177, 0.0
    %vm3194 = vcmp.ge.f32.partialorder %v3178, 0.0
    %vm3195 = vcmp.ge.f32.partialorder %v3179, 0.0
    %vm3196 = vcmp.ge.f32.partialorder %v3180, 0.0
    %vm3197 = vcmp.ge.f32.partialorder %v3181, 0.0
    %v3198 = vsel %vm3182, 1.0, -1.0
    %v3199 = vsel %vm3183, 1.0, -1.0
    %v3200 = vsel %vm3184, 1.0, -1.0
    %v3201 = vsel %vm3185, 1.0, -1.0
    %v3202 = vsel %vm3186, 1.0, -1.0
    %v3203 = vsel %vm3187, 1.0, -1.0
    %v3204 = vsel %vm3188, 1.0, -1.0
    %v3205 = vsel %vm3189, 1.0, -1.0
    %v3206 = vsel %vm3190, 1.0, -1.0
    %v3207 = vsel %vm3191, 1.0, -1.0
    %v3208 = vsel %vm3192, 1.0, -1.0
    %v3209 = vsel %vm3193, 1.0, -1.0
    %v3210 = vsel %vm3194, 1.0, -1.0
    %v3211 = vsel %vm3195, 1.0, -1.0
    %v3212 = vsel %vm3196, 1.0, -1.0
    %v3213 = vsel %vm3197, 1.0, -1.0
    %v3214 = vand.u32 2147483647, %v3166
    %v3215 = vand.u32 2147483647, %v3167
    %v3216 = vand.u32 2147483647, %v3168
    %v3217 = vand.u32 2147483647, %v3169
    %v3218 = vand.u32 2147483647, %v3170
    %v3219 = vand.u32 2147483647, %v3171
    %v3220 = vand.u32 2147483647, %v3172
    %v3221 = vand.u32 2147483647, %v3173
    %v3222 = vand.u32 2147483647, %v3174
    %v3223 = vand.u32 2147483647, %v3175
    %v3224 = vand.u32 2147483647, %v3176
    %v3225 = vand.u32 2147483647, %v3177
    %v3226 = vand.u32 2147483647, %v3178
    %v3227 = vand.u32 2147483647, %v3179
    %v3228 = vand.u32 2147483647, %v3180
    %v3229 = vand.u32 2147483647, %v3181
    %v3230 = vmul.f32 %v3214, 0.3275911
    %v3231 = vmul.f32 %v3215, 0.3275911
    %v3232 = vmul.f32 %v3216, 0.3275911
    %v3233 = vmul.f32 %v3217, 0.3275911
    %v3234 = vmul.f32 %v3218, 0.3275911
    %v3235 = vmul.f32 %v3219, 0.3275911
    %v3236 = vmul.f32 %v3220, 0.3275911
    %v3237 = vmul.f32 %v3221, 0.3275911
    %v3238 = vmul.f32 %v3222, 0.3275911
    %v3239 = vmul.f32 %v3223, 0.3275911
    %v3240 = vmul.f32 %v3224, 0.3275911
    %v3241 = vmul.f32 %v3225, 0.3275911
    %v3242 = vmul.f32 %v3226, 0.3275911
    %v3243 = vmul.f32 %v3227, 0.3275911
    %v3244 = vmul.f32 %v3228, 0.3275911
    %v3245 = vmul.f32 %v3229, 0.3275911
    %v3246 = vadd.f32 %v3230, 1.0
    %v3247 = vadd.f32 %v3231, 1.0
    %v3248 = vadd.f32 %v3232, 1.0
    %v3249 = vadd.f32 %v3233, 1.0
    %v3250 = vadd.f32 %v3234, 1.0
    %v3251 = vadd.f32 %v3235, 1.0
    %v3252 = vadd.f32 %v3236, 1.0
    %v3253 = vadd.f32 %v3237, 1.0
    %v3254 = vadd.f32 %v3238, 1.0
    %v3255 = vadd.f32 %v3239, 1.0
    %v3256 = vadd.f32 %v3240, 1.0
    %v3257 = vadd.f32 %v3241, 1.0
    %v3258 = vadd.f32 %v3242, 1.0
    %v3259 = vadd.f32 %v3243, 1.0
    %v3260 = vadd.f32 %v3244, 1.0
    %v3261 = vadd.f32 %v3245, 1.0
    %v3262 = vrcp.pop %v3246
    %v3263 = vmul.f32 1.0, %v3262
    %v3264 = vrcp.pop %v3247
    %v3265 = vmul.f32 1.0, %v3264
    %v3266 = vrcp.pop %v3248
    %v3267 = vmul.f32 1.0, %v3266
    %v3268 = vrcp.pop %v3249
    %v3269 = vmul.f32 1.0, %v3268
    %v3270 = vrcp.pop %v3250
    %v3271 = vmul.f32 1.0, %v3270
    %v3272 = vrcp.pop %v3251
    %v3273 = vmul.f32 1.0, %v3272
    %v3274 = vrcp.pop %v3252
    %v3275 = vmul.f32 1.0, %v3274
    %v3276 = vrcp.pop %v3253
    %v3277 = vmul.f32 1.0, %v3276
    %v3278 = vrcp.pop %v3254
    %v3279 = vmul.f32 1.0, %v3278
    %v3280 = vrcp.pop %v3255
    %v3281 = vmul.f32 1.0, %v3280
    %v3282 = vrcp.pop %v3256
    %v3283 = vmul.f32 1.0, %v3282
    %v3284 = vrcp.pop %v3257
    %v3285 = vmul.f32 1.0, %v3284
    %v3286 = vrcp.pop %v3258
    %v3287 = vmul.f32 1.0, %v3286
    %v3288 = vrcp.pop %v3259
    %v3289 = vmul.f32 1.0, %v3288
    %v3290 = vrcp.pop %v3260
    %v3291 = vmul.f32 1.0, %v3290
    %v3292 = vrcp.pop %v3261
    %v3293 = vmul.f32 1.0, %v3292
    %v3294 = vmul.f32 %v3263, 1.0614054
    %v3295 = vmul.f32 %v3265, 1.0614054
    %v3296 = vmul.f32 %v3267, 1.0614054
    %v3297 = vmul.f32 %v3269, 1.0614054
    %v3298 = vmul.f32 %v3271, 1.0614054
    %v3299 = vmul.f32 %v3273, 1.0614054
    %v3300 = vmul.f32 %v3275, 1.0614054
    %v3301 = vmul.f32 %v3277, 1.0614054
    %v3302 = vmul.f32 %v3279, 1.0614054
    %v3303 = vmul.f32 %v3281, 1.0614054
    %v3304 = vmul.f32 %v3283, 1.0614054
    %v3305 = vmul.f32 %v3285, 1.0614054
    %v3306 = vmul.f32 %v3287, 1.0614054
    %v3307 = vmul.f32 %v3289, 1.0614054
    %v3308 = vmul.f32 %v3291, 1.0614054
    %v3309 = vmul.f32 %v3293, 1.0614054
    %v3310 = vadd.f32 %v3294, -1.4531521
    %v3311 = vadd.f32 %v3295, -1.4531521
    %v3312 = vadd.f32 %v3296, -1.4531521
    %v3313 = vadd.f32 %v3297, -1.4531521
    %v3314 = vadd.f32 %v3298, -1.4531521
    %v3315 = vadd.f32 %v3299, -1.4531521
    %v3316 = vadd.f32 %v3300, -1.4531521
    %v3317 = vadd.f32 %v3301, -1.4531521
    %v3318 = vadd.f32 %v3302, -1.4531521
    %v3319 = vadd.f32 %v3303, -1.4531521
    %v3320 = vadd.f32 %v3304, -1.4531521
    %v3321 = vadd.f32 %v3305, -1.4531521
    %v3322 = vadd.f32 %v3306, -1.4531521
    %v3323 = vadd.f32 %v3307, -1.4531521
    %v3324 = vadd.f32 %v3308, -1.4531521
    %v3325 = vadd.f32 %v3309, -1.4531521
    %v3326 = vmul.f32 %v3310, %v3263
    %v3327 = vmul.f32 %v3311, %v3265
    %v3328 = vmul.f32 %v3312, %v3267
    %v3329 = vmul.f32 %v3313, %v3269
    %v3330 = vmul.f32 %v3314, %v3271
    %v3331 = vmul.f32 %v3315, %v3273
    %v3332 = vmul.f32 %v3316, %v3275
    %v3333 = vmul.f32 %v3317, %v3277
    %v3334 = vmul.f32 %v3318, %v3279
    %v3335 = vmul.f32 %v3319, %v3281
    %v3336 = vmul.f32 %v3320, %v3283
    %v3337 = vmul.f32 %v3321, %v3285
    %v3338 = vmul.f32 %v3322, %v3287
    %v3339 = vmul.f32 %v3323, %v3289
    %v3340 = vmul.f32 %v3324, %v3291
    %v3341 = vmul.f32 %v3325, %v3293
    %v3342 = vadd.f32 %v3326, 1.4214138
    %v3343 = vadd.f32 %v3327, 1.4214138
    %v3344 = vadd.f32 %v3328, 1.4214138
    %v3345 = vadd.f32 %v3329, 1.4214138
    %v3346 = vadd.f32 %v3330, 1.4214138
    %v3347 = vadd.f32 %v3331, 1.4214138
    %v3348 = vadd.f32 %v3332, 1.4214138
    %v3349 = vadd.f32 %v3333, 1.4214138
    %v3350 = vadd.f32 %v3334, 1.4214138
    %v3351 = vadd.f32 %v3335, 1.4214138
    %v3352 = vadd.f32 %v3336, 1.4214138
    %v3353 = vadd.f32 %v3337, 1.4214138
    %v3354 = vadd.f32 %v3338, 1.4214138
    %v3355 = vadd.f32 %v3339, 1.4214138
    %v3356 = vadd.f32 %v3340, 1.4214138
    %v3357 = vadd.f32 %v3341, 1.4214138
    %v3358 = vmul.f32 %v3342, %v3263
    %v3359 = vmul.f32 %v3343, %v3265
    %v3360 = vmul.f32 %v3344, %v3267
    %v3361 = vmul.f32 %v3345, %v3269
    %v3362 = vmul.f32 %v3346, %v3271
    %v3363 = vmul.f32 %v3347, %v3273
    %v3364 = vmul.f32 %v3348, %v3275
    %v3365 = vmul.f32 %v3349, %v3277
    %v3366 = vmul.f32 %v3350, %v3279
    %v3367 = vmul.f32 %v3351, %v3281
    %v3368 = vmul.f32 %v3352, %v3283
    %v3369 = vmul.f32 %v3353, %v3285
    %v3370 = vmul.f32 %v3354, %v3287
    %v3371 = vmul.f32 %v3355, %v3289
    %v3372 = vmul.f32 %v3356, %v3291
    %v3373 = vmul.f32 %v3357, %v3293
    %v3374 = vadd.f32 %v3358, -0.28449672
    %v3375 = vadd.f32 %v3359, -0.28449672
    %v3376 = vadd.f32 %v3360, -0.28449672
    %v3377 = vadd.f32 %v3361, -0.28449672
    %v3378 = vadd.f32 %v3362, -0.28449672
    %v3379 = vadd.f32 %v3363, -0.28449672
    %v3380 = vadd.f32 %v3364, -0.28449672
    %v3381 = vadd.f32 %v3365, -0.28449672
    %v3382 = vadd.f32 %v3366, -0.28449672
    %v3383 = vadd.f32 %v3367, -0.28449672
    %v3384 = vadd.f32 %v3368, -0.28449672
    %v3385 = vadd.f32 %v3369, -0.28449672
    %v3386 = vadd.f32 %v3370, -0.28449672
    %v3387 = vadd.f32 %v3371, -0.28449672
    %v3388 = vadd.f32 %v3372, -0.28449672
    %v3389 = vadd.f32 %v3373, -0.28449672
    %v3390 = vmul.f32 %v3374, %v3263
    %v3391 = vmul.f32 %v3375, %v3265
    %v3392 = vmul.f32 %v3376, %v3267
    %v3393 = vmul.f32 %v3377, %v3269
    %v3394 = vmul.f32 %v3378, %v3271
    %v3395 = vmul.f32 %v3379, %v3273
    %v3396 = vmul.f32 %v3380, %v3275
    %v3397 = vmul.f32 %v3381, %v3277
    %v3398 = vmul.f32 %v3382, %v3279
    %v3399 = vmul.f32 %v3383, %v3281
    %v3400 = vmul.f32 %v3384, %v3283
    %v3401 = vmul.f32 %v3385, %v3285
    %v3402 = vmul.f32 %v3386, %v3287
    %v3403 = vmul.f32 %v3387, %v3289
    %v3404 = vmul.f32 %v3388, %v3291
    %v3405 = vmul.f32 %v3389, %v3293
    %v3406 = vadd.f32 %v3390, 0.2548296
    %v3407 = vadd.f32 %v3391, 0.2548296
    %v3408 = vadd.f32 %v3392, 0.2548296
    %v3409 = vadd.f32 %v3393, 0.2548296
    %v3410 = vadd.f32 %v3394, 0.2548296
    %v3411 = vadd.f32 %v3395, 0.2548296
    %v3412 = vadd.f32 %v3396, 0.2548296
    %v3413 = vadd.f32 %v3397, 0.2548296
    %v3414 = vadd.f32 %v3398, 0.2548296
    %v3415 = vadd.f32 %v3399, 0.2548296
    %v3416 = vadd.f32 %v3400, 0.2548296
    %v3417 = vadd.f32 %v3401, 0.2548296
    %v3418 = vadd.f32 %v3402, 0.2548296
    %v3419 = vadd.f32 %v3403, 0.2548296
    %v3420 = vadd.f32 %v3404, 0.2548296
    %v3421 = vadd.f32 %v3405, 0.2548296
    %v3422 = vmul.f32 %v3406, %v3263
    %v3423 = vmul.f32 %v3407, %v3265
    %v3424 = vmul.f32 %v3408, %v3267
    %v3425 = vmul.f32 %v3409, %v3269
    %v3426 = vmul.f32 %v3410, %v3271
    %v3427 = vmul.f32 %v3411, %v3273
    %v3428 = vmul.f32 %v3412, %v3275
    %v3429 = vmul.f32 %v3413, %v3277
    %v3430 = vmul.f32 %v3414, %v3279
    %v3431 = vmul.f32 %v3415, %v3281
    %v3432 = vmul.f32 %v3416, %v3283
    %v3433 = vmul.f32 %v3417, %v3285
    %v3434 = vmul.f32 %v3418, %v3287
    %v3435 = vmul.f32 %v3419, %v3289
    %v3436 = vmul.f32 %v3420, %v3291
    %v3437 = vmul.f32 %v3421, %v3293
    %v3438 = vsub.f32 0.0, %v3214
    %v3439 = vsub.f32 0.0, %v3215
    %v3440 = vsub.f32 0.0, %v3216
    %v3441 = vsub.f32 0.0, %v3217
    %v3442 = vsub.f32 0.0, %v3218
    %v3443 = vsub.f32 0.0, %v3219
    %v3444 = vsub.f32 0.0, %v3220
    %v3445 = vsub.f32 0.0, %v3221
    %v3446 = vsub.f32 0.0, %v3222
    %v3447 = vsub.f32 0.0, %v3223
    %v3448 = vsub.f32 0.0, %v3224
    %v3449 = vsub.f32 0.0, %v3225
    %v3450 = vsub.f32 0.0, %v3226
    %v3451 = vsub.f32 0.0, %v3227
    %v3452 = vsub.f32 0.0, %v3228
    %v3453 = vsub.f32 0.0, %v3229
    %v3454 = vmul.f32 %v3438, %v3214
    %v3455 = vmul.f32 %v3439, %v3215
    %v3456 = vmul.f32 %v3440, %v3216
    %v3457 = vmul.f32 %v3441, %v3217
    %v3458 = vmul.f32 %v3442, %v3218
    %v3459 = vmul.f32 %v3443, %v3219
    %v3460 = vmul.f32 %v3444, %v3220
    %v3461 = vmul.f32 %v3445, %v3221
    %v3462 = vmul.f32 %v3446, %v3222
    %v3463 = vmul.f32 %v3447, %v3223
    %v3464 = vmul.f32 %v3448, %v3224
    %v3465 = vmul.f32 %v3449, %v3225
    %v3466 = vmul.f32 %v3450, %v3226
    %v3467 = vmul.f32 %v3451, %v3227
    %v3468 = vmul.f32 %v3452, %v3228
    %v3469 = vmul.f32 %v3453, %v3229
    %v3470 = vmul.f32 %v3454, 1.442695
    %v3471 = vpow.pop %v3470
    %v3472 = vmul.f32 %v3455, 1.442695
    %v3473 = vpow.pop %v3472
    %v3474 = vmul.f32 %v3456, 1.442695
    %v3475 = vpow.pop %v3474
    %v3476 = vmul.f32 %v3457, 1.442695
    %v3477 = vpow.pop %v3476
    %v3478 = vmul.f32 %v3458, 1.442695
    %v3479 = vpow.pop %v3478
    %v3480 = vmul.f32 %v3459, 1.442695
    %v3481 = vpow.pop %v3480
    %v3482 = vmul.f32 %v3460, 1.442695
    %v3483 = vpow.pop %v3482
    %v3484 = vmul.f32 %v3461, 1.442695
    %v3485 = vpow.pop %v3484
    %v3486 = vmul.f32 %v3462, 1.442695
    %v3487 = vpow.pop %v3486
    %v3488 = vmul.f32 %v3463, 1.442695
    %v3489 = vpow.pop %v3488
    %v3490 = vmul.f32 %v3464, 1.442695
    %v3491 = vpow.pop %v3490
    %v3492 = vmul.f32 %v3465, 1.442695
    %v3493 = vpow.pop %v3492
    %v3494 = vmul.f32 %v3466, 1.442695
    %v3495 = vpow.pop %v3494
    %v3496 = vmul.f32 %v3467, 1.442695
    %v3497 = vpow.pop %v3496
    %v3498 = vmul.f32 %v3468, 1.442695
    %v3499 = vpow.pop %v3498
    %v3500 = vmul.f32 %v3469, 1.442695
    %v3501 = vpow.pop %v3500
    %v3502 = vmul.f32 %v3422, %v3471
    %v3503 = vmul.f32 %v3423, %v3473
    %v3504 = vmul.f32 %v3424, %v3475
    %v3505 = vmul.f32 %v3425, %v3477
    %v3506 = vmul.f32 %v3426, %v3479
    %v3507 = vmul.f32 %v3427, %v3481
    %v3508 = vmul.f32 %v3428, %v3483
    %v3509 = vmul.f32 %v3429, %v3485
    %v3510 = vmul.f32 %v3430, %v3487
    %v3511 = vmul.f32 %v3431, %v3489
    %v3512 = vmul.f32 %v3432, %v3491
    %v3513 = vmul.f32 %v3433, %v3493
    %v3514 = vmul.f32 %v3434, %v3495
    %v3515 = vmul.f32 %v3435, %v3497
    %v3516 = vmul.f32 %v3436, %v3499
    %v3517 = vmul.f32 %v3437, %v3501
    %v3518 = vsub.f32 1.0, %v3502
    %v3519 = vsub.f32 1.0, %v3503
    %v3520 = vsub.f32 1.0, %v3504
    %v3521 = vsub.f32 1.0, %v3505
    %v3522 = vsub.f32 1.0, %v3506
    %v3523 = vsub.f32 1.0, %v3507
    %v3524 = vsub.f32 1.0, %v3508
    %v3525 = vsub.f32 1.0, %v3509
    %v3526 = vsub.f32 1.0, %v3510
    %v3527 = vsub.f32 1.0, %v3511
    %v3528 = vsub.f32 1.0, %v3512
    %v3529 = vsub.f32 1.0, %v3513
    %v3530 = vsub.f32 1.0, %v3514
    %v3531 = vsub.f32 1.0, %v3515
    %v3532 = vsub.f32 1.0, %v3516
    %v3533 = vsub.f32 1.0, %v3517
    %v3534 = vmul.f32 %v3198, %v3518
    %v3535 = vmul.f32 %v3199, %v3519
    %v3536 = vmul.f32 %v3200, %v3520
    %v3537 = vmul.f32 %v3201, %v3521
    %v3538 = vmul.f32 %v3202, %v3522
    %v3539 = vmul.f32 %v3203, %v3523
    %v3540 = vmul.f32 %v3204, %v3524
    %v3541 = vmul.f32 %v3205, %v3525
    %v3542 = vmul.f32 %v3206, %v3526
    %v3543 = vmul.f32 %v3207, %v3527
    %v3544 = vmul.f32 %v3208, %v3528
    %v3545 = vmul.f32 %v3209, %v3529
    %v3546 = vmul.f32 %v3210, %v3530
    %v3547 = vmul.f32 %v3211, %v3531
    %v3548 = vmul.f32 %v3212, %v3532
    %v3549 = vmul.f32 %v3213, %v3533
    %v3550 = vadd.f32 %v3534, 1.0
    %v3551 = vadd.f32 %v3535, 1.0
    %v3552 = vadd.f32 %v3536, 1.0
    %v3553 = vadd.f32 %v3537, 1.0
    %v3554 = vadd.f32 %v3538, 1.0
    %v3555 = vadd.f32 %v3539, 1.0
    %v3556 = vadd.f32 %v3540, 1.0
    %v3557 = vadd.f32 %v3541, 1.0
    %v3558 = vadd.f32 %v3542, 1.0
    %v3559 = vadd.f32 %v3543, 1.0
    %v3560 = vadd.f32 %v3544, 1.0
    %v3561 = vadd.f32 %v3545, 1.0
    %v3562 = vadd.f32 %v3546, 1.0
    %v3563 = vadd.f32 %v3547, 1.0
    %v3564 = vadd.f32 %v3548, 1.0
    %v3565 = vadd.f32 %v3549, 1.0
    %v3566 = vmul.f32 %v3150, %v3550
    %v3567 = vmul.f32 %v3151, %v3551
    %v3568 = vmul.f32 %v3152, %v3552
    %v3569 = vmul.f32 %v3153, %v3553
    %v3570 = vmul.f32 %v3154, %v3554
    %v3571 = vmul.f32 %v3155, %v3555
    %v3572 = vmul.f32 %v3156, %v3556
    %v3573 = vmul.f32 %v3157, %v3557
    %v3574 = vmul.f32 %v3158, %v3558
    %v3575 = vmul.f32 %v3159, %v3559
    %v3576 = vmul.f32 %v3160, %v3560
    %v3577 = vmul.f32 %v3161, %v3561
    %v3578 = vmul.f32 %v3162, %v3562
    %v3579 = vmul.f32 %v3163, %v3563
    %v3580 = vmul.f32 %v3164, %v3564
    %v3581 = vmul.f32 %v3165, %v3565
    %v3582 = vld [vmem:[%s6] sm:$0xff]
    %v3583 = vld [vmem:[%s6 + $0x8] sm:$0xff]
    %v3584 = vld [vmem:[%s6 + $0x10] sm:$0xff]
    %v3585 = vld [vmem:[%s6 + $0x18] sm:$0xff]
    %v3586 = vld [vmem:[%s6 + $0x20] sm:$0xff]
    %v3587 = vld [vmem:[%s6 + $0x28] sm:$0xff]
    %v3588 = vld [vmem:[%s6 + $0x30] sm:$0xff]
    %v3589 = vld [vmem:[%s6 + $0x38] sm:$0xff]
    %v3590 = vld [vmem:[%s6 + $0x40] sm:$0xff]
    %v3591 = vld [vmem:[%s6 + $0x48] sm:$0xff]
    %v3592 = vld [vmem:[%s6 + $0x50] sm:$0xff]
    %v3593 = vld [vmem:[%s6 + $0x58] sm:$0xff]
    %v3594 = vld [vmem:[%s6 + $0x60] sm:$0xff]
    %v3595 = vld [vmem:[%s6 + $0x68] sm:$0xff]
    %v3596 = vld [vmem:[%s6 + $0x70] sm:$0xff]
    %v3597 = vld [vmem:[%s6 + $0x78] sm:$0xff]
    %v3598 = vld [vmem:[%s6 + $0x80] sm:$0xff]
    %v3599 = vld [vmem:[%s6 + $0x88] sm:$0xff]
    %v3600 = vld [vmem:[%s6 + $0x90] sm:$0xff]
    %v3601 = vld [vmem:[%s6 + $0x98] sm:$0xff]
    %v3602 = vld [vmem:[%s6 + $0xa0] sm:$0xff]
    %v3603 = vld [vmem:[%s6 + $0xa8] sm:$0xff]
    %v3604 = vld [vmem:[%s6 + $0xb0] sm:$0xff]
    %v3605 = vld [vmem:[%s6 + $0xb8] sm:$0xff]
    %v3606 = vld [vmem:[%s6 + $0xc0] sm:$0xff]
    %v3607 = vld [vmem:[%s6 + $0xc8] sm:$0xff]
    %v3608 = vld [vmem:[%s6 + $0xd0] sm:$0xff]
    %v3609 = vld [vmem:[%s6 + $0xd8] sm:$0xff]
    %v3610 = vld [vmem:[%s6 + $0xe0] sm:$0xff]
    %v3611 = vld [vmem:[%s6 + $0xe8] sm:$0xff]
    %v3612 = vld [vmem:[%s6 + $0xf0] sm:$0xff]
    %v3613 = vld [vmem:[%s6 + $0xf8] sm:$0xff]
    %v3614 = vld [vmem:[%s7] sm:$0x1]
    %v3616 = vlaneseq
    %v3617 = vshrl.u32 %v3616, 7
    %v3618 = vsub.s32 0, %v3617
    %v3619 = vrot.slane %v3614, %v3618
    %3621 = vmatprep.subr.mxu0 0.0
    %3622 = vmatpush1.msra.mxu0 %v3582
    %3623 = vmatprep.subr.mxu0 0.0
    %3624 = vmatpush1.msra.mxu0 %v3583
    %3625 = vmatprep.subr.mxu0 0.0
    %3626 = vmatpush1.msra.mxu0 %v3584
    %3627 = vmatprep.subr.mxu0 0.0
    %3628 = vmatpush1.msra.mxu0 %v3585
    %3629 = vmatprep.subr.mxu0 0.0
    %3630 = vmatpush1.msra.mxu0 %v3586
    %3631 = vmatprep.subr.mxu0 0.0
    %3632 = vmatpush1.msra.mxu0 %v3587
    %3633 = vmatprep.subr.mxu0 0.0
    %3634 = vmatpush1.msra.mxu0 %v3588
    %3635 = vmatprep.subr.mxu0 0.0
    %3636 = vmatpush1.msra.mxu0 %v3589
    %3637 = vmatprep.subr.mxu0 0.0
    %3638 = vmatpush1.msra.mxu0 %v3590
    %3639 = vmatprep.subr.mxu0 0.0
    %3640 = vmatpush1.msra.mxu0 %v3591
    %3641 = vmatprep.subr.mxu0 0.0
    %3642 = vmatpush1.msra.mxu0 %v3592
    %3643 = vmatprep.subr.mxu0 0.0
    %3644 = vmatpush1.msra.mxu0 %v3593
    %3645 = vmatprep.subr.mxu0 0.0
    %3646 = vmatpush1.msra.mxu0 %v3594
    %3647 = vmatprep.subr.mxu0 0.0
    %3648 = vmatpush1.msra.mxu0 %v3595
    %3649 = vmatprep.subr.mxu0 0.0
    %3650 = vmatpush1.msra.mxu0 %v3596
    %3651 = vmatprep.subr.mxu0 0.0
    %3652 = vmatpush1.msra.mxu0 %v3597
    %3653 = vmatprep.subr.mxu0 0.0
    %3654 = vmatpush1.msra.mxu0 %v3598
    %3655 = vmatprep.subr.mxu0 0.0
    %3656 = vmatpush1.msra.mxu0 %v3599
    %3657 = vmatprep.subr.mxu0 0.0
    %3658 = vmatpush1.msra.mxu0 %v3600
    %3659 = vmatprep.subr.mxu0 0.0
    %3660 = vmatpush1.msra.mxu0 %v3601
    %3661 = vmatprep.subr.mxu0 0.0
    %3662 = vmatpush1.msra.mxu0 %v3602
    %3663 = vmatprep.subr.mxu0 0.0
    %3664 = vmatpush1.msra.mxu0 %v3603
    %3665 = vmatprep.subr.mxu0 0.0
    %3666 = vmatpush1.msra.mxu0 %v3604
    %3667 = vmatprep.subr.mxu0 0.0
    %3668 = vmatpush1.msra.mxu0 %v3605
    %3669 = vmatprep.subr.mxu0 0.0
    %3670 = vmatpush1.msra.mxu0 %v3606
    %3671 = vmatprep.subr.mxu0 0.0
    %3672 = vmatpush1.msra.mxu0 %v3607
    %3673 = vmatprep.subr.mxu0 0.0
    %3674 = vmatpush1.msra.mxu0 %v3608
    %3675 = vmatprep.subr.mxu0 0.0
    %3676 = vmatpush1.msra.mxu0 %v3609
    %3677 = vmatprep.subr.mxu0 0.0
    %3678 = vmatpush1.msra.mxu0 %v3610
    %3679 = vmatprep.subr.mxu0 0.0
    %3680 = vmatpush1.msra.mxu0 %v3611
    %3681 = vmatprep.subr.mxu0 0.0
    %3682 = vmatpush1.msra.mxu0 %v3612
    %3683 = vmatprep.subr.mxu0 0.0
    %3684 = vmatpush1.msra.mxu0 %v3613
    %3685 = vmatprep.mubr.f32.mxu0 %v3567
    %3686 = vmatmul.mubr.f32.gmra.mrb[0].mxu0 %v3566
    %v3687 = vpop.f32.mrb[0].mxu0
    %v3688 = vadd.f32 %v3619, %v3687
    %v3689 = vpop.f32.mrb[0].mxu0
    %3690 = vmatprep.mubr.f32.mxu0 %v3569
    %3691 = vmatmul.mubr.f32.gmra.mrb[0].mxu0 %v3568
    %v3692 = vpop.f32.mrb[0].mxu0
    %v3693 = vadd.f32 %v3619, %v3692
    %v3694 = vpop.f32.mrb[0].mxu0
    %3695 = vmatprep.mubr.f32.mxu0 %v3571
    %3696 = vmatmul.mubr.f32.gmra.mrb[0].mxu0 %v3570
    %v3697 = vpop.f32.mrb[0].mxu0
    %v3698 = vadd.f32 %v3619, %v3697
    %v3699 = vpop.f32.mrb[0].mxu0
    %3700 = vmatprep.mubr.f32.mxu0 %v3573
    %3701 = vmatmul.mubr.f32.gmra.mrb[0].mxu0 %v3572
    %v3702 = vpop.f32.mrb[0].mxu0
    %v3703 = vadd.f32 %v3619, %v3702
    %v3704 = vpop.f32.mrb[0].mxu0
    %3705 = vmatprep.mubr.f32.mxu0 %v3575
    %3706 = vmatmul.mubr.f32.gmra.mrb[0].mxu0 %v3574
    %v3707 = vpop.f32.mrb[0].mxu0
    %v3708 = vadd.f32 %v3619, %v3707
    %v3709 = vpop.f32.mrb[0].mxu0
    %3710 = vmatprep.mubr.f32.mxu0 %v3577
    %3711 = vmatmul.mubr.f32.gmra.mrb[0].mxu0 %v3576
    %v3712 = vpop.f32.mrb[0].mxu0
    %v3713 = vadd.f32 %v3619, %v3712
    %v3714 = vpop.f32.mrb[0].mxu0
    %3715 = vmatprep.mubr.f32.mxu0 %v3579
    %3716 = vmatmul.mubr.f32.gmra.mrb[0].mxu0 %v3578
    %v3717 = vpop.f32.mrb[0].mxu0
    %v3718 = vadd.f32 %v3619, %v3717
    %v3719 = vpop.f32.mrb[0].mxu0
    %3720 = vmatprep.mubr.f32.mxu0 %v3581
    %3721 = vmatmul.mubr.f32.gmra.mrb[0].mxu0 %v3580
    %v3722 = vpop.f32.mrb[0].mxu0
    %v3723 = vadd.f32 %v3619, %v3722
    %v3724 = vpop.f32.mrb[0].mxu0
    %3725 = vdwg.mxu0
    %vm3726 = vcmask 64512
    %3727 = vst.msk [vmem:[%s8] sm:$0xff] %vm3726, %v3688
    %3728 = vst.msk [vmem:[%s8 + $0x8] sm:$0xff] %vm3726, %v3693
    %3729 = vst.msk [vmem:[%s8 + $0x10] sm:$0xff] %vm3726, %v3698
    %3730 = vst.msk [vmem:[%s8 + $0x18] sm:$0xff] %vm3726, %v3703
    %3731 = vst.msk [vmem:[%s8 + $0x20] sm:$0xff] %vm3726, %v3708
    %3732 = vst.msk [vmem:[%s8 + $0x28] sm:$0xff] %vm3726, %v3713
    %3733 = vst.msk [vmem:[%s8 + $0x30] sm:$0xff] %vm3726, %v3718
    %3734 = vst.msk [vmem:[%s8 + $0x38] sm:$0xff] %vm3726, %v3723
    // Predicated region
    $region38: #{tpu_custom_call.1} parent=1 // pred_check
      _
    $region39: #{tpu_custom_call.1} parent=1 // pred_check_branch
      %3736 = sbr.rel (0) target = $region41
    $region40: #{tpu_custom_call.1} parent=1 // pred_region
      _
    $region41: #{tpu_custom_call.1} parent=1 // pred_fallthru
      _
    // Predicated region
    $region42: #{tpu_custom_call.1} parent=1 // pred_check
      _
    $region43: #{tpu_custom_call.1} parent=1 // pred_check_branch
      %3738 = sbr.rel (0) target = $region45
    $region44: #{tpu_custom_call.1} parent=1 // pred_region
      _
    $region45: #{tpu_custom_call.1} parent=1 // pred_fallthru
      _
    %3739 = vsyncpa [#allocation4], 1

</llo_original>
